<compile_context>
chip_gen: v7x
topology: tpu7x:2x2x1
jax: 0.10.0
libtpu: 0.0.40
codegen_flags: <defaults>
</compile_context>

<pallas_src>
import functools

import numpy as np
import jax
import jax.numpy as jnp
from jax import lax
from jax.experimental import pallas as pl
from jax.experimental.pallas import tpu as pltpu

# ----------------------------- configuration --------------------------------
DIM        = 32
HEADS      = 4
DIM_HEAD   = 8
INNER      = HEADS * DIM_HEAD          # 32
FF_MULT    = 4
FF_HIDDEN  = DIM * FF_MULT             # 128
DEPTHS     = (2, 2)
NUM_LAYERS = sum(DEPTHS)               # 4
LN_EPS     = 1e-5                      # torch.nn.LayerNorm default
SCALE      = DIM_HEAD ** -0.5
NEG_INF    = -1e30

# column offsets inside the packed per-layer "row weight" slab (shared 32-row dim)
_WQKV_LO, _WQKV_HI = 0, 3 * INNER                    # [0, 96)    Wq | Wk | Wv
_WO_LO,   _WO_HI   = 3 * INNER, 4 * INNER            # [96, 128)  Wo
_W1_LO,   _W1_HI   = 4 * INNER, 4 * INNER + FF_HIDDEN  # [128, 256) W1
WROW_COLS = _W1_HI                                   # 256

# rows inside the packed per-layer vector slab (7, FF_HIDDEN)
_V_ATT_G, _V_ATT_B, _V_BO, _V_FF_G, _V_FF_B, _V_B2, _V_B1 = range(7)


# ------------------------------ in-kernel math --------------------------------
def _layernorm(x, g, b):
  mu = jnp.mean(x, axis=-1, keepdims=True)
  xc = x - mu
  var = jnp.mean(xc * xc, axis=-1, keepdims=True)
  return xc * lax.rsqrt(var + LN_EPS) * g + b


def _gelu_tanh(x):
  # tanh-approx GELU (== torch nn.GELU(approximate='tanh')); tanh runs on the EUP slot.
  c = 0.7978845608028654  # sqrt(2/pi)
  return 0.5 * x * (1.0 + jnp.tanh(c * (x + 0.044715 * x * x * x)))


def _attn_core(q, k, v, wo, bo, mask):
  """Multi-head attention on batch-stacked rows.

  q: (rq, INNER), k/v: (rk, INNER) with head h occupying lanes [8h, 8h+8).
  mask: None, or (rq, rk) additive constant keeping attention within each batch block.
  wo: (INNER, DIM), bo: (1, DIM).
  """
  outs = []
  for h in range(HEADS):                                   # static unroll, H=4
    lo, hi = h * DIM_HEAD, (h + 1) * DIM_HEAD
    qh, kh, vh = q[:, lo:hi], k[:, lo:hi], v[:, lo:hi]
    s = lax.dot_general(qh, kh, (((1,), (1,)), ((), ())),
                        preferred_element_type=jnp.float32) * SCALE   # (rq, rk)
    if mask is not None:
      s = s + mask
    mx = jnp.max(s, axis=-1, keepdims=True)
    e = jnp.exp(s - mx)
    p = e * pl.reciprocal(jnp.sum(e, axis=-1, keepdims=True), approx=True)  # EUP vrcp
    outs.append(jnp.dot(p, vh, preferred_element_type=jnp.float32))         # (rq, 8)
  o = jnp.concatenate(outs, axis=-1)                                        # (rq, 32)
  return jnp.dot(o, wo, preferred_element_type=jnp.float32) + bo            # (rq, DIM)


# ------------------------------ fused kernel ----------------------------------
def _make_kernel(bc, n):
  """bc = batch rows stacked per grid step, n = sequence length."""
  rows = bc * n
  half = rows // 2
  use_mask = bc > 1

  def kernel(x_ref, vec_ref, wrow_ref, w2_ref, const_ref, o_ref):
    x = x_ref[0]                                            # (rows, DIM)

    cm_full = const_ref[0] if use_mask else None                     # (rows, rows)
    cm_down = const_ref[1][:half, :] if use_mask else None           # (half, rows)
    cm_half = const_ref[2][:half, :half] if use_mask else None       # (half, half)
    pool_m  = const_ref[3][:half, :]                                 # pair-mean pool
    rep_m   = const_ref[4][:, :half]                                 # final repeat

    res = None
    li = 0
    for layer_ind, depth in enumerate(DEPTHS):              # static unroll over all layers
      if layer_ind == 1:
        res = x                                             # residual saved before downsample
      for ind in range(depth):
        l = li
        li += 1
        downsample = (layer_ind != 0) and (ind == 0)

        vecs = vec_ref[l]                                   # (7, 128)
        ag = vecs[_V_ATT_G:_V_ATT_G + 1, :DIM]
        ab = vecs[_V_ATT_B:_V_ATT_B + 1, :DIM]
        bo = vecs[_V_BO:_V_BO + 1, :DIM]
        fg = vecs[_V_FF_G:_V_FF_G + 1, :DIM]
        fb = vecs[_V_FF_B:_V_FF_B + 1, :DIM]
        b2 = vecs[_V_B2:_V_B2 + 1, :DIM]
        b1 = vecs[_V_B1:_V_B1 + 1, :]                       # (1, 128)
        wrow = wrow_ref[l]                                  # (32, 256)
        wqkv = wrow[:, _WQKV_LO:_WQKV_HI]                   # (32, 96)
        wo   = wrow[:, _WO_LO:_WO_HI]                       # (32, 32)
        w1   = wrow[:, _W1_LO:_W1_HI]                       # (32, 128)
        w2   = w2_ref[l]                                    # (128, 32)

        # --- PreNorm + attention (+ residual when not downsampling) ---
        xn = _layernorm(x, ag, ab)
        qkv = jnp.dot(xn, wqkv, preferred_element_type=jnp.float32)   # single 96-lane push
        k = qkv[:, INNER:2 * INNER]
        v = qkv[:, 2 * INNER:3 * INNER]
        if downsample:
          # pooling is linear: pool(xn) @ Wq == pool(xn @ Wq) -> reuse the q slice.
          q = jnp.dot(pool_m, qkv[:, :INNER], preferred_element_type=jnp.float32)
          x = _attn_core(q, k, v, wo, bo, cm_down)
        else:
          q = qkv[:, :INNER]
          m_attn = cm_full if layer_ind == 0 else cm_half
          x = _attn_core(q, k, v, wo, bo, m_attn) + x

        # --- PreNorm + FeedForward + residual (GELU hidden stays lane-dense, 128 wide) ---
        fn = _layernorm(x, fg, fb)
        hdn = _gelu_tanh(jnp.dot(fn, w1, preferred_element_type=jnp.float32) + b1)
        x = jnp.dot(hdn, w2, preferred_element_type=jnp.float32) + b2 + x

    # final: repeat 'n d -> (n m) d' (m = 2**(num_downsamples-1)) and add residual
    x_up = jnp.dot(rep_m, x, preferred_element_type=jnp.float32)
    o_ref[0] = (x_up + res).astype(o_ref.dtype)

  return kernel


# --------------------------- compile-time constants ----------------------------
def _build_consts(bc, n):
  """Cross-batch masks + pool/repeat matrices, padded into one (5, R, R) slab."""
  rows, half = bc * n, bc * n // 2
  n_half = n // 2
  m_rep = 2 ** (len(DEPTHS) - 1)

  def cross_mask(nq, nk):
    rq = np.arange(bc * nq)[:, None] // nq
    rk = np.arange(bc * nk)[None, :] // nk
    return np.where(rq == rk, 0.0, NEG_INF)

  c = np.zeros((5, rows, rows), np.float32)
  c[0] = cross_mask(n, n)                                   # full-length self-attn
  c[1, :half, :] = cross_mask(n_half, n)                    # downsample (pooled q, full kv)
  c[2, :half, :half] = cross_mask(n_half, n_half)           # post-downsample self-attn
  for b in range(bc):                                       # pair-mean pool
    for j in range(n_half):
      c[3, b * n_half + j, b * n + 2 * j] = 0.5
      c[3, b * n_half + j, b * n + 2 * j + 1] = 0.5
  for b in range(bc):                                       # repeat 'n d -> (n m) d'
    for i in range(n):
      c[4, b * n + i, b * n_half + i // m_rep] = 1.0
  return jnp.asarray(c)


# --------------------------- pallas_call wrapper -------------------------------
def funnel_encoder_forward(x, p, *, grid_splits=1):
  """grid_splits=1: single grid step, batch stacked on sublanes (best on 1-TC v5e/v6e).
     grid_splits=2: parallel grid axis, one batch chunk per TensorCore (v7x)."""
  B, N, D = x.shape
  assert D == DIM
  assert N % (2 ** (len(DEPTHS) - 1)) == 0   # TODO(synk): odd-sequence remainder path
  assert B % grid_splits == 0
  bc = B // grid_splits
  rows = bc * N
  L = NUM_LAYERS

  consts = _build_consts(bc, N)
  x_stacked = x.reshape(grid_splits, rows, D)   # pure metadata reshape

  def full(shape):
    return pl.BlockSpec(shape, lambda i, _nd=len(shape): (0,) * _nd)

  out = pl.pallas_call(
      _make_kernel(bc, N),
      out_shape=jax.ShapeDtypeStruct((grid_splits, rows, D), x.dtype),
      grid=(grid_splits,),
      in_specs=[
          pl.BlockSpec((1, rows, D), lambda i: (i, 0, 0)),  # batch-stacked activations
          full((L, 7, FF_HIDDEN)),                          # packed per-layer vectors
          full((L, DIM, WROW_COLS)),                        # Wq|Wk|Wv|Wo|W1 packed
          full((L, FF_HIDDEN, DIM)),                        # W2
          full((5, rows, rows)),                            # masks + pool/repeat matrices
      ],
      out_specs=pl.BlockSpec((1, rows, D), lambda i: (i, 0, 0)),
      compiler_params=pltpu.CompilerParams(dimension_semantics=("parallel",)),
  )(x_stacked, p["vec"], p["wrow"], p["w2"], consts)
  return out.reshape(B, N, D)


# ------------------------------ parameters ------------------------------------
def init_params(key):
  params = []
  for k in jax.random.split(key, NUM_LAYERS):
    ks = jax.random.split(k, 8)
    params.append(dict(
        attn_ln_g=jnp.ones((DIM,), jnp.float32),
        attn_ln_b=jnp.zeros((DIM,), jnp.float32),
        wq=0.02 * jax.random.normal(ks[0], (DIM, INNER), jnp.float32),
        wk=0.02 * jax.random.normal(ks[1], (DIM, INNER), jnp.float32),
        wv=0.02 * jax.random.normal(ks[2], (DIM, INNER), jnp.float32),
        wo=0.02 * jax.random.normal(ks[3], (INNER, DIM), jnp.float32),
        bo=jnp.zeros((DIM,), jnp.float32),
        ff_ln_g=jnp.ones((DIM,), jnp.float32),
        ff_ln_b=jnp.zeros((DIM,), jnp.float32),
        w1=0.02 * jax.random.normal(ks[4], (DIM, FF_HIDDEN), jnp.float32),
        b1=0.02 * jax.random.normal(ks[5], (FF_HIDDEN,), jnp.float32),
        w2=0.02 * jax.random.normal(ks[6], (FF_HIDDEN, DIM), jnp.float32),
        b2=0.02 * jax.random.normal(ks[7], (DIM,), jnp.float32),
    ))
  return params


def pack_params(params):
  """Pack per-layer weights into 3 slabs: vec (L,7,128), wrow (L,32,256), w2 (L,128,32)."""
  def vec_slab(p):
    def row(v):
      v = v.reshape(1, -1)
      return jnp.pad(v, ((0, 0), (0, FF_HIDDEN - v.shape[1])))
    return jnp.concatenate([row(p["attn_ln_g"]), row(p["attn_ln_b"]), row(p["bo"]),
                            row(p["ff_ln_g"]), row(p["ff_ln_b"]), row(p["b2"]),
                            p["b1"].reshape(1, FF_HIDDEN)], axis=0)      # (7, 128)

  vec = jnp.stack([vec_slab(p) for p in params], axis=0)
  wrow = jnp.stack(
      [jnp.concatenate([p["wq"], p["wk"], p["wv"], p["wo"], p["w1"]], axis=1)
       for p in params], axis=0)                                         # (L, 32, 256)
  w2 = jnp.stack([p["w2"] for p in params], axis=0)                      # (L, 128, 32)
  return dict(vec=vec, wrow=wrow, w2=w2)


# --------------------------- pure-JAX reference --------------------------------
def funnel_reference(x, params):
  B, N, D = x.shape

  def ln(v, g, b):
    mu = v.mean(-1, keepdims=True)
    xc = v - mu
    var = (xc * xc).mean(-1, keepdims=True)
    return xc * lax.rsqrt(var + LN_EPS) * g + b

  def gelu(v):
    return 0.5 * v * (1.0 + jnp.tanh(0.7978845608028654 * (v + 0.044715 * v * v * v)))

  def split_heads(t):
    b, n, _ = t.shape
    return t.reshape(b, n, HEADS, DIM_HEAD).transpose(0, 2, 1, 3)

  def attn(xq, xkv, p):
    q = split_heads(xq @ p["wq"])
    k = split_heads(xkv @ p["wk"])
    v = split_heads(xkv @ p["wv"])
    s = jnp.einsum("bhqe,bhke->bhqk", q, k) * SCALE
    pr = jax.nn.softmax(s, axis=-1)
    o = jnp.einsum("bhqk,bhke->bhqe", pr, v)
    o = o.transpose(0, 2, 1, 3).reshape(xq.shape[0], xq.shape[1], INNER)
    return o @ p["wo"] + p["bo"]

  def ff(v, p):
    h = gelu(ln(v, p["ff_ln_g"], p["ff_ln_b"]) @ p["w1"] + p["b1"])
    return h @ p["w2"] + p["b2"]

  li, res = 0, None
  for layer_ind, depth in enumerate(DEPTHS):
    if layer_ind == 1:
      res = x
    for ind in range(depth):
      p = params[li]
      li += 1
      downsample = (layer_ind != 0) and (ind == 0)
      xn = ln(x, p["attn_ln_g"], p["attn_ln_b"])
      if downsample:
        pooled = xn.reshape(B, xn.shape[1] // 2, 2, D).mean(axis=2)
        x = attn(pooled, xn, p)
      else:
        x = attn(xn, xn, p) + x
      x = ff(x, p) + x
  m = 2 ** (len(DEPTHS) - 1)
  return jnp.repeat(x, m, axis=1)[:, :N] + res


# --------------------------------- main ----------------------------------------
if __name__ == "__main__":
  key = jax.random.PRNGKey(0)
  kx, kp = jax.random.split(key)
  B, N = 2, 8
  x = jax.random.normal(kx, (B, N, DIM), jnp.float32)
  raw = init_params(kp)
  packed = pack_params(raw)

  fwd = jax.jit(functools.partial(funnel_encoder_forward, grid_splits=1))
  out = jax.block_until_ready(fwd(x, packed))

  assert out.shape == (B, N, DIM), out.shape
  assert bool(jnp.all(jnp.isfinite(out)))

  ref = funnel_reference(x, raw)
  err = float(jnp.max(jnp.abs(out - ref)))
  assert jnp.allclose(out, ref, atol=1e-2, rtol=1e-2), err
  print("KERNEL_OK")
</pallas_src>

<mosaic_0001>
module attributes {stable_mosaic.version = 11 : i64} {
  func.func @kernel(%arg0: i32, %arg1: memref<1x16x32xf32, #tpu.memory_space<vmem>>, %arg2: memref<4x7x128xf32, #tpu.memory_space<vmem>>, %arg3: memref<4x32x256xf32, #tpu.memory_space<vmem>>, %arg4: memref<4x128x32xf32, #tpu.memory_space<vmem>>, %arg5: memref<5x16x16xf32, #tpu.memory_space<vmem>>, %arg6: memref<1x16x32xf32, #tpu.memory_space<vmem>>) attributes {dimension_semantics = [#tpu.dimension_semantics<parallel>], iteration_bounds = array<i64: 1>, scalar_prefetch = 0 : i64, scratch_operands = 0 : i64, tpu.core_type = #tpu.core_type<tc>, window_params = [{transform_indices = @transform_0, window_bounds = array<i64: 1, 16, 32>}, {pipeline_mode = #tpu.pipeline_mode<synchronous>, transform_indices = @transform_1, window_bounds = array<i64: 4, 7, 128>}, {pipeline_mode = #tpu.pipeline_mode<synchronous>, transform_indices = @transform_2, window_bounds = array<i64: 4, 32, 256>}, {pipeline_mode = #tpu.pipeline_mode<synchronous>, transform_indices = @transform_3, window_bounds = array<i64: 4, 128, 32>}, {pipeline_mode = #tpu.pipeline_mode<synchronous>, transform_indices = @transform_4, window_bounds = array<i64: 5, 16, 16>}, {transform_indices = @transform_5, window_bounds = array<i64: 1, 16, 32>}]} {
    %c0 = arith.constant 0 : index
    %c0_0 = arith.constant 0 : index
    %c0_1 = arith.constant 0 : index
    %0 = vector.load %arg1[%c0, %c0_0, %c0_1] : memref<1x16x32xf32, #tpu.memory_space<vmem>>, vector<1x16x32xf32>
    %1 = vector.shape_cast %0 : vector<1x16x32xf32> to vector<16x32xf32>
    %c0_2 = arith.constant 0 : index
    %c0_3 = arith.constant 0 : index
    %c0_4 = arith.constant 0 : index
    %2 = vector.load %arg5[%c0_2, %c0_3, %c0_4] : memref<5x16x16xf32, #tpu.memory_space<vmem>>, vector<1x16x16xf32>
    %3 = vector.shape_cast %2 : vector<1x16x16xf32> to vector<16x16xf32>
    %c1 = arith.constant 1 : index
    %c0_5 = arith.constant 0 : index
    %c0_6 = arith.constant 0 : index
    %4 = vector.load %arg5[%c1, %c0_5, %c0_6] : memref<5x16x16xf32, #tpu.memory_space<vmem>>, vector<1x16x16xf32>
    %5 = vector.shape_cast %4 : vector<1x16x16xf32> to vector<16x16xf32>
    %6 = vector.extract_strided_slice %5 {offsets = [0, 0], sizes = [8, 16], strides = [1, 1]} : vector<16x16xf32> to vector<8x16xf32>
    %c2 = arith.constant 2 : index
    %c0_7 = arith.constant 0 : index
    %c0_8 = arith.constant 0 : index
    %7 = vector.load %arg5[%c2, %c0_7, %c0_8] : memref<5x16x16xf32, #tpu.memory_space<vmem>>, vector<1x16x16xf32>
    %8 = vector.shape_cast %7 : vector<1x16x16xf32> to vector<16x16xf32>
    %9 = vector.extract_strided_slice %8 {offsets = [0, 0], sizes = [8, 8], strides = [1, 1]} : vector<16x16xf32> to vector<8x8xf32>
    %c3 = arith.constant 3 : index
    %c0_9 = arith.constant 0 : index
    %c0_10 = arith.constant 0 : index
    %10 = vector.load %arg5[%c3, %c0_9, %c0_10] : memref<5x16x16xf32, #tpu.memory_space<vmem>>, vector<1x16x16xf32>
    %11 = vector.shape_cast %10 : vector<1x16x16xf32> to vector<16x16xf32>
    %12 = vector.extract_strided_slice %11 {offsets = [0, 0], sizes = [8, 16], strides = [1, 1]} : vector<16x16xf32> to vector<8x16xf32>
    %c4 = arith.constant 4 : index
    %c0_11 = arith.constant 0 : index
    %c0_12 = arith.constant 0 : index
    %13 = vector.load %arg5[%c4, %c0_11, %c0_12] : memref<5x16x16xf32, #tpu.memory_space<vmem>>, vector<1x16x16xf32>
    %14 = vector.shape_cast %13 : vector<1x16x16xf32> to vector<16x16xf32>
    %15 = vector.extract_strided_slice %14 {offsets = [0, 0], sizes = [16, 8], strides = [1, 1]} : vector<16x16xf32> to vector<16x8xf32>
    %c0_13 = arith.constant 0 : index
    %c0_14 = arith.constant 0 : index
    %c0_15 = arith.constant 0 : index
    %16 = vector.load %arg2[%c0_13, %c0_14, %c0_15] : memref<4x7x128xf32, #tpu.memory_space<vmem>>, vector<1x7x128xf32>
    %17 = vector.shape_cast %16 : vector<1x7x128xf32> to vector<7x128xf32>
    %18 = vector.extract_strided_slice %17 {offsets = [0, 0], sizes = [1, 32], strides = [1, 1]} : vector<7x128xf32> to vector<1x32xf32>
    %19 = vector.extract_strided_slice %17 {offsets = [1, 0], sizes = [1, 32], strides = [1, 1]} : vector<7x128xf32> to vector<1x32xf32>
    %20 = vector.extract_strided_slice %17 {offsets = [2, 0], sizes = [1, 32], strides = [1, 1]} : vector<7x128xf32> to vector<1x32xf32>
    %21 = vector.extract_strided_slice %17 {offsets = [3, 0], sizes = [1, 32], strides = [1, 1]} : vector<7x128xf32> to vector<1x32xf32>
    %22 = vector.extract_strided_slice %17 {offsets = [4, 0], sizes = [1, 32], strides = [1, 1]} : vector<7x128xf32> to vector<1x32xf32>
    %23 = vector.extract_strided_slice %17 {offsets = [5, 0], sizes = [1, 32], strides = [1, 1]} : vector<7x128xf32> to vector<1x32xf32>
    %24 = vector.extract_strided_slice %17 {offsets = [6, 0], sizes = [1, 128], strides = [1, 1]} : vector<7x128xf32> to vector<1x128xf32>
    %c0_16 = arith.constant 0 : index
    %c0_17 = arith.constant 0 : index
    %c0_18 = arith.constant 0 : index
    %25 = vector.load %arg3[%c0_16, %c0_17, %c0_18] : memref<4x32x256xf32, #tpu.memory_space<vmem>>, vector<1x32x256xf32>
    %26 = vector.shape_cast %25 : vector<1x32x256xf32> to vector<32x256xf32>
    %27 = vector.extract_strided_slice %26 {offsets = [0, 0], sizes = [32, 96], strides = [1, 1]} : vector<32x256xf32> to vector<32x96xf32>
    %28 = vector.extract_strided_slice %26 {offsets = [0, 96], sizes = [32, 32], strides = [1, 1]} : vector<32x256xf32> to vector<32x32xf32>
    %29 = vector.extract_strided_slice %26 {offsets = [0, 128], sizes = [32, 128], strides = [1, 1]} : vector<32x256xf32> to vector<32x128xf32>
    %c0_19 = arith.constant 0 : index
    %c0_20 = arith.constant 0 : index
    %c0_21 = arith.constant 0 : index
    %30 = vector.load %arg4[%c0_19, %c0_20, %c0_21] : memref<4x128x32xf32, #tpu.memory_space<vmem>>, vector<1x128x32xf32>
    %31 = vector.shape_cast %30 : vector<1x128x32xf32> to vector<128x32xf32>
    %cst = arith.constant dense<0.000000e+00> : vector<16xf32>
    %32 = vector.multi_reduction <add>, %1, %cst [1] : vector<16x32xf32> to vector<16xf32>
    %33 = vector.shape_cast %32 : vector<16xf32> to vector<16x1xf32>
    %cst_22 = arith.constant 3.200000e+01 : f32
    %34 = vector.broadcast %cst_22 : f32 to vector<16x1xf32>
    %35 = arith.divf %33, %34 : vector<16x1xf32>
    %36 = vector.broadcast %35 : vector<16x1xf32> to vector<16x32xf32>
    %37 = arith.subf %1, %36 : vector<16x32xf32>
    %38 = arith.mulf %37, %37 : vector<16x32xf32>
    %cst_23 = arith.constant dense<0.000000e+00> : vector<16xf32>
    %39 = vector.multi_reduction <add>, %38, %cst_23 [1] : vector<16x32xf32> to vector<16xf32>
    %40 = vector.shape_cast %39 : vector<16xf32> to vector<16x1xf32>
    %cst_24 = arith.constant 3.200000e+01 : f32
    %41 = vector.broadcast %cst_24 : f32 to vector<16x1xf32>
    %42 = arith.divf %40, %41 : vector<16x1xf32>
    %cst_25 = arith.constant 9.99999974E-6 : f32
    %43 = vector.broadcast %cst_25 : f32 to vector<16x1xf32>
    %44 = arith.addf %42, %43 : vector<16x1xf32>
    %45 = math.rsqrt %44 : vector<16x1xf32>
    %46 = vector.broadcast %45 : vector<16x1xf32> to vector<16x32xf32>
    %47 = arith.mulf %37, %46 : vector<16x32xf32>
    %48 = vector.broadcast %18 : vector<1x32xf32> to vector<16x32xf32>
    %49 = arith.mulf %47, %48 : vector<16x32xf32>
    %50 = vector.broadcast %19 : vector<1x32xf32> to vector<16x32xf32>
    %51 = arith.addf %49, %50 : vector<16x32xf32>
    %cst_26 = arith.constant dense<0.000000e+00> : vector<16x96xf32>
    %52 = tpu.matmul %51, %27, %cst_26 {dimension_numbers = #tpu.dot_dimension_numbers<[1], [0], [0], [1], [0, 0, 1, 1], [], []>} : vector<16x32xf32>, vector<32x96xf32>, vector<16x96xf32> -> vector<16x96xf32>
    %53 = vector.extract_strided_slice %52 {offsets = [0, 32], sizes = [16, 32], strides = [1, 1]} : vector<16x96xf32> to vector<16x32xf32>
    %54 = vector.extract_strided_slice %52 {offsets = [0, 64], sizes = [16, 32], strides = [1, 1]} : vector<16x96xf32> to vector<16x32xf32>
    %55 = vector.extract_strided_slice %52 {offsets = [0, 0], sizes = [16, 32], strides = [1, 1]} : vector<16x96xf32> to vector<16x32xf32>
    %56 = vector.extract_strided_slice %55 {offsets = [0, 0], sizes = [16, 8], strides = [1, 1]} : vector<16x32xf32> to vector<16x8xf32>
    %57 = vector.extract_strided_slice %53 {offsets = [0, 0], sizes = [16, 8], strides = [1, 1]} : vector<16x32xf32> to vector<16x8xf32>
    %58 = vector.extract_strided_slice %54 {offsets = [0, 0], sizes = [16, 8], strides = [1, 1]} : vector<16x32xf32> to vector<16x8xf32>
    %cst_27 = arith.constant dense<0.000000e+00> : vector<16x16xf32>
    %59 = tpu.matmul %56, %57, %cst_27 {dimension_numbers = #tpu.dot_dimension_numbers<[1], [1], [0], [0], [0, 0, 1, 0], [], []>} : vector<16x8xf32>, vector<16x8xf32>, vector<16x16xf32> -> vector<16x16xf32>
    %cst_28 = arith.constant 0.353553385 : f32
    %60 = vector.broadcast %cst_28 : f32 to vector<16x16xf32>
    %61 = arith.mulf %59, %60 : vector<16x16xf32>
    %62 = arith.addf %61, %3 : vector<16x16xf32>
    %cst_29 = arith.constant dense<0xFF800000> : vector<16xf32>
    %63 = vector.multi_reduction <maximumf>, %62, %cst_29 [1] : vector<16x16xf32> to vector<16xf32>
    %64 = vector.shape_cast %63 : vector<16xf32> to vector<16x1xf32>
    %65 = vector.broadcast %64 : vector<16x1xf32> to vector<16x16xf32>
    %66 = arith.subf %62, %65 : vector<16x16xf32>
    %67 = math.exp %66 : vector<16x16xf32>
    %cst_30 = arith.constant dense<0.000000e+00> : vector<16xf32>
    %68 = vector.multi_reduction <add>, %67, %cst_30 [1] : vector<16x16xf32> to vector<16xf32>
    %69 = vector.shape_cast %68 : vector<16xf32> to vector<16x1xf32>
    %70 = tpu.reciprocal %69 {approx = true} : vector<16x1xf32> -> vector<16x1xf32>
    %71 = vector.broadcast %70 : vector<16x1xf32> to vector<16x16xf32>
    %72 = arith.mulf %67, %71 : vector<16x16xf32>
    %cst_31 = arith.constant dense<0.000000e+00> : vector<16x8xf32>
    %73 = tpu.matmul %72, %58, %cst_31 {dimension_numbers = #tpu.dot_dimension_numbers<[1], [0], [0], [1], [0, 0, 1, 1], [], []>} : vector<16x16xf32>, vector<16x8xf32>, vector<16x8xf32> -> vector<16x8xf32>
    %74 = vector.extract_strided_slice %55 {offsets = [0, 8], sizes = [16, 8], strides = [1, 1]} : vector<16x32xf32> to vector<16x8xf32>
    %75 = vector.extract_strided_slice %53 {offsets = [0, 8], sizes = [16, 8], strides = [1, 1]} : vector<16x32xf32> to vector<16x8xf32>
    %76 = vector.extract_strided_slice %54 {offsets = [0, 8], sizes = [16, 8], strides = [1, 1]} : vector<16x32xf32> to vector<16x8xf32>
    %cst_32 = arith.constant dense<0.000000e+00> : vector<16x16xf32>
    %77 = tpu.matmul %74, %75, %cst_32 {dimension_numbers = #tpu.dot_dimension_numbers<[1], [1], [0], [0], [0, 0, 1, 0], [], []>} : vector<16x8xf32>, vector<16x8xf32>, vector<16x16xf32> -> vector<16x16xf32>
    %cst_33 = arith.constant 0.353553385 : f32
    %78 = vector.broadcast %cst_33 : f32 to vector<16x16xf32>
    %79 = arith.mulf %77, %78 : vector<16x16xf32>
    %80 = arith.addf %79, %3 : vector<16x16xf32>
    %cst_34 = arith.constant dense<0xFF800000> : vector<16xf32>
    %81 = vector.multi_reduction <maximumf>, %80, %cst_34 [1] : vector<16x16xf32> to vector<16xf32>
    %82 = vector.shape_cast %81 : vector<16xf32> to vector<16x1xf32>
    %83 = vector.broadcast %82 : vector<16x1xf32> to vector<16x16xf32>
    %84 = arith.subf %80, %83 : vector<16x16xf32>
    %85 = math.exp %84 : vector<16x16xf32>
    %cst_35 = arith.constant dense<0.000000e+00> : vector<16xf32>
    %86 = vector.multi_reduction <add>, %85, %cst_35 [1] : vector<16x16xf32> to vector<16xf32>
    %87 = vector.shape_cast %86 : vector<16xf32> to vector<16x1xf32>
    %88 = tpu.reciprocal %87 {approx = true} : vector<16x1xf32> -> vector<16x1xf32>
    %89 = vector.broadcast %88 : vector<16x1xf32> to vector<16x16xf32>
    %90 = arith.mulf %85, %89 : vector<16x16xf32>
    %cst_36 = arith.constant dense<0.000000e+00> : vector<16x8xf32>
    %91 = tpu.matmul %90, %76, %cst_36 {dimension_numbers = #tpu.dot_dimension_numbers<[1], [0], [0], [1], [0, 0, 1, 1], [], []>} : vector<16x16xf32>, vector<16x8xf32>, vector<16x8xf32> -> vector<16x8xf32>
    %92 = vector.extract_strided_slice %55 {offsets = [0, 16], sizes = [16, 8], strides = [1, 1]} : vector<16x32xf32> to vector<16x8xf32>
    %93 = vector.extract_strided_slice %53 {offsets = [0, 16], sizes = [16, 8], strides = [1, 1]} : vector<16x32xf32> to vector<16x8xf32>
    %94 = vector.extract_strided_slice %54 {offsets = [0, 16], sizes = [16, 8], strides = [1, 1]} : vector<16x32xf32> to vector<16x8xf32>
    %cst_37 = arith.constant dense<0.000000e+00> : vector<16x16xf32>
    %95 = tpu.matmul %92, %93, %cst_37 {dimension_numbers = #tpu.dot_dimension_numbers<[1], [1], [0], [0], [0, 0, 1, 0], [], []>} : vector<16x8xf32>, vector<16x8xf32>, vector<16x16xf32> -> vector<16x16xf32>
    %cst_38 = arith.constant 0.353553385 : f32
    %96 = vector.broadcast %cst_38 : f32 to vector<16x16xf32>
    %97 = arith.mulf %95, %96 : vector<16x16xf32>
    %98 = arith.addf %97, %3 : vector<16x16xf32>
    %cst_39 = arith.constant dense<0xFF800000> : vector<16xf32>
    %99 = vector.multi_reduction <maximumf>, %98, %cst_39 [1] : vector<16x16xf32> to vector<16xf32>
    %100 = vector.shape_cast %99 : vector<16xf32> to vector<16x1xf32>
    %101 = vector.broadcast %100 : vector<16x1xf32> to vector<16x16xf32>
    %102 = arith.subf %98, %101 : vector<16x16xf32>
    %103 = math.exp %102 : vector<16x16xf32>
    %cst_40 = arith.constant dense<0.000000e+00> : vector<16xf32>
    %104 = vector.multi_reduction <add>, %103, %cst_40 [1] : vector<16x16xf32> to vector<16xf32>
    %105 = vector.shape_cast %104 : vector<16xf32> to vector<16x1xf32>
    %106 = tpu.reciprocal %105 {approx = true} : vector<16x1xf32> -> vector<16x1xf32>
    %107 = vector.broadcast %106 : vector<16x1xf32> to vector<16x16xf32>
    %108 = arith.mulf %103, %107 : vector<16x16xf32>
    %cst_41 = arith.constant dense<0.000000e+00> : vector<16x8xf32>
    %109 = tpu.matmul %108, %94, %cst_41 {dimension_numbers = #tpu.dot_dimension_numbers<[1], [0], [0], [1], [0, 0, 1, 1], [], []>} : vector<16x16xf32>, vector<16x8xf32>, vector<16x8xf32> -> vector<16x8xf32>
    %110 = vector.extract_strided_slice %55 {offsets = [0, 24], sizes = [16, 8], strides = [1, 1]} : vector<16x32xf32> to vector<16x8xf32>
    %111 = vector.extract_strided_slice %53 {offsets = [0, 24], sizes = [16, 8], strides = [1, 1]} : vector<16x32xf32> to vector<16x8xf32>
    %112 = vector.extract_strided_slice %54 {offsets = [0, 24], sizes = [16, 8], strides = [1, 1]} : vector<16x32xf32> to vector<16x8xf32>
    %cst_42 = arith.constant dense<0.000000e+00> : vector<16x16xf32>
    %113 = tpu.matmul %110, %111, %cst_42 {dimension_numbers = #tpu.dot_dimension_numbers<[1], [1], [0], [0], [0, 0, 1, 0], [], []>} : vector<16x8xf32>, vector<16x8xf32>, vector<16x16xf32> -> vector<16x16xf32>
    %cst_43 = arith.constant 0.353553385 : f32
    %114 = vector.broadcast %cst_43 : f32 to vector<16x16xf32>
    %115 = arith.mulf %113, %114 : vector<16x16xf32>
    %116 = arith.addf %115, %3 : vector<16x16xf32>
    %cst_44 = arith.constant dense<0xFF800000> : vector<16xf32>
    %117 = vector.multi_reduction <maximumf>, %116, %cst_44 [1] : vector<16x16xf32> to vector<16xf32>
    %118 = vector.shape_cast %117 : vector<16xf32> to vector<16x1xf32>
    %119 = vector.broadcast %118 : vector<16x1xf32> to vector<16x16xf32>
    %120 = arith.subf %116, %119 : vector<16x16xf32>
    %121 = math.exp %120 : vector<16x16xf32>
    %cst_45 = arith.constant dense<0.000000e+00> : vector<16xf32>
    %122 = vector.multi_reduction <add>, %121, %cst_45 [1] : vector<16x16xf32> to vector<16xf32>
    %123 = vector.shape_cast %122 : vector<16xf32> to vector<16x1xf32>
    %124 = tpu.reciprocal %123 {approx = true} : vector<16x1xf32> -> vector<16x1xf32>
    %125 = vector.broadcast %124 : vector<16x1xf32> to vector<16x16xf32>
    %126 = arith.mulf %121, %125 : vector<16x16xf32>
    %cst_46 = arith.constant dense<0.000000e+00> : vector<16x8xf32>
    %127 = tpu.matmul %126, %112, %cst_46 {dimension_numbers = #tpu.dot_dimension_numbers<[1], [0], [0], [1], [0, 0, 1, 1], [], []>} : vector<16x16xf32>, vector<16x8xf32>, vector<16x8xf32> -> vector<16x8xf32>
    %128 = tpu.concatenate %73, %91, %109, %127 in 1 : vector<16x8xf32>, vector<16x8xf32>, vector<16x8xf32>, vector<16x8xf32> -> vector<16x32xf32>
    %cst_47 = arith.constant dense<0.000000e+00> : vector<16x32xf32>
    %129 = tpu.matmul %128, %28, %cst_47 {dimension_numbers = #tpu.dot_dimension_numbers<[1], [0], [0], [1], [0, 0, 1, 1], [], []>} : vector<16x32xf32>, vector<32x32xf32>, vector<16x32xf32> -> vector<16x32xf32>
    %130 = vector.broadcast %20 : vector<1x32xf32> to vector<16x32xf32>
    %131 = arith.addf %129, %130 : vector<16x32xf32>
    %132 = arith.addf %131, %1 : vector<16x32xf32>
    %cst_48 = arith.constant dense<0.000000e+00> : vector<16xf32>
    %133 = vector.multi_reduction <add>, %132, %cst_48 [1] : vector<16x32xf32> to vector<16xf32>
    %134 = vector.shape_cast %133 : vector<16xf32> to vector<16x1xf32>
    %cst_49 = arith.constant 3.200000e+01 : f32
    %135 = vector.broadcast %cst_49 : f32 to vector<16x1xf32>
    %136 = arith.divf %134, %135 : vector<16x1xf32>
    %137 = vector.broadcast %136 : vector<16x1xf32> to vector<16x32xf32>
    %138 = arith.subf %132, %137 : vector<16x32xf32>
    %139 = arith.mulf %138, %138 : vector<16x32xf32>
    %cst_50 = arith.constant dense<0.000000e+00> : vector<16xf32>
    %140 = vector.multi_reduction <add>, %139, %cst_50 [1] : vector<16x32xf32> to vector<16xf32>
    %141 = vector.shape_cast %140 : vector<16xf32> to vector<16x1xf32>
    %cst_51 = arith.constant 3.200000e+01 : f32
    %142 = vector.broadcast %cst_51 : f32 to vector<16x1xf32>
    %143 = arith.divf %141, %142 : vector<16x1xf32>
    %cst_52 = arith.constant 9.99999974E-6 : f32
    %144 = vector.broadcast %cst_52 : f32 to vector<16x1xf32>
    %145 = arith.addf %143, %144 : vector<16x1xf32>
    %146 = math.rsqrt %145 : vector<16x1xf32>
    %147 = vector.broadcast %146 : vector<16x1xf32> to vector<16x32xf32>
    %148 = arith.mulf %138, %147 : vector<16x32xf32>
    %149 = vector.broadcast %21 : vector<1x32xf32> to vector<16x32xf32>
    %150 = arith.mulf %148, %149 : vector<16x32xf32>
    %151 = vector.broadcast %22 : vector<1x32xf32> to vector<16x32xf32>
    %152 = arith.addf %150, %151 : vector<16x32xf32>
    %cst_53 = arith.constant dense<0.000000e+00> : vector<16x128xf32>
    %153 = tpu.matmul %152, %29, %cst_53 {dimension_numbers = #tpu.dot_dimension_numbers<[1], [0], [0], [1], [0, 0, 1, 1], [], []>} : vector<16x32xf32>, vector<32x128xf32>, vector<16x128xf32> -> vector<16x128xf32>
    %154 = vector.broadcast %24 : vector<1x128xf32> to vector<16x128xf32>
    %155 = arith.addf %153, %154 : vector<16x128xf32>
    %cst_54 = arith.constant 5.000000e-01 : f32
    %156 = vector.broadcast %cst_54 : f32 to vector<16x128xf32>
    %157 = arith.mulf %156, %155 : vector<16x128xf32>
    %cst_55 = arith.constant 4.471500e-02 : f32
    %158 = vector.broadcast %cst_55 : f32 to vector<16x128xf32>
    %159 = arith.mulf %158, %155 : vector<16x128xf32>
    %160 = arith.mulf %159, %155 : vector<16x128xf32>
    %161 = arith.mulf %160, %155 : vector<16x128xf32>
    %162 = arith.addf %155, %161 : vector<16x128xf32>
    %cst_56 = arith.constant 0.797884583 : f32
    %163 = vector.broadcast %cst_56 : f32 to vector<16x128xf32>
    %164 = arith.mulf %163, %162 : vector<16x128xf32>
    %165 = math.tanh %164 : vector<16x128xf32>
    %cst_57 = arith.constant 1.000000e+00 : f32
    %166 = vector.broadcast %cst_57 : f32 to vector<16x128xf32>
    %167 = arith.addf %166, %165 : vector<16x128xf32>
    %168 = arith.mulf %157, %167 : vector<16x128xf32>
    %cst_58 = arith.constant dense<0.000000e+00> : vector<16x32xf32>
    %169 = tpu.matmul %168, %31, %cst_58 {dimension_numbers = #tpu.dot_dimension_numbers<[1], [0], [0], [1], [0, 0, 1, 1], [], []>} : vector<16x128xf32>, vector<128x32xf32>, vector<16x32xf32> -> vector<16x32xf32>
    %170 = vector.broadcast %23 : vector<1x32xf32> to vector<16x32xf32>
    %171 = arith.addf %169, %170 : vector<16x32xf32>
    %172 = arith.addf %171, %132 : vector<16x32xf32>
    %c1_59 = arith.constant 1 : index
    %c0_60 = arith.constant 0 : index
    %c0_61 = arith.constant 0 : index
    %173 = vector.load %arg2[%c1_59, %c0_60, %c0_61] : memref<4x7x128xf32, #tpu.memory_space<vmem>>, vector<1x7x128xf32>
    %174 = vector.shape_cast %173 : vector<1x7x128xf32> to vector<7x128xf32>
    %175 = vector.extract_strided_slice %174 {offsets = [0, 0], sizes = [1, 32], strides = [1, 1]} : vector<7x128xf32> to vector<1x32xf32>
    %176 = vector.extract_strided_slice %174 {offsets = [1, 0], sizes = [1, 32], strides = [1, 1]} : vector<7x128xf32> to vector<1x32xf32>
    %177 = vector.extract_strided_slice %174 {offsets = [2, 0], sizes = [1, 32], strides = [1, 1]} : vector<7x128xf32> to vector<1x32xf32>
    %178 = vector.extract_strided_slice %174 {offsets = [3, 0], sizes = [1, 32], strides = [1, 1]} : vector<7x128xf32> to vector<1x32xf32>
    %179 = vector.extract_strided_slice %174 {offsets = [4, 0], sizes = [1, 32], strides = [1, 1]} : vector<7x128xf32> to vector<1x32xf32>
    %180 = vector.extract_strided_slice %174 {offsets = [5, 0], sizes = [1, 32], strides = [1, 1]} : vector<7x128xf32> to vector<1x32xf32>
    %181 = vector.extract_strided_slice %174 {offsets = [6, 0], sizes = [1, 128], strides = [1, 1]} : vector<7x128xf32> to vector<1x128xf32>
    %c1_62 = arith.constant 1 : index
    %c0_63 = arith.constant 0 : index
    %c0_64 = arith.constant 0 : index
    %182 = vector.load %arg3[%c1_62, %c0_63, %c0_64] : memref<4x32x256xf32, #tpu.memory_space<vmem>>, vector<1x32x256xf32>
    %183 = vector.shape_cast %182 : vector<1x32x256xf32> to vector<32x256xf32>
    %184 = vector.extract_strided_slice %183 {offsets = [0, 0], sizes = [32, 96], strides = [1, 1]} : vector<32x256xf32> to vector<32x96xf32>
    %185 = vector.extract_strided_slice %183 {offsets = [0, 96], sizes = [32, 32], strides = [1, 1]} : vector<32x256xf32> to vector<32x32xf32>
    %186 = vector.extract_strided_slice %183 {offsets = [0, 128], sizes = [32, 128], strides = [1, 1]} : vector<32x256xf32> to vector<32x128xf32>
    %c1_65 = arith.constant 1 : index
    %c0_66 = arith.constant 0 : index
    %c0_67 = arith.constant 0 : index
    %187 = vector.load %arg4[%c1_65, %c0_66, %c0_67] : memref<4x128x32xf32, #tpu.memory_space<vmem>>, vector<1x128x32xf32>
    %188 = vector.shape_cast %187 : vector<1x128x32xf32> to vector<128x32xf32>
    %cst_68 = arith.constant dense<0.000000e+00> : vector<16xf32>
    %189 = vector.multi_reduction <add>, %172, %cst_68 [1] : vector<16x32xf32> to vector<16xf32>
    %190 = vector.shape_cast %189 : vector<16xf32> to vector<16x1xf32>
    %cst_69 = arith.constant 3.200000e+01 : f32
    %191 = vector.broadcast %cst_69 : f32 to vector<16x1xf32>
    %192 = arith.divf %190, %191 : vector<16x1xf32>
    %193 = vector.broadcast %192 : vector<16x1xf32> to vector<16x32xf32>
    %194 = arith.subf %172, %193 : vector<16x32xf32>
    %195 = arith.mulf %194, %194 : vector<16x32xf32>
    %cst_70 = arith.constant dense<0.000000e+00> : vector<16xf32>
    %196 = vector.multi_reduction <add>, %195, %cst_70 [1] : vector<16x32xf32> to vector<16xf32>
    %197 = vector.shape_cast %196 : vector<16xf32> to vector<16x1xf32>
    %cst_71 = arith.constant 3.200000e+01 : f32
    %198 = vector.broadcast %cst_71 : f32 to vector<16x1xf32>
    %199 = arith.divf %197, %198 : vector<16x1xf32>
    %cst_72 = arith.constant 9.99999974E-6 : f32
    %200 = vector.broadcast %cst_72 : f32 to vector<16x1xf32>
    %201 = arith.addf %199, %200 : vector<16x1xf32>
    %202 = math.rsqrt %201 : vector<16x1xf32>
    %203 = vector.broadcast %202 : vector<16x1xf32> to vector<16x32xf32>
    %204 = arith.mulf %194, %203 : vector<16x32xf32>
    %205 = vector.broadcast %175 : vector<1x32xf32> to vector<16x32xf32>
    %206 = arith.mulf %204, %205 : vector<16x32xf32>
    %207 = vector.broadcast %176 : vector<1x32xf32> to vector<16x32xf32>
    %208 = arith.addf %206, %207 : vector<16x32xf32>
    %cst_73 = arith.constant dense<0.000000e+00> : vector<16x96xf32>
    %209 = tpu.matmul %208, %184, %cst_73 {dimension_numbers = #tpu.dot_dimension_numbers<[1], [0], [0], [1], [0, 0, 1, 1], [], []>} : vector<16x32xf32>, vector<32x96xf32>, vector<16x96xf32> -> vector<16x96xf32>
    %210 = vector.extract_strided_slice %209 {offsets = [0, 32], sizes = [16, 32], strides = [1, 1]} : vector<16x96xf32> to vector<16x32xf32>
    %211 = vector.extract_strided_slice %209 {offsets = [0, 64], sizes = [16, 32], strides = [1, 1]} : vector<16x96xf32> to vector<16x32xf32>
    %212 = vector.extract_strided_slice %209 {offsets = [0, 0], sizes = [16, 32], strides = [1, 1]} : vector<16x96xf32> to vector<16x32xf32>
    %213 = vector.extract_strided_slice %212 {offsets = [0, 0], sizes = [16, 8], strides = [1, 1]} : vector<16x32xf32> to vector<16x8xf32>
    %214 = vector.extract_strided_slice %210 {offsets = [0, 0], sizes = [16, 8], strides = [1, 1]} : vector<16x32xf32> to vector<16x8xf32>
    %215 = vector.extract_strided_slice %211 {offsets = [0, 0], sizes = [16, 8], strides = [1, 1]} : vector<16x32xf32> to vector<16x8xf32>
    %cst_74 = arith.constant dense<0.000000e+00> : vector<16x16xf32>
    %216 = tpu.matmul %213, %214, %cst_74 {dimension_numbers = #tpu.dot_dimension_numbers<[1], [1], [0], [0], [0, 0, 1, 0], [], []>} : vector<16x8xf32>, vector<16x8xf32>, vector<16x16xf32> -> vector<16x16xf32>
    %cst_75 = arith.constant 0.353553385 : f32
    %217 = vector.broadcast %cst_75 : f32 to vector<16x16xf32>
    %218 = arith.mulf %216, %217 : vector<16x16xf32>
    %219 = arith.addf %218, %3 : vector<16x16xf32>
    %cst_76 = arith.constant dense<0xFF800000> : vector<16xf32>
    %220 = vector.multi_reduction <maximumf>, %219, %cst_76 [1] : vector<16x16xf32> to vector<16xf32>
    %221 = vector.shape_cast %220 : vector<16xf32> to vector<16x1xf32>
    %222 = vector.broadcast %221 : vector<16x1xf32> to vector<16x16xf32>
    %223 = arith.subf %219, %222 : vector<16x16xf32>
    %224 = math.exp %223 : vector<16x16xf32>
    %cst_77 = arith.constant dense<0.000000e+00> : vector<16xf32>
    %225 = vector.multi_reduction <add>, %224, %cst_77 [1] : vector<16x16xf32> to vector<16xf32>
    %226 = vector.shape_cast %225 : vector<16xf32> to vector<16x1xf32>
    %227 = tpu.reciprocal %226 {approx = true} : vector<16x1xf32> -> vector<16x1xf32>
    %228 = vector.broadcast %227 : vector<16x1xf32> to vector<16x16xf32>
    %229 = arith.mulf %224, %228 : vector<16x16xf32>
    %cst_78 = arith.constant dense<0.000000e+00> : vector<16x8xf32>
    %230 = tpu.matmul %229, %215, %cst_78 {dimension_numbers = #tpu.dot_dimension_numbers<[1], [0], [0], [1], [0, 0, 1, 1], [], []>} : vector<16x16xf32>, vector<16x8xf32>, vector<16x8xf32> -> vector<16x8xf32>
    %231 = vector.extract_strided_slice %212 {offsets = [0, 8], sizes = [16, 8], strides = [1, 1]} : vector<16x32xf32> to vector<16x8xf32>
    %232 = vector.extract_strided_slice %210 {offsets = [0, 8], sizes = [16, 8], strides = [1, 1]} : vector<16x32xf32> to vector<16x8xf32>
    %233 = vector.extract_strided_slice %211 {offsets = [0, 8], sizes = [16, 8], strides = [1, 1]} : vector<16x32xf32> to vector<16x8xf32>
    %cst_79 = arith.constant dense<0.000000e+00> : vector<16x16xf32>
    %234 = tpu.matmul %231, %232, %cst_79 {dimension_numbers = #tpu.dot_dimension_numbers<[1], [1], [0], [0], [0, 0, 1, 0], [], []>} : vector<16x8xf32>, vector<16x8xf32>, vector<16x16xf32> -> vector<16x16xf32>
    %cst_80 = arith.constant 0.353553385 : f32
    %235 = vector.broadcast %cst_80 : f32 to vector<16x16xf32>
    %236 = arith.mulf %234, %235 : vector<16x16xf32>
    %237 = arith.addf %236, %3 : vector<16x16xf32>
    %cst_81 = arith.constant dense<0xFF800000> : vector<16xf32>
    %238 = vector.multi_reduction <maximumf>, %237, %cst_81 [1] : vector<16x16xf32> to vector<16xf32>
    %239 = vector.shape_cast %238 : vector<16xf32> to vector<16x1xf32>
    %240 = vector.broadcast %239 : vector<16x1xf32> to vector<16x16xf32>
    %241 = arith.subf %237, %240 : vector<16x16xf32>
    %242 = math.exp %241 : vector<16x16xf32>
    %cst_82 = arith.constant dense<0.000000e+00> : vector<16xf32>
    %243 = vector.multi_reduction <add>, %242, %cst_82 [1] : vector<16x16xf32> to vector<16xf32>
    %244 = vector.shape_cast %243 : vector<16xf32> to vector<16x1xf32>
    %245 = tpu.reciprocal %244 {approx = true} : vector<16x1xf32> -> vector<16x1xf32>
    %246 = vector.broadcast %245 : vector<16x1xf32> to vector<16x16xf32>
    %247 = arith.mulf %242, %246 : vector<16x16xf32>
    %cst_83 = arith.constant dense<0.000000e+00> : vector<16x8xf32>
    %248 = tpu.matmul %247, %233, %cst_83 {dimension_numbers = #tpu.dot_dimension_numbers<[1], [0], [0], [1], [0, 0, 1, 1], [], []>} : vector<16x16xf32>, vector<16x8xf32>, vector<16x8xf32> -> vector<16x8xf32>
    %249 = vector.extract_strided_slice %212 {offsets = [0, 16], sizes = [16, 8], strides = [1, 1]} : vector<16x32xf32> to vector<16x8xf32>
    %250 = vector.extract_strided_slice %210 {offsets = [0, 16], sizes = [16, 8], strides = [1, 1]} : vector<16x32xf32> to vector<16x8xf32>
    %251 = vector.extract_strided_slice %211 {offsets = [0, 16], sizes = [16, 8], strides = [1, 1]} : vector<16x32xf32> to vector<16x8xf32>
    %cst_84 = arith.constant dense<0.000000e+00> : vector<16x16xf32>
    %252 = tpu.matmul %249, %250, %cst_84 {dimension_numbers = #tpu.dot_dimension_numbers<[1], [1], [0], [0], [0, 0, 1, 0], [], []>} : vector<16x8xf32>, vector<16x8xf32>, vector<16x16xf32> -> vector<16x16xf32>
    %cst_85 = arith.constant 0.353553385 : f32
    %253 = vector.broadcast %cst_85 : f32 to vector<16x16xf32>
    %254 = arith.mulf %252, %253 : vector<16x16xf32>
    %255 = arith.addf %254, %3 : vector<16x16xf32>
    %cst_86 = arith.constant dense<0xFF800000> : vector<16xf32>
    %256 = vector.multi_reduction <maximumf>, %255, %cst_86 [1] : vector<16x16xf32> to vector<16xf32>
    %257 = vector.shape_cast %256 : vector<16xf32> to vector<16x1xf32>
    %258 = vector.broadcast %257 : vector<16x1xf32> to vector<16x16xf32>
    %259 = arith.subf %255, %258 : vector<16x16xf32>
    %260 = math.exp %259 : vector<16x16xf32>
    %cst_87 = arith.constant dense<0.000000e+00> : vector<16xf32>
    %261 = vector.multi_reduction <add>, %260, %cst_87 [1] : vector<16x16xf32> to vector<16xf32>
    %262 = vector.shape_cast %261 : vector<16xf32> to vector<16x1xf32>
    %263 = tpu.reciprocal %262 {approx = true} : vector<16x1xf32> -> vector<16x1xf32>
    %264 = vector.broadcast %263 : vector<16x1xf32> to vector<16x16xf32>
    %265 = arith.mulf %260, %264 : vector<16x16xf32>
    %cst_88 = arith.constant dense<0.000000e+00> : vector<16x8xf32>
    %266 = tpu.matmul %265, %251, %cst_88 {dimension_numbers = #tpu.dot_dimension_numbers<[1], [0], [0], [1], [0, 0, 1, 1], [], []>} : vector<16x16xf32>, vector<16x8xf32>, vector<16x8xf32> -> vector<16x8xf32>
    %267 = vector.extract_strided_slice %212 {offsets = [0, 24], sizes = [16, 8], strides = [1, 1]} : vector<16x32xf32> to vector<16x8xf32>
    %268 = vector.extract_strided_slice %210 {offsets = [0, 24], sizes = [16, 8], strides = [1, 1]} : vector<16x32xf32> to vector<16x8xf32>
    %269 = vector.extract_strided_slice %211 {offsets = [0, 24], sizes = [16, 8], strides = [1, 1]} : vector<16x32xf32> to vector<16x8xf32>
    %cst_89 = arith.constant dense<0.000000e+00> : vector<16x16xf32>
    %270 = tpu.matmul %267, %268, %cst_89 {dimension_numbers = #tpu.dot_dimension_numbers<[1], [1], [0], [0], [0, 0, 1, 0], [], []>} : vector<16x8xf32>, vector<16x8xf32>, vector<16x16xf32> -> vector<16x16xf32>
    %cst_90 = arith.constant 0.353553385 : f32
    %271 = vector.broadcast %cst_90 : f32 to vector<16x16xf32>
    %272 = arith.mulf %270, %271 : vector<16x16xf32>
    %273 = arith.addf %272, %3 : vector<16x16xf32>
    %cst_91 = arith.constant dense<0xFF800000> : vector<16xf32>
    %274 = vector.multi_reduction <maximumf>, %273, %cst_91 [1] : vector<16x16xf32> to vector<16xf32>
    %275 = vector.shape_cast %274 : vector<16xf32> to vector<16x1xf32>
    %276 = vector.broadcast %275 : vector<16x1xf32> to vector<16x16xf32>
    %277 = arith.subf %273, %276 : vector<16x16xf32>
    %278 = math.exp %277 : vector<16x16xf32>
    %cst_92 = arith.constant dense<0.000000e+00> : vector<16xf32>
    %279 = vector.multi_reduction <add>, %278, %cst_92 [1] : vector<16x16xf32> to vector<16xf32>
    %280 = vector.shape_cast %279 : vector<16xf32> to vector<16x1xf32>
    %281 = tpu.reciprocal %280 {approx = true} : vector<16x1xf32> -> vector<16x1xf32>
    %282 = vector.broadcast %281 : vector<16x1xf32> to vector<16x16xf32>
    %283 = arith.mulf %278, %282 : vector<16x16xf32>
    %cst_93 = arith.constant dense<0.000000e+00> : vector<16x8xf32>
    %284 = tpu.matmul %283, %269, %cst_93 {dimension_numbers = #tpu.dot_dimension_numbers<[1], [0], [0], [1], [0, 0, 1, 1], [], []>} : vector<16x16xf32>, vector<16x8xf32>, vector<16x8xf32> -> vector<16x8xf32>
    %285 = tpu.concatenate %230, %248, %266, %284 in 1 : vector<16x8xf32>, vector<16x8xf32>, vector<16x8xf32>, vector<16x8xf32> -> vector<16x32xf32>
    %cst_94 = arith.constant dense<0.000000e+00> : vector<16x32xf32>
    %286 = tpu.matmul %285, %185, %cst_94 {dimension_numbers = #tpu.dot_dimension_numbers<[1], [0], [0], [1], [0, 0, 1, 1], [], []>} : vector<16x32xf32>, vector<32x32xf32>, vector<16x32xf32> -> vector<16x32xf32>
    %287 = vector.broadcast %177 : vector<1x32xf32> to vector<16x32xf32>
    %288 = arith.addf %286, %287 : vector<16x32xf32>
    %289 = arith.addf %288, %172 : vector<16x32xf32>
    %cst_95 = arith.constant dense<0.000000e+00> : vector<16xf32>
    %290 = vector.multi_reduction <add>, %289, %cst_95 [1] : vector<16x32xf32> to vector<16xf32>
    %291 = vector.shape_cast %290 : vector<16xf32> to vector<16x1xf32>
    %cst_96 = arith.constant 3.200000e+01 : f32
    %292 = vector.broadcast %cst_96 : f32 to vector<16x1xf32>
    %293 = arith.divf %291, %292 : vector<16x1xf32>
    %294 = vector.broadcast %293 : vector<16x1xf32> to vector<16x32xf32>
    %295 = arith.subf %289, %294 : vector<16x32xf32>
    %296 = arith.mulf %295, %295 : vector<16x32xf32>
    %cst_97 = arith.constant dense<0.000000e+00> : vector<16xf32>
    %297 = vector.multi_reduction <add>, %296, %cst_97 [1] : vector<16x32xf32> to vector<16xf32>
    %298 = vector.shape_cast %297 : vector<16xf32> to vector<16x1xf32>
    %cst_98 = arith.constant 3.200000e+01 : f32
    %299 = vector.broadcast %cst_98 : f32 to vector<16x1xf32>
    %300 = arith.divf %298, %299 : vector<16x1xf32>
    %cst_99 = arith.constant 9.99999974E-6 : f32
    %301 = vector.broadcast %cst_99 : f32 to vector<16x1xf32>
    %302 = arith.addf %300, %301 : vector<16x1xf32>
    %303 = math.rsqrt %302 : vector<16x1xf32>
    %304 = vector.broadcast %303 : vector<16x1xf32> to vector<16x32xf32>
    %305 = arith.mulf %295, %304 : vector<16x32xf32>
    %306 = vector.broadcast %178 : vector<1x32xf32> to vector<16x32xf32>
    %307 = arith.mulf %305, %306 : vector<16x32xf32>
    %308 = vector.broadcast %179 : vector<1x32xf32> to vector<16x32xf32>
    %309 = arith.addf %307, %308 : vector<16x32xf32>
    %cst_100 = arith.constant dense<0.000000e+00> : vector<16x128xf32>
    %310 = tpu.matmul %309, %186, %cst_100 {dimension_numbers = #tpu.dot_dimension_numbers<[1], [0], [0], [1], [0, 0, 1, 1], [], []>} : vector<16x32xf32>, vector<32x128xf32>, vector<16x128xf32> -> vector<16x128xf32>
    %311 = vector.broadcast %181 : vector<1x128xf32> to vector<16x128xf32>
    %312 = arith.addf %310, %311 : vector<16x128xf32>
    %cst_101 = arith.constant 5.000000e-01 : f32
    %313 = vector.broadcast %cst_101 : f32 to vector<16x128xf32>
    %314 = arith.mulf %313, %312 : vector<16x128xf32>
    %cst_102 = arith.constant 4.471500e-02 : f32
    %315 = vector.broadcast %cst_102 : f32 to vector<16x128xf32>
    %316 = arith.mulf %315, %312 : vector<16x128xf32>
    %317 = arith.mulf %316, %312 : vector<16x128xf32>
    %318 = arith.mulf %317, %312 : vector<16x128xf32>
    %319 = arith.addf %312, %318 : vector<16x128xf32>
    %cst_103 = arith.constant 0.797884583 : f32
    %320 = vector.broadcast %cst_103 : f32 to vector<16x128xf32>
    %321 = arith.mulf %320, %319 : vector<16x128xf32>
    %322 = math.tanh %321 : vector<16x128xf32>
    %cst_104 = arith.constant 1.000000e+00 : f32
    %323 = vector.broadcast %cst_104 : f32 to vector<16x128xf32>
    %324 = arith.addf %323, %322 : vector<16x128xf32>
    %325 = arith.mulf %314, %324 : vector<16x128xf32>
    %cst_105 = arith.constant dense<0.000000e+00> : vector<16x32xf32>
    %326 = tpu.matmul %325, %188, %cst_105 {dimension_numbers = #tpu.dot_dimension_numbers<[1], [0], [0], [1], [0, 0, 1, 1], [], []>} : vector<16x128xf32>, vector<128x32xf32>, vector<16x32xf32> -> vector<16x32xf32>
    %327 = vector.broadcast %180 : vector<1x32xf32> to vector<16x32xf32>
    %328 = arith.addf %326, %327 : vector<16x32xf32>
    %329 = arith.addf %328, %289 : vector<16x32xf32>
    %c2_106 = arith.constant 2 : index
    %c0_107 = arith.constant 0 : index
    %c0_108 = arith.constant 0 : index
    %330 = vector.load %arg2[%c2_106, %c0_107, %c0_108] : memref<4x7x128xf32, #tpu.memory_space<vmem>>, vector<1x7x128xf32>
    %331 = vector.shape_cast %330 : vector<1x7x128xf32> to vector<7x128xf32>
    %332 = vector.extract_strided_slice %331 {offsets = [0, 0], sizes = [1, 32], strides = [1, 1]} : vector<7x128xf32> to vector<1x32xf32>
    %333 = vector.extract_strided_slice %331 {offsets = [1, 0], sizes = [1, 32], strides = [1, 1]} : vector<7x128xf32> to vector<1x32xf32>
    %334 = vector.extract_strided_slice %331 {offsets = [2, 0], sizes = [1, 32], strides = [1, 1]} : vector<7x128xf32> to vector<1x32xf32>
    %335 = vector.extract_strided_slice %331 {offsets = [3, 0], sizes = [1, 32], strides = [1, 1]} : vector<7x128xf32> to vector<1x32xf32>
    %336 = vector.extract_strided_slice %331 {offsets = [4, 0], sizes = [1, 32], strides = [1, 1]} : vector<7x128xf32> to vector<1x32xf32>
    %337 = vector.extract_strided_slice %331 {offsets = [5, 0], sizes = [1, 32], strides = [1, 1]} : vector<7x128xf32> to vector<1x32xf32>
    %338 = vector.extract_strided_slice %331 {offsets = [6, 0], sizes = [1, 128], strides = [1, 1]} : vector<7x128xf32> to vector<1x128xf32>
    %c2_109 = arith.constant 2 : index
    %c0_110 = arith.constant 0 : index
    %c0_111 = arith.constant 0 : index
    %339 = vector.load %arg3[%c2_109, %c0_110, %c0_111] : memref<4x32x256xf32, #tpu.memory_space<vmem>>, vector<1x32x256xf32>
    %340 = vector.shape_cast %339 : vector<1x32x256xf32> to vector<32x256xf32>
    %341 = vector.extract_strided_slice %340 {offsets = [0, 0], sizes = [32, 96], strides = [1, 1]} : vector<32x256xf32> to vector<32x96xf32>
    %342 = vector.extract_strided_slice %340 {offsets = [0, 96], sizes = [32, 32], strides = [1, 1]} : vector<32x256xf32> to vector<32x32xf32>
    %343 = vector.extract_strided_slice %340 {offsets = [0, 128], sizes = [32, 128], strides = [1, 1]} : vector<32x256xf32> to vector<32x128xf32>
    %c2_112 = arith.constant 2 : index
    %c0_113 = arith.constant 0 : index
    %c0_114 = arith.constant 0 : index
    %344 = vector.load %arg4[%c2_112, %c0_113, %c0_114] : memref<4x128x32xf32, #tpu.memory_space<vmem>>, vector<1x128x32xf32>
    %345 = vector.shape_cast %344 : vector<1x128x32xf32> to vector<128x32xf32>
    %cst_115 = arith.constant dense<0.000000e+00> : vector<16xf32>
    %346 = vector.multi_reduction <add>, %329, %cst_115 [1] : vector<16x32xf32> to vector<16xf32>
    %347 = vector.shape_cast %346 : vector<16xf32> to vector<16x1xf32>
    %cst_116 = arith.constant 3.200000e+01 : f32
    %348 = vector.broadcast %cst_116 : f32 to vector<16x1xf32>
    %349 = arith.divf %347, %348 : vector<16x1xf32>
    %350 = vector.broadcast %349 : vector<16x1xf32> to vector<16x32xf32>
    %351 = arith.subf %329, %350 : vector<16x32xf32>
    %352 = arith.mulf %351, %351 : vector<16x32xf32>
    %cst_117 = arith.constant dense<0.000000e+00> : vector<16xf32>
    %353 = vector.multi_reduction <add>, %352, %cst_117 [1] : vector<16x32xf32> to vector<16xf32>
    %354 = vector.shape_cast %353 : vector<16xf32> to vector<16x1xf32>
    %cst_118 = arith.constant 3.200000e+01 : f32
    %355 = vector.broadcast %cst_118 : f32 to vector<16x1xf32>
    %356 = arith.divf %354, %355 : vector<16x1xf32>
    %cst_119 = arith.constant 9.99999974E-6 : f32
    %357 = vector.broadcast %cst_119 : f32 to vector<16x1xf32>
    %358 = arith.addf %356, %357 : vector<16x1xf32>
    %359 = math.rsqrt %358 : vector<16x1xf32>
    %360 = vector.broadcast %359 : vector<16x1xf32> to vector<16x32xf32>
    %361 = arith.mulf %351, %360 : vector<16x32xf32>
    %362 = vector.broadcast %332 : vector<1x32xf32> to vector<16x32xf32>
    %363 = arith.mulf %361, %362 : vector<16x32xf32>
    %364 = vector.broadcast %333 : vector<1x32xf32> to vector<16x32xf32>
    %365 = arith.addf %363, %364 : vector<16x32xf32>
    %cst_120 = arith.constant dense<0.000000e+00> : vector<16x96xf32>
    %366 = tpu.matmul %365, %341, %cst_120 {dimension_numbers = #tpu.dot_dimension_numbers<[1], [0], [0], [1], [0, 0, 1, 1], [], []>} : vector<16x32xf32>, vector<32x96xf32>, vector<16x96xf32> -> vector<16x96xf32>
    %367 = vector.extract_strided_slice %366 {offsets = [0, 32], sizes = [16, 32], strides = [1, 1]} : vector<16x96xf32> to vector<16x32xf32>
    %368 = vector.extract_strided_slice %366 {offsets = [0, 64], sizes = [16, 32], strides = [1, 1]} : vector<16x96xf32> to vector<16x32xf32>
    %369 = vector.extract_strided_slice %366 {offsets = [0, 0], sizes = [16, 32], strides = [1, 1]} : vector<16x96xf32> to vector<16x32xf32>
    %cst_121 = arith.constant dense<0.000000e+00> : vector<8x32xf32>
    %370 = tpu.matmul %12, %369, %cst_121 {dimension_numbers = #tpu.dot_dimension_numbers<[1], [0], [0], [1], [0, 0, 1, 1], [], []>} : vector<8x16xf32>, vector<16x32xf32>, vector<8x32xf32> -> vector<8x32xf32>
    %371 = vector.extract_strided_slice %370 {offsets = [0, 0], sizes = [8, 8], strides = [1, 1]} : vector<8x32xf32> to vector<8x8xf32>
    %372 = vector.extract_strided_slice %367 {offsets = [0, 0], sizes = [16, 8], strides = [1, 1]} : vector<16x32xf32> to vector<16x8xf32>
    %373 = vector.extract_strided_slice %368 {offsets = [0, 0], sizes = [16, 8], strides = [1, 1]} : vector<16x32xf32> to vector<16x8xf32>
    %cst_122 = arith.constant dense<0.000000e+00> : vector<8x16xf32>
    %374 = tpu.matmul %371, %372, %cst_122 {dimension_numbers = #tpu.dot_dimension_numbers<[1], [1], [0], [0], [0, 0, 1, 0], [], []>} : vector<8x8xf32>, vector<16x8xf32>, vector<8x16xf32> -> vector<8x16xf32>
    %cst_123 = arith.constant 0.353553385 : f32
    %375 = vector.broadcast %cst_123 : f32 to vector<8x16xf32>
    %376 = arith.mulf %374, %375 : vector<8x16xf32>
    %377 = arith.addf %376, %6 : vector<8x16xf32>
    %cst_124 = arith.constant dense<0xFF800000> : vector<8xf32>
    %378 = vector.multi_reduction <maximumf>, %377, %cst_124 [1] : vector<8x16xf32> to vector<8xf32>
    %379 = vector.shape_cast %378 : vector<8xf32> to vector<8x1xf32>
    %380 = vector.broadcast %379 : vector<8x1xf32> to vector<8x16xf32>
    %381 = arith.subf %377, %380 : vector<8x16xf32>
    %382 = math.exp %381 : vector<8x16xf32>
    %cst_125 = arith.constant dense<0.000000e+00> : vector<8xf32>
    %383 = vector.multi_reduction <add>, %382, %cst_125 [1] : vector<8x16xf32> to vector<8xf32>
    %384 = vector.shape_cast %383 : vector<8xf32> to vector<8x1xf32>
    %385 = tpu.reciprocal %384 {approx = true} : vector<8x1xf32> -> vector<8x1xf32>
    %386 = vector.broadcast %385 : vector<8x1xf32> to vector<8x16xf32>
    %387 = arith.mulf %382, %386 : vector<8x16xf32>
    %cst_126 = arith.constant dense<0.000000e+00> : vector<8x8xf32>
    %388 = tpu.matmul %387, %373, %cst_126 {dimension_numbers = #tpu.dot_dimension_numbers<[1], [0], [0], [1], [0, 0, 1, 1], [], []>} : vector<8x16xf32>, vector<16x8xf32>, vector<8x8xf32> -> vector<8x8xf32>
    %389 = vector.extract_strided_slice %370 {offsets = [0, 8], sizes = [8, 8], strides = [1, 1]} : vector<8x32xf32> to vector<8x8xf32>
    %390 = vector.extract_strided_slice %367 {offsets = [0, 8], sizes = [16, 8], strides = [1, 1]} : vector<16x32xf32> to vector<16x8xf32>
    %391 = vector.extract_strided_slice %368 {offsets = [0, 8], sizes = [16, 8], strides = [1, 1]} : vector<16x32xf32> to vector<16x8xf32>
    %cst_127 = arith.constant dense<0.000000e+00> : vector<8x16xf32>
    %392 = tpu.matmul %389, %390, %cst_127 {dimension_numbers = #tpu.dot_dimension_numbers<[1], [1], [0], [0], [0, 0, 1, 0], [], []>} : vector<8x8xf32>, vector<16x8xf32>, vector<8x16xf32> -> vector<8x16xf32>
    %cst_128 = arith.constant 0.353553385 : f32
    %393 = vector.broadcast %cst_128 : f32 to vector<8x16xf32>
    %394 = arith.mulf %392, %393 : vector<8x16xf32>
    %395 = arith.addf %394, %6 : vector<8x16xf32>
    %cst_129 = arith.constant dense<0xFF800000> : vector<8xf32>
    %396 = vector.multi_reduction <maximumf>, %395, %cst_129 [1] : vector<8x16xf32> to vector<8xf32>
    %397 = vector.shape_cast %396 : vector<8xf32> to vector<8x1xf32>
    %398 = vector.broadcast %397 : vector<8x1xf32> to vector<8x16xf32>
    %399 = arith.subf %395, %398 : vector<8x16xf32>
    %400 = math.exp %399 : vector<8x16xf32>
    %cst_130 = arith.constant dense<0.000000e+00> : vector<8xf32>
    %401 = vector.multi_reduction <add>, %400, %cst_130 [1] : vector<8x16xf32> to vector<8xf32>
    %402 = vector.shape_cast %401 : vector<8xf32> to vector<8x1xf32>
    %403 = tpu.reciprocal %402 {approx = true} : vector<8x1xf32> -> vector<8x1xf32>
    %404 = vector.broadcast %403 : vector<8x1xf32> to vector<8x16xf32>
    %405 = arith.mulf %400, %404 : vector<8x16xf32>
    %cst_131 = arith.constant dense<0.000000e+00> : vector<8x8xf32>
    %406 = tpu.matmul %405, %391, %cst_131 {dimension_numbers = #tpu.dot_dimension_numbers<[1], [0], [0], [1], [0, 0, 1, 1], [], []>} : vector<8x16xf32>, vector<16x8xf32>, vector<8x8xf32> -> vector<8x8xf32>
    %407 = vector.extract_strided_slice %370 {offsets = [0, 16], sizes = [8, 8], strides = [1, 1]} : vector<8x32xf32> to vector<8x8xf32>
    %408 = vector.extract_strided_slice %367 {offsets = [0, 16], sizes = [16, 8], strides = [1, 1]} : vector<16x32xf32> to vector<16x8xf32>
    %409 = vector.extract_strided_slice %368 {offsets = [0, 16], sizes = [16, 8], strides = [1, 1]} : vector<16x32xf32> to vector<16x8xf32>
    %cst_132 = arith.constant dense<0.000000e+00> : vector<8x16xf32>
    %410 = tpu.matmul %407, %408, %cst_132 {dimension_numbers = #tpu.dot_dimension_numbers<[1], [1], [0], [0], [0, 0, 1, 0], [], []>} : vector<8x8xf32>, vector<16x8xf32>, vector<8x16xf32> -> vector<8x16xf32>
    %cst_133 = arith.constant 0.353553385 : f32
    %411 = vector.broadcast %cst_133 : f32 to vector<8x16xf32>
    %412 = arith.mulf %410, %411 : vector<8x16xf32>
    %413 = arith.addf %412, %6 : vector<8x16xf32>
    %cst_134 = arith.constant dense<0xFF800000> : vector<8xf32>
    %414 = vector.multi_reduction <maximumf>, %413, %cst_134 [1] : vector<8x16xf32> to vector<8xf32>
    %415 = vector.shape_cast %414 : vector<8xf32> to vector<8x1xf32>
    %416 = vector.broadcast %415 : vector<8x1xf32> to vector<8x16xf32>
    %417 = arith.subf %413, %416 : vector<8x16xf32>
    %418 = math.exp %417 : vector<8x16xf32>
    %cst_135 = arith.constant dense<0.000000e+00> : vector<8xf32>
    %419 = vector.multi_reduction <add>, %418, %cst_135 [1] : vector<8x16xf32> to vector<8xf32>
    %420 = vector.shape_cast %419 : vector<8xf32> to vector<8x1xf32>
    %421 = tpu.reciprocal %420 {approx = true} : vector<8x1xf32> -> vector<8x1xf32>
    %422 = vector.broadcast %421 : vector<8x1xf32> to vector<8x16xf32>
    %423 = arith.mulf %418, %422 : vector<8x16xf32>
    %cst_136 = arith.constant dense<0.000000e+00> : vector<8x8xf32>
    %424 = tpu.matmul %423, %409, %cst_136 {dimension_numbers = #tpu.dot_dimension_numbers<[1], [0], [0], [1], [0, 0, 1, 1], [], []>} : vector<8x16xf32>, vector<16x8xf32>, vector<8x8xf32> -> vector<8x8xf32>
    %425 = vector.extract_strided_slice %370 {offsets = [0, 24], sizes = [8, 8], strides = [1, 1]} : vector<8x32xf32> to vector<8x8xf32>
    %426 = vector.extract_strided_slice %367 {offsets = [0, 24], sizes = [16, 8], strides = [1, 1]} : vector<16x32xf32> to vector<16x8xf32>
    %427 = vector.extract_strided_slice %368 {offsets = [0, 24], sizes = [16, 8], strides = [1, 1]} : vector<16x32xf32> to vector<16x8xf32>
    %cst_137 = arith.constant dense<0.000000e+00> : vector<8x16xf32>
    %428 = tpu.matmul %425, %426, %cst_137 {dimension_numbers = #tpu.dot_dimension_numbers<[1], [1], [0], [0], [0, 0, 1, 0], [], []>} : vector<8x8xf32>, vector<16x8xf32>, vector<8x16xf32> -> vector<8x16xf32>
    %cst_138 = arith.constant 0.353553385 : f32
    %429 = vector.broadcast %cst_138 : f32 to vector<8x16xf32>
    %430 = arith.mulf %428, %429 : vector<8x16xf32>
    %431 = arith.addf %430, %6 : vector<8x16xf32>
    %cst_139 = arith.constant dense<0xFF800000> : vector<8xf32>
    %432 = vector.multi_reduction <maximumf>, %431, %cst_139 [1] : vector<8x16xf32> to vector<8xf32>
    %433 = vector.shape_cast %432 : vector<8xf32> to vector<8x1xf32>
    %434 = vector.broadcast %433 : vector<8x1xf32> to vector<8x16xf32>
    %435 = arith.subf %431, %434 : vector<8x16xf32>
    %436 = math.exp %435 : vector<8x16xf32>
    %cst_140 = arith.constant dense<0.000000e+00> : vector<8xf32>
    %437 = vector.multi_reduction <add>, %436, %cst_140 [1] : vector<8x16xf32> to vector<8xf32>
    %438 = vector.shape_cast %437 : vector<8xf32> to vector<8x1xf32>
    %439 = tpu.reciprocal %438 {approx = true} : vector<8x1xf32> -> vector<8x1xf32>
    %440 = vector.broadcast %439 : vector<8x1xf32> to vector<8x16xf32>
    %441 = arith.mulf %436, %440 : vector<8x16xf32>
    %cst_141 = arith.constant dense<0.000000e+00> : vector<8x8xf32>
    %442 = tpu.matmul %441, %427, %cst_141 {dimension_numbers = #tpu.dot_dimension_numbers<[1], [0], [0], [1], [0, 0, 1, 1], [], []>} : vector<8x16xf32>, vector<16x8xf32>, vector<8x8xf32> -> vector<8x8xf32>
    %443 = tpu.concatenate %388, %406, %424, %442 in 1 : vector<8x8xf32>, vector<8x8xf32>, vector<8x8xf32>, vector<8x8xf32> -> vector<8x32xf32>
    %cst_142 = arith.constant dense<0.000000e+00> : vector<8x32xf32>
    %444 = tpu.matmul %443, %342, %cst_142 {dimension_numbers = #tpu.dot_dimension_numbers<[1], [0], [0], [1], [0, 0, 1, 1], [], []>} : vector<8x32xf32>, vector<32x32xf32>, vector<8x32xf32> -> vector<8x32xf32>
    %445 = vector.broadcast %334 : vector<1x32xf32> to vector<8x32xf32>
    %446 = arith.addf %444, %445 : vector<8x32xf32>
    %cst_143 = arith.constant dense<0.000000e+00> : vector<8xf32>
    %447 = vector.multi_reduction <add>, %446, %cst_143 [1] : vector<8x32xf32> to vector<8xf32>
    %448 = vector.shape_cast %447 : vector<8xf32> to vector<8x1xf32>
    %cst_144 = arith.constant 3.200000e+01 : f32
    %449 = vector.broadcast %cst_144 : f32 to vector<8x1xf32>
    %450 = arith.divf %448, %449 : vector<8x1xf32>
    %451 = vector.broadcast %450 : vector<8x1xf32> to vector<8x32xf32>
    %452 = arith.subf %446, %451 : vector<8x32xf32>
    %453 = arith.mulf %452, %452 : vector<8x32xf32>
    %cst_145 = arith.constant dense<0.000000e+00> : vector<8xf32>
    %454 = vector.multi_reduction <add>, %453, %cst_145 [1] : vector<8x32xf32> to vector<8xf32>
    %455 = vector.shape_cast %454 : vector<8xf32> to vector<8x1xf32>
    %cst_146 = arith.constant 3.200000e+01 : f32
    %456 = vector.broadcast %cst_146 : f32 to vector<8x1xf32>
    %457 = arith.divf %455, %456 : vector<8x1xf32>
    %cst_147 = arith.constant 9.99999974E-6 : f32
    %458 = vector.broadcast %cst_147 : f32 to vector<8x1xf32>
    %459 = arith.addf %457, %458 : vector<8x1xf32>
    %460 = math.rsqrt %459 : vector<8x1xf32>
    %461 = vector.broadcast %460 : vector<8x1xf32> to vector<8x32xf32>
    %462 = arith.mulf %452, %461 : vector<8x32xf32>
    %463 = vector.broadcast %335 : vector<1x32xf32> to vector<8x32xf32>
    %464 = arith.mulf %462, %463 : vector<8x32xf32>
    %465 = vector.broadcast %336 : vector<1x32xf32> to vector<8x32xf32>
    %466 = arith.addf %464, %465 : vector<8x32xf32>
    %cst_148 = arith.constant dense<0.000000e+00> : vector<8x128xf32>
    %467 = tpu.matmul %466, %343, %cst_148 {dimension_numbers = #tpu.dot_dimension_numbers<[1], [0], [0], [1], [0, 0, 1, 1], [], []>} : vector<8x32xf32>, vector<32x128xf32>, vector<8x128xf32> -> vector<8x128xf32>
    %468 = vector.broadcast %338 : vector<1x128xf32> to vector<8x128xf32>
    %469 = arith.addf %467, %468 : vector<8x128xf32>
    %cst_149 = arith.constant 5.000000e-01 : f32
    %470 = vector.broadcast %cst_149 : f32 to vector<8x128xf32>
    %471 = arith.mulf %470, %469 : vector<8x128xf32>
    %cst_150 = arith.constant 4.471500e-02 : f32
    %472 = vector.broadcast %cst_150 : f32 to vector<8x128xf32>
    %473 = arith.mulf %472, %469 : vector<8x128xf32>
    %474 = arith.mulf %473, %469 : vector<8x128xf32>
    %475 = arith.mulf %474, %469 : vector<8x128xf32>
    %476 = arith.addf %469, %475 : vector<8x128xf32>
    %cst_151 = arith.constant 0.797884583 : f32
    %477 = vector.broadcast %cst_151 : f32 to vector<8x128xf32>
    %478 = arith.mulf %477, %476 : vector<8x128xf32>
    %479 = math.tanh %478 : vector<8x128xf32>
    %cst_152 = arith.constant 1.000000e+00 : f32
    %480 = vector.broadcast %cst_152 : f32 to vector<8x128xf32>
    %481 = arith.addf %480, %479 : vector<8x128xf32>
    %482 = arith.mulf %471, %481 : vector<8x128xf32>
    %cst_153 = arith.constant dense<0.000000e+00> : vector<8x32xf32>
    %483 = tpu.matmul %482, %345, %cst_153 {dimension_numbers = #tpu.dot_dimension_numbers<[1], [0], [0], [1], [0, 0, 1, 1], [], []>} : vector<8x128xf32>, vector<128x32xf32>, vector<8x32xf32> -> vector<8x32xf32>
    %484 = vector.broadcast %337 : vector<1x32xf32> to vector<8x32xf32>
    %485 = arith.addf %483, %484 : vector<8x32xf32>
    %486 = arith.addf %485, %446 : vector<8x32xf32>
    %c3_154 = arith.constant 3 : index
    %c0_155 = arith.constant 0 : index
    %c0_156 = arith.constant 0 : index
    %487 = vector.load %arg2[%c3_154, %c0_155, %c0_156] : memref<4x7x128xf32, #tpu.memory_space<vmem>>, vector<1x7x128xf32>
    %488 = vector.shape_cast %487 : vector<1x7x128xf32> to vector<7x128xf32>
    %489 = vector.extract_strided_slice %488 {offsets = [0, 0], sizes = [1, 32], strides = [1, 1]} : vector<7x128xf32> to vector<1x32xf32>
    %490 = vector.extract_strided_slice %488 {offsets = [1, 0], sizes = [1, 32], strides = [1, 1]} : vector<7x128xf32> to vector<1x32xf32>
    %491 = vector.extract_strided_slice %488 {offsets = [2, 0], sizes = [1, 32], strides = [1, 1]} : vector<7x128xf32> to vector<1x32xf32>
    %492 = vector.extract_strided_slice %488 {offsets = [3, 0], sizes = [1, 32], strides = [1, 1]} : vector<7x128xf32> to vector<1x32xf32>
    %493 = vector.extract_strided_slice %488 {offsets = [4, 0], sizes = [1, 32], strides = [1, 1]} : vector<7x128xf32> to vector<1x32xf32>
    %494 = vector.extract_strided_slice %488 {offsets = [5, 0], sizes = [1, 32], strides = [1, 1]} : vector<7x128xf32> to vector<1x32xf32>
    %495 = vector.extract_strided_slice %488 {offsets = [6, 0], sizes = [1, 128], strides = [1, 1]} : vector<7x128xf32> to vector<1x128xf32>
    %c3_157 = arith.constant 3 : index
    %c0_158 = arith.constant 0 : index
    %c0_159 = arith.constant 0 : index
    %496 = vector.load %arg3[%c3_157, %c0_158, %c0_159] : memref<4x32x256xf32, #tpu.memory_space<vmem>>, vector<1x32x256xf32>
    %497 = vector.shape_cast %496 : vector<1x32x256xf32> to vector<32x256xf32>
    %498 = vector.extract_strided_slice %497 {offsets = [0, 0], sizes = [32, 96], strides = [1, 1]} : vector<32x256xf32> to vector<32x96xf32>
    %499 = vector.extract_strided_slice %497 {offsets = [0, 96], sizes = [32, 32], strides = [1, 1]} : vector<32x256xf32> to vector<32x32xf32>
    %500 = vector.extract_strided_slice %497 {offsets = [0, 128], sizes = [32, 128], strides = [1, 1]} : vector<32x256xf32> to vector<32x128xf32>
    %c3_160 = arith.constant 3 : index
    %c0_161 = arith.constant 0 : index
    %c0_162 = arith.constant 0 : index
    %501 = vector.load %arg4[%c3_160, %c0_161, %c0_162] : memref<4x128x32xf32, #tpu.memory_space<vmem>>, vector<1x128x32xf32>
    %502 = vector.shape_cast %501 : vector<1x128x32xf32> to vector<128x32xf32>
    %cst_163 = arith.constant dense<0.000000e+00> : vector<8xf32>
    %503 = vector.multi_reduction <add>, %486, %cst_163 [1] : vector<8x32xf32> to vector<8xf32>
    %504 = vector.shape_cast %503 : vector<8xf32> to vector<8x1xf32>
    %cst_164 = arith.constant 3.200000e+01 : f32
    %505 = vector.broadcast %cst_164 : f32 to vector<8x1xf32>
    %506 = arith.divf %504, %505 : vector<8x1xf32>
    %507 = vector.broadcast %506 : vector<8x1xf32> to vector<8x32xf32>
    %508 = arith.subf %486, %507 : vector<8x32xf32>
    %509 = arith.mulf %508, %508 : vector<8x32xf32>
    %cst_165 = arith.constant dense<0.000000e+00> : vector<8xf32>
    %510 = vector.multi_reduction <add>, %509, %cst_165 [1] : vector<8x32xf32> to vector<8xf32>
    %511 = vector.shape_cast %510 : vector<8xf32> to vector<8x1xf32>
    %cst_166 = arith.constant 3.200000e+01 : f32
    %512 = vector.broadcast %cst_166 : f32 to vector<8x1xf32>
    %513 = arith.divf %511, %512 : vector<8x1xf32>
    %cst_167 = arith.constant 9.99999974E-6 : f32
    %514 = vector.broadcast %cst_167 : f32 to vector<8x1xf32>
    %515 = arith.addf %513, %514 : vector<8x1xf32>
    %516 = math.rsqrt %515 : vector<8x1xf32>
    %517 = vector.broadcast %516 : vector<8x1xf32> to vector<8x32xf32>
    %518 = arith.mulf %508, %517 : vector<8x32xf32>
    %519 = vector.broadcast %489 : vector<1x32xf32> to vector<8x32xf32>
    %520 = arith.mulf %518, %519 : vector<8x32xf32>
    %521 = vector.broadcast %490 : vector<1x32xf32> to vector<8x32xf32>
    %522 = arith.addf %520, %521 : vector<8x32xf32>
    %cst_168 = arith.constant dense<0.000000e+00> : vector<8x96xf32>
    %523 = tpu.matmul %522, %498, %cst_168 {dimension_numbers = #tpu.dot_dimension_numbers<[1], [0], [0], [1], [0, 0, 1, 1], [], []>} : vector<8x32xf32>, vector<32x96xf32>, vector<8x96xf32> -> vector<8x96xf32>
    %524 = vector.extract_strided_slice %523 {offsets = [0, 32], sizes = [8, 32], strides = [1, 1]} : vector<8x96xf32> to vector<8x32xf32>
    %525 = vector.extract_strided_slice %523 {offsets = [0, 64], sizes = [8, 32], strides = [1, 1]} : vector<8x96xf32> to vector<8x32xf32>
    %526 = vector.extract_strided_slice %523 {offsets = [0, 0], sizes = [8, 32], strides = [1, 1]} : vector<8x96xf32> to vector<8x32xf32>
    %527 = vector.extract_strided_slice %526 {offsets = [0, 0], sizes = [8, 8], strides = [1, 1]} : vector<8x32xf32> to vector<8x8xf32>
    %528 = vector.extract_strided_slice %524 {offsets = [0, 0], sizes = [8, 8], strides = [1, 1]} : vector<8x32xf32> to vector<8x8xf32>
    %529 = vector.extract_strided_slice %525 {offsets = [0, 0], sizes = [8, 8], strides = [1, 1]} : vector<8x32xf32> to vector<8x8xf32>
    %cst_169 = arith.constant dense<0.000000e+00> : vector<8x8xf32>
    %530 = tpu.matmul %527, %528, %cst_169 {dimension_numbers = #tpu.dot_dimension_numbers<[1], [1], [0], [0], [0, 0, 1, 0], [], []>} : vector<8x8xf32>, vector<8x8xf32>, vector<8x8xf32> -> vector<8x8xf32>
    %cst_170 = arith.constant 0.353553385 : f32
    %531 = vector.broadcast %cst_170 : f32 to vector<8x8xf32>
    %532 = arith.mulf %530, %531 : vector<8x8xf32>
    %533 = arith.addf %532, %9 : vector<8x8xf32>
    %cst_171 = arith.constant dense<0xFF800000> : vector<8xf32>
    %534 = vector.multi_reduction <maximumf>, %533, %cst_171 [1] : vector<8x8xf32> to vector<8xf32>
    %535 = vector.shape_cast %534 : vector<8xf32> to vector<8x1xf32>
    %536 = vector.broadcast %535 : vector<8x1xf32> to vector<8x8xf32>
    %537 = arith.subf %533, %536 : vector<8x8xf32>
    %538 = math.exp %537 : vector<8x8xf32>
    %cst_172 = arith.constant dense<0.000000e+00> : vector<8xf32>
    %539 = vector.multi_reduction <add>, %538, %cst_172 [1] : vector<8x8xf32> to vector<8xf32>
    %540 = vector.shape_cast %539 : vector<8xf32> to vector<8x1xf32>
    %541 = tpu.reciprocal %540 {approx = true} : vector<8x1xf32> -> vector<8x1xf32>
    %542 = vector.broadcast %541 : vector<8x1xf32> to vector<8x8xf32>
    %543 = arith.mulf %538, %542 : vector<8x8xf32>
    %cst_173 = arith.constant dense<0.000000e+00> : vector<8x8xf32>
    %544 = tpu.matmul %543, %529, %cst_173 {dimension_numbers = #tpu.dot_dimension_numbers<[1], [0], [0], [1], [0, 0, 1, 1], [], []>} : vector<8x8xf32>, vector<8x8xf32>, vector<8x8xf32> -> vector<8x8xf32>
    %545 = vector.extract_strided_slice %526 {offsets = [0, 8], sizes = [8, 8], strides = [1, 1]} : vector<8x32xf32> to vector<8x8xf32>
    %546 = vector.extract_strided_slice %524 {offsets = [0, 8], sizes = [8, 8], strides = [1, 1]} : vector<8x32xf32> to vector<8x8xf32>
    %547 = vector.extract_strided_slice %525 {offsets = [0, 8], sizes = [8, 8], strides = [1, 1]} : vector<8x32xf32> to vector<8x8xf32>
    %cst_174 = arith.constant dense<0.000000e+00> : vector<8x8xf32>
    %548 = tpu.matmul %545, %546, %cst_174 {dimension_numbers = #tpu.dot_dimension_numbers<[1], [1], [0], [0], [0, 0, 1, 0], [], []>} : vector<8x8xf32>, vector<8x8xf32>, vector<8x8xf32> -> vector<8x8xf32>
    %cst_175 = arith.constant 0.353553385 : f32
    %549 = vector.broadcast %cst_175 : f32 to vector<8x8xf32>
    %550 = arith.mulf %548, %549 : vector<8x8xf32>
    %551 = arith.addf %550, %9 : vector<8x8xf32>
    %cst_176 = arith.constant dense<0xFF800000> : vector<8xf32>
    %552 = vector.multi_reduction <maximumf>, %551, %cst_176 [1] : vector<8x8xf32> to vector<8xf32>
    %553 = vector.shape_cast %552 : vector<8xf32> to vector<8x1xf32>
    %554 = vector.broadcast %553 : vector<8x1xf32> to vector<8x8xf32>
    %555 = arith.subf %551, %554 : vector<8x8xf32>
    %556 = math.exp %555 : vector<8x8xf32>
    %cst_177 = arith.constant dense<0.000000e+00> : vector<8xf32>
    %557 = vector.multi_reduction <add>, %556, %cst_177 [1] : vector<8x8xf32> to vector<8xf32>
    %558 = vector.shape_cast %557 : vector<8xf32> to vector<8x1xf32>
    %559 = tpu.reciprocal %558 {approx = true} : vector<8x1xf32> -> vector<8x1xf32>
    %560 = vector.broadcast %559 : vector<8x1xf32> to vector<8x8xf32>
    %561 = arith.mulf %556, %560 : vector<8x8xf32>
    %cst_178 = arith.constant dense<0.000000e+00> : vector<8x8xf32>
    %562 = tpu.matmul %561, %547, %cst_178 {dimension_numbers = #tpu.dot_dimension_numbers<[1], [0], [0], [1], [0, 0, 1, 1], [], []>} : vector<8x8xf32>, vector<8x8xf32>, vector<8x8xf32> -> vector<8x8xf32>
    %563 = vector.extract_strided_slice %526 {offsets = [0, 16], sizes = [8, 8], strides = [1, 1]} : vector<8x32xf32> to vector<8x8xf32>
    %564 = vector.extract_strided_slice %524 {offsets = [0, 16], sizes = [8, 8], strides = [1, 1]} : vector<8x32xf32> to vector<8x8xf32>
    %565 = vector.extract_strided_slice %525 {offsets = [0, 16], sizes = [8, 8], strides = [1, 1]} : vector<8x32xf32> to vector<8x8xf32>
    %cst_179 = arith.constant dense<0.000000e+00> : vector<8x8xf32>
    %566 = tpu.matmul %563, %564, %cst_179 {dimension_numbers = #tpu.dot_dimension_numbers<[1], [1], [0], [0], [0, 0, 1, 0], [], []>} : vector<8x8xf32>, vector<8x8xf32>, vector<8x8xf32> -> vector<8x8xf32>
    %cst_180 = arith.constant 0.353553385 : f32
    %567 = vector.broadcast %cst_180 : f32 to vector<8x8xf32>
    %568 = arith.mulf %566, %567 : vector<8x8xf32>
    %569 = arith.addf %568, %9 : vector<8x8xf32>
    %cst_181 = arith.constant dense<0xFF800000> : vector<8xf32>
    %570 = vector.multi_reduction <maximumf>, %569, %cst_181 [1] : vector<8x8xf32> to vector<8xf32>
    %571 = vector.shape_cast %570 : vector<8xf32> to vector<8x1xf32>
    %572 = vector.broadcast %571 : vector<8x1xf32> to vector<8x8xf32>
    %573 = arith.subf %569, %572 : vector<8x8xf32>
    %574 = math.exp %573 : vector<8x8xf32>
    %cst_182 = arith.constant dense<0.000000e+00> : vector<8xf32>
    %575 = vector.multi_reduction <add>, %574, %cst_182 [1] : vector<8x8xf32> to vector<8xf32>
    %576 = vector.shape_cast %575 : vector<8xf32> to vector<8x1xf32>
    %577 = tpu.reciprocal %576 {approx = true} : vector<8x1xf32> -> vector<8x1xf32>
    %578 = vector.broadcast %577 : vector<8x1xf32> to vector<8x8xf32>
    %579 = arith.mulf %574, %578 : vector<8x8xf32>
    %cst_183 = arith.constant dense<0.000000e+00> : vector<8x8xf32>
    %580 = tpu.matmul %579, %565, %cst_183 {dimension_numbers = #tpu.dot_dimension_numbers<[1], [0], [0], [1], [0, 0, 1, 1], [], []>} : vector<8x8xf32>, vector<8x8xf32>, vector<8x8xf32> -> vector<8x8xf32>
    %581 = vector.extract_strided_slice %526 {offsets = [0, 24], sizes = [8, 8], strides = [1, 1]} : vector<8x32xf32> to vector<8x8xf32>
    %582 = vector.extract_strided_slice %524 {offsets = [0, 24], sizes = [8, 8], strides = [1, 1]} : vector<8x32xf32> to vector<8x8xf32>
    %583 = vector.extract_strided_slice %525 {offsets = [0, 24], sizes = [8, 8], strides = [1, 1]} : vector<8x32xf32> to vector<8x8xf32>
    %cst_184 = arith.constant dense<0.000000e+00> : vector<8x8xf32>
    %584 = tpu.matmul %581, %582, %cst_184 {dimension_numbers = #tpu.dot_dimension_numbers<[1], [1], [0], [0], [0, 0, 1, 0], [], []>} : vector<8x8xf32>, vector<8x8xf32>, vector<8x8xf32> -> vector<8x8xf32>
    %cst_185 = arith.constant 0.353553385 : f32
    %585 = vector.broadcast %cst_185 : f32 to vector<8x8xf32>
    %586 = arith.mulf %584, %585 : vector<8x8xf32>
    %587 = arith.addf %586, %9 : vector<8x8xf32>
    %cst_186 = arith.constant dense<0xFF800000> : vector<8xf32>
    %588 = vector.multi_reduction <maximumf>, %587, %cst_186 [1] : vector<8x8xf32> to vector<8xf32>
    %589 = vector.shape_cast %588 : vector<8xf32> to vector<8x1xf32>
    %590 = vector.broadcast %589 : vector<8x1xf32> to vector<8x8xf32>
    %591 = arith.subf %587, %590 : vector<8x8xf32>
    %592 = math.exp %591 : vector<8x8xf32>
    %cst_187 = arith.constant dense<0.000000e+00> : vector<8xf32>
    %593 = vector.multi_reduction <add>, %592, %cst_187 [1] : vector<8x8xf32> to vector<8xf32>
    %594 = vector.shape_cast %593 : vector<8xf32> to vector<8x1xf32>
    %595 = tpu.reciprocal %594 {approx = true} : vector<8x1xf32> -> vector<8x1xf32>
    %596 = vector.broadcast %595 : vector<8x1xf32> to vector<8x8xf32>
    %597 = arith.mulf %592, %596 : vector<8x8xf32>
    %cst_188 = arith.constant dense<0.000000e+00> : vector<8x8xf32>
    %598 = tpu.matmul %597, %583, %cst_188 {dimension_numbers = #tpu.dot_dimension_numbers<[1], [0], [0], [1], [0, 0, 1, 1], [], []>} : vector<8x8xf32>, vector<8x8xf32>, vector<8x8xf32> -> vector<8x8xf32>
    %599 = tpu.concatenate %544, %562, %580, %598 in 1 : vector<8x8xf32>, vector<8x8xf32>, vector<8x8xf32>, vector<8x8xf32> -> vector<8x32xf32>
    %cst_189 = arith.constant dense<0.000000e+00> : vector<8x32xf32>
    %600 = tpu.matmul %599, %499, %cst_189 {dimension_numbers = #tpu.dot_dimension_numbers<[1], [0], [0], [1], [0, 0, 1, 1], [], []>} : vector<8x32xf32>, vector<32x32xf32>, vector<8x32xf32> -> vector<8x32xf32>
    %601 = vector.broadcast %491 : vector<1x32xf32> to vector<8x32xf32>
    %602 = arith.addf %600, %601 : vector<8x32xf32>
    %603 = arith.addf %602, %486 : vector<8x32xf32>
    %cst_190 = arith.constant dense<0.000000e+00> : vector<8xf32>
    %604 = vector.multi_reduction <add>, %603, %cst_190 [1] : vector<8x32xf32> to vector<8xf32>
    %605 = vector.shape_cast %604 : vector<8xf32> to vector<8x1xf32>
    %cst_191 = arith.constant 3.200000e+01 : f32
    %606 = vector.broadcast %cst_191 : f32 to vector<8x1xf32>
    %607 = arith.divf %605, %606 : vector<8x1xf32>
    %608 = vector.broadcast %607 : vector<8x1xf32> to vector<8x32xf32>
    %609 = arith.subf %603, %608 : vector<8x32xf32>
    %610 = arith.mulf %609, %609 : vector<8x32xf32>
    %cst_192 = arith.constant dense<0.000000e+00> : vector<8xf32>
    %611 = vector.multi_reduction <add>, %610, %cst_192 [1] : vector<8x32xf32> to vector<8xf32>
    %612 = vector.shape_cast %611 : vector<8xf32> to vector<8x1xf32>
    %cst_193 = arith.constant 3.200000e+01 : f32
    %613 = vector.broadcast %cst_193 : f32 to vector<8x1xf32>
    %614 = arith.divf %612, %613 : vector<8x1xf32>
    %cst_194 = arith.constant 9.99999974E-6 : f32
    %615 = vector.broadcast %cst_194 : f32 to vector<8x1xf32>
    %616 = arith.addf %614, %615 : vector<8x1xf32>
    %617 = math.rsqrt %616 : vector<8x1xf32>
    %618 = vector.broadcast %617 : vector<8x1xf32> to vector<8x32xf32>
    %619 = arith.mulf %609, %618 : vector<8x32xf32>
    %620 = vector.broadcast %492 : vector<1x32xf32> to vector<8x32xf32>
    %621 = arith.mulf %619, %620 : vector<8x32xf32>
    %622 = vector.broadcast %493 : vector<1x32xf32> to vector<8x32xf32>
    %623 = arith.addf %621, %622 : vector<8x32xf32>
    %cst_195 = arith.constant dense<0.000000e+00> : vector<8x128xf32>
    %624 = tpu.matmul %623, %500, %cst_195 {dimension_numbers = #tpu.dot_dimension_numbers<[1], [0], [0], [1], [0, 0, 1, 1], [], []>} : vector<8x32xf32>, vector<32x128xf32>, vector<8x128xf32> -> vector<8x128xf32>
    %625 = vector.broadcast %495 : vector<1x128xf32> to vector<8x128xf32>
    %626 = arith.addf %624, %625 : vector<8x128xf32>
    %cst_196 = arith.constant 5.000000e-01 : f32
    %627 = vector.broadcast %cst_196 : f32 to vector<8x128xf32>
    %628 = arith.mulf %627, %626 : vector<8x128xf32>
    %cst_197 = arith.constant 4.471500e-02 : f32
    %629 = vector.broadcast %cst_197 : f32 to vector<8x128xf32>
    %630 = arith.mulf %629, %626 : vector<8x128xf32>
    %631 = arith.mulf %630, %626 : vector<8x128xf32>
    %632 = arith.mulf %631, %626 : vector<8x128xf32>
    %633 = arith.addf %626, %632 : vector<8x128xf32>
    %cst_198 = arith.constant 0.797884583 : f32
    %634 = vector.broadcast %cst_198 : f32 to vector<8x128xf32>
    %635 = arith.mulf %634, %633 : vector<8x128xf32>
    %636 = math.tanh %635 : vector<8x128xf32>
    %cst_199 = arith.constant 1.000000e+00 : f32
    %637 = vector.broadcast %cst_199 : f32 to vector<8x128xf32>
    %638 = arith.addf %637, %636 : vector<8x128xf32>
    %639 = arith.mulf %628, %638 : vector<8x128xf32>
    %cst_200 = arith.constant dense<0.000000e+00> : vector<8x32xf32>
    %640 = tpu.matmul %639, %502, %cst_200 {dimension_numbers = #tpu.dot_dimension_numbers<[1], [0], [0], [1], [0, 0, 1, 1], [], []>} : vector<8x128xf32>, vector<128x32xf32>, vector<8x32xf32> -> vector<8x32xf32>
    %641 = vector.broadcast %494 : vector<1x32xf32> to vector<8x32xf32>
    %642 = arith.addf %640, %641 : vector<8x32xf32>
    %643 = arith.addf %642, %603 : vector<8x32xf32>
    %cst_201 = arith.constant dense<0.000000e+00> : vector<16x32xf32>
    %644 = tpu.matmul %15, %643, %cst_201 {dimension_numbers = #tpu.dot_dimension_numbers<[1], [0], [0], [1], [0, 0, 1, 1], [], []>} : vector<16x8xf32>, vector<8x32xf32>, vector<16x32xf32> -> vector<16x32xf32>
    %645 = arith.addf %644, %329 : vector<16x32xf32>
    %c0_202 = arith.constant 0 : index
    %c0_203 = arith.constant 0 : index
    %c0_204 = arith.constant 0 : index
    %646 = vector.load %arg6[%c0_202, %c0_203, %c0_204] : memref<1x16x32xf32, #tpu.memory_space<vmem>>, vector<1x16x32xf32>
    %647 = vector.shape_cast %646 : vector<1x16x32xf32> to vector<16x32xf32>
    %648 = vector.shape_cast %645 : vector<16x32xf32> to vector<1x16x32xf32>
    tpu.vector_store %arg6[%c0_202, %c0_203, %c0_204], %648 {strides = array<i32>} : memref<1x16x32xf32, #tpu.memory_space<vmem>>, vector<1x16x32xf32>,
    return
  }
  func.func @transform_0(%arg0: i32) -> (i32, i32, i32) {
    %c0_i32 = arith.constant 0 : i32
    %c0_i32_0 = arith.constant 0 : i32
    %c0_i32_1 = arith.constant 0 : i32
    return %arg0, %c0_i32, %c0_i32_0 : i32, i32, i32
  }
  func.func @transform_1(%arg0: i32) -> (i32, i32, i32) {
    %c0_i32 = arith.constant 0 : i32
    %c0_i32_0 = arith.constant 0 : i32
    %c0_i32_1 = arith.constant 0 : i32
    %c0_i32_2 = arith.constant 0 : i32
    return %c0_i32, %c0_i32_0, %c0_i32_1 : i32, i32, i32
  }
  func.func @transform_2(%arg0: i32) -> (i32, i32, i32) {
    %c0_i32 = arith.constant 0 : i32
    %c0_i32_0 = arith.constant 0 : i32
    %c0_i32_1 = arith.constant 0 : i32
    %c0_i32_2 = arith.constant 0 : i32
    return %c0_i32, %c0_i32_0, %c0_i32_1 : i32, i32, i32
  }
  func.func @transform_3(%arg0: i32) -> (i32, i32, i32) {
    %c0_i32 = arith.constant 0 : i32
    %c0_i32_0 = arith.constant 0 : i32
    %c0_i32_1 = arith.constant 0 : i32
    %c0_i32_2 = arith.constant 0 : i32
    return %c0_i32, %c0_i32_0, %c0_i32_1 : i32, i32, i32
  }
  func.func @transform_4(%arg0: i32) -> (i32, i32, i32) {
    %c0_i32 = arith.constant 0 : i32
    %c0_i32_0 = arith.constant 0 : i32
    %c0_i32_1 = arith.constant 0 : i32
    %c0_i32_2 = arith.constant 0 : i32
    return %c0_i32, %c0_i32_0, %c0_i32_1 : i32, i32, i32
  }
  func.func @transform_5(%arg0: i32) -> (i32, i32, i32) {
    %c0_i32 = arith.constant 0 : i32
    %c0_i32_0 = arith.constant 0 : i32
    %c0_i32_1 = arith.constant 0 : i32
    return %arg0, %c0_i32, %c0_i32_0 : i32, i32, i32
  }
}

</mosaic_0001>

<llo_original>
// kernel: funnel_encoder_forward.1
$region0: #{funnel_encoder_forward.1}
  #allocation0 [shape = 'u32[]', space=smem, size = 0x4, offset = 0x4, fixed_abs, tag = 'smem constant byte address 0x4 - core index']
  #allocation1 [shape = 'u32[144,128]{1,0:T(1,128)}', space=vmem, size = 0x12000, scoped, tag = 'internal scratch']
  %s0 = inlined_call_operand.vmem [shape: f32[1,16,32], index: 0, kind: input, shape index: {}]
  %s1 = inlined_call_operand.vmem [shape: f32[4,7,128], index: 1, kind: input, shape index: {}]
  %s2 = inlined_call_operand.vmem [shape: f32[4,32,256], index: 2, kind: input, shape index: {}]
  %s3 = inlined_call_operand.vmem [shape: f32[4,128,32], index: 3, kind: input, shape index: {}]
  %s4 = inlined_call_operand.vmem [shape: f32[5,16,16], index: 4, kind: input, shape index: {}]
  %s5 = inlined_call_operand.hbm [shape: f32[1,16,32], index: 5, kind: output, shape index: {}]
  %s6 = sld [smem:[#allocation0]]
  $region30: #{funnel_encoder_forward.1} parent=0
    _
  %s8 = ssub.s32 1, %s6
  %s9 = scalar_select 0, %s8, %s6
  $region1: #{funnel_encoder_forward.1} parent=0
    #allocation2 [shape = 'u8[8192]{0}', space=vmem, size = 0x2000, scoped, tag = 'output window, operand 0, single buffered']
    #allocation3 [shape = 's32[1]{0}', space=sflag, size = 0x4, scoped, tag = 'scoped memory for funnel_encoder_forward.1']
    %10 = vsyncpa [#allocation3], 0
    // Predicated region
    $region2: #{funnel_encoder_forward.1} parent=1 // pred_check
      _
    $region3: #{funnel_encoder_forward.1} parent=1 // pred_check_branch
      %12 = sbr.rel (0) target = $region5
    $region4: #{funnel_encoder_forward.1} parent=1 // pred_region
      _
    $region5: #{funnel_encoder_forward.1} parent=1 // pred_fallthru
      _
    // Predicated region
    $region6: #{funnel_encoder_forward.1} parent=1 // pred_check
      _
    $region7: #{funnel_encoder_forward.1} parent=1 // pred_check_branch
      %14 = sbr.rel (0) target = $region9
    $region8: #{funnel_encoder_forward.1} parent=1 // pred_region
      _
    $region9: #{funnel_encoder_forward.1} parent=1 // pred_fallthru
      _
    // Predicated region
    $region10: #{funnel_encoder_forward.1} parent=1 // pred_check
      _
    $region11: #{funnel_encoder_forward.1} parent=1 // pred_check_branch
      %16 = sbr.rel (0) target = $region13
    $region12: #{funnel_encoder_forward.1} parent=1 // pred_region
      _
    $region13: #{funnel_encoder_forward.1} parent=1 // pred_fallthru
      _
    // Predicated region
    $region14: #{funnel_encoder_forward.1} parent=1 // pred_check
      _
    $region15: #{funnel_encoder_forward.1} parent=1 // pred_check_branch
      %18 = sbr.rel (0) target = $region17
    $region16: #{funnel_encoder_forward.1} parent=1 // pred_region
      _
    $region17: #{funnel_encoder_forward.1} parent=1 // pred_fallthru
      _
    // Predicated region
    $region18: #{funnel_encoder_forward.1} parent=1 // pred_check
      _
    $region19: #{funnel_encoder_forward.1} parent=1 // pred_check_branch
      %20 = sbr.rel (0) target = $region21
    $region20: #{funnel_encoder_forward.1} parent=1 // pred_region
      _
    $region21: #{funnel_encoder_forward.1} parent=1 // pred_fallthru
      _
    %v21 = vld [vmem:[%s0] sm:$0xff]
    %v22 = vld [vmem:[%s0 + $0x8] sm:$0xff]
    %v23 = vld [vmem:[%s4] sm:$0xff]
    %v24 = vld [vmem:[%s4 + $0x8] sm:$0xff]
    %s25 = scalar_lea.vmem %s4, 16
    %v26 = vld [vmem:[%s25] sm:$0xff]
    %s27 = scalar_lea.vmem %s4, 32
    %v28 = vld [vmem:[%s27] sm:$0xff]
    %s29 = scalar_lea.vmem %s4, 48
    %v30 = vld [vmem:[%s29] sm:$0xff]
    %s31 = scalar_lea.vmem %s4, 64
    %v32 = vld [vmem:[%s31] sm:$0xff]
    %v33 = vld [vmem:[%s31 + $0x8] sm:$0xff]
    %v34 = vld [vmem:[%s1] sm:$0x7f]
    %v35 = vld [vmem:[%s2] sm:$0xff]
    %v36 = vld [vmem:[%s2 + $0x8] sm:$0xff]
    %v37 = vld [vmem:[%s2 + $0x10] sm:$0xff]
    %v38 = vld [vmem:[%s2 + $0x18] sm:$0xff]
    %v39 = vld [vmem:[%s2 + $0x20] sm:$0xff]
    %v40 = vld [vmem:[%s2 + $0x28] sm:$0xff]
    %v41 = vld [vmem:[%s2 + $0x30] sm:$0xff]
    %v42 = vld [vmem:[%s2 + $0x38] sm:$0xff]
    %v43 = vld [vmem:[%s3] sm:$0xff]
    %v44 = vld [vmem:[%s3 + $0x8] sm:$0xff]
    %v45 = vld [vmem:[%s3 + $0x10] sm:$0xff]
    %v46 = vld [vmem:[%s3 + $0x18] sm:$0xff]
    %v47 = vld [vmem:[%s3 + $0x20] sm:$0xff]
    %v48 = vld [vmem:[%s3 + $0x28] sm:$0xff]
    %v49 = vld [vmem:[%s3 + $0x30] sm:$0xff]
    %v50 = vld [vmem:[%s3 + $0x38] sm:$0xff]
    %v51 = vld [vmem:[%s3 + $0x40] sm:$0xff]
    %v52 = vld [vmem:[%s3 + $0x48] sm:$0xff]
    %v53 = vld [vmem:[%s3 + $0x50] sm:$0xff]
    %v54 = vld [vmem:[%s3 + $0x58] sm:$0xff]
    %v55 = vld [vmem:[%s3 + $0x60] sm:$0xff]
    %v56 = vld [vmem:[%s3 + $0x68] sm:$0xff]
    %v57 = vld [vmem:[%s3 + $0x70] sm:$0xff]
    %v58 = vld [vmem:[%s3 + $0x78] sm:$0xff]
    %vm59 = vcmask 261120
    %v60 = vsel %vm59, %v21, 0.0
    %61 = vadd.xlane.f32.xlu0 %v60
    %v62 = vpop.xlane.xlu0 %61
    %v63 = vsel %vm59, %v22, 0.0
    %64 = vadd.xlane.f32.xlu0 %v63
    %v65 = vpop.xlane.xlu0 %64
    %v66 = vrcp.pop 32.0
    %v67 = vmul.f32 %v62, %v66
    %v68 = vmul.f32 %v65, %v66
    %v69 = vsub.f32 %v21, %v67
    %v70 = vsub.f32 %v22, %v68
    %v71 = vmul.f32 %v69, %v69
    %v72 = vmul.f32 %v70, %v70
    %v73 = vsel %vm59, %v71, 0.0
    %74 = vadd.xlane.f32.xlu0 %v73
    %v75 = vpop.xlane.xlu0 %74
    %v76 = vsel %vm59, %v72, 0.0
    %77 = vadd.xlane.f32.xlu0 %v76
    %v78 = vpop.xlane.xlu0 %77
    %v79 = vmul.f32 %v75, %v66
    %v80 = vmul.f32 %v78, %v66
    %v81 = vadd.f32 %v79, 1e-05
    %v82 = vadd.f32 %v80, 1e-05
    %v83 = vrsqrt.pop %v81
    %v84 = vrsqrt.pop %v82
    %v85 = vmul.f32 %v69, %v83
    %v86 = vmul.f32 %v70, %v84
    %v87 = vlaneseq
    %v88 = vshrl.u32 %v87, 7
    %v89 = vsub.s32 0, %v88
    %v90 = vrot.slane %v34, %v89
    %v91 = vmul.f32 %v85, %v90
    %v92 = vmul.f32 %v86, %v90
    %v93 = vlaneseq
    %v94 = vshrl.u32 %v93, 7
    %v95 = vsub.s32 1, %v94
    %v96 = vrot.slane %v34, %v95
    %v97 = vadd.f32 %v91, %v96
    %v98 = vadd.f32 %v92, %v96
    %v100 = vsel %vm59, %v97, 0
    %v103 = vsel %vm59, %v98, 0
    %105 = vmatprep.subr.mxu0 0.0
    %106 = vmatpush1.msra.mxu0 %v35
    %107 = vmatprep.subr.mxu0 0.0
    %108 = vmatpush1.msra.mxu0 %v37
    %109 = vmatprep.subr.mxu0 0.0
    %110 = vmatpush1.msra.mxu0 %v39
    %111 = vmatprep.subr.mxu0 0.0
    %112 = vmatpush1.msra.mxu0 %v41
    %113 = vmatprep.subr.mxu0 0.0
    %114 = vmatpush1.msra.mxu0 0.0
    %115 = vmatprep.subr.mxu0 0.0
    %116 = vmatpush1.msra.mxu0 0.0
    %117 = vmatprep.subr.mxu0 0.0
    %118 = vmatpush1.msra.mxu0 0.0
    %119 = vmatprep.subr.mxu0 0.0
    %120 = vmatpush1.msra.mxu0 0.0
    %121 = vmatprep.subr.mxu0 0.0
    %122 = vmatpush1.msra.mxu0 0.0
    %123 = vmatprep.subr.mxu0 0.0
    %124 = vmatpush1.msra.mxu0 0.0
    %125 = vmatprep.subr.mxu0 0.0
    %126 = vmatpush1.msra.mxu0 0.0
    %127 = vmatprep.subr.mxu0 0.0
    %128 = vmatpush1.msra.mxu0 0.0
    %129 = vmatprep.subr.mxu0 0.0
    %130 = vmatpush1.msra.mxu0 0.0
    %131 = vmatprep.subr.mxu0 0.0
    %132 = vmatpush1.msra.mxu0 0.0
    %133 = vmatprep.subr.mxu0 0.0
    %134 = vmatpush1.msra.mxu0 0.0
    %135 = vmatprep.subr.mxu0 0.0
    %136 = vmatpush1.msra.mxu0 0.0
    %137 = vmatprep.subr.mxu0 0.0
    %138 = vmatpush1.msra.mxu0 0.0
    %139 = vmatprep.subr.mxu0 0.0
    %140 = vmatpush1.msra.mxu0 0.0
    %141 = vmatprep.subr.mxu0 0.0
    %142 = vmatpush1.msra.mxu0 0.0
    %143 = vmatprep.subr.mxu0 0.0
    %144 = vmatpush1.msra.mxu0 0.0
    %145 = vmatprep.subr.mxu0 0.0
    %146 = vmatpush1.msra.mxu0 0.0
    %147 = vmatprep.subr.mxu0 0.0
    %148 = vmatpush1.msra.mxu0 0.0
    %149 = vmatprep.subr.mxu0 0.0
    %150 = vmatpush1.msra.mxu0 0.0
    %151 = vmatprep.subr.mxu0 0.0
    %152 = vmatpush1.msra.mxu0 0.0
    %153 = vmatprep.subr.mxu0 0.0
    %154 = vmatpush1.msra.mxu0 0.0
    %155 = vmatprep.subr.mxu0 0.0
    %156 = vmatpush1.msra.mxu0 0.0
    %157 = vmatprep.subr.mxu0 0.0
    %158 = vmatpush1.msra.mxu0 0.0
    %159 = vmatprep.subr.mxu0 0.0
    %160 = vmatpush1.msra.mxu0 0.0
    %161 = vmatprep.subr.mxu0 0.0
    %162 = vmatpush1.msra.mxu0 0.0
    %163 = vmatprep.subr.mxu0 0.0
    %164 = vmatpush1.msra.mxu0 0.0
    %165 = vmatprep.subr.mxu0 0.0
    %166 = vmatpush1.msra.mxu0 0.0
    %167 = vmatprep.subr.mxu0 0.0
    %168 = vmatpush1.msra.mxu0 0.0
    %169 = vmatprep.mubr.f32.mxu0 0.0
    %170 = vmatmul.mubr.f32.gmra.mrb[0].mxu0 %v100
    %v171 = vpop.f32.mrb[0].mxu0
    %v172 = vadd.f32 0.0, %v171
    %v173 = vpop.f32.mrb[0].mxu0
    %174 = vmatprep.mubr.f32.mxu0 0.0
    %175 = vmatmul.mubr.f32.gmra.mrb[0].mxu0 %v103
    %v176 = vpop.f32.mrb[0].mxu0
    %v177 = vadd.f32 0.0, %v176
    %v178 = vpop.f32.mrb[0].mxu0
    %179 = vdwg.mxu0
    %182 = vrot.lane.b32.xlu0 %v172, 96
    %v183 = vpop.permute.xlu0 %182
    %184 = vrot.lane.b32.xlu0 %v177, 96
    %v185 = vpop.permute.xlu0 %184
    %vm186 = vcmask 64512
    %v187 = vsel %vm186, %v172, 0
    %v189 = vsel %vm186, %v177, 0
    %v191 = vsel %vm186, %v183, 0
    %v193 = vsel %vm186, %v185, 0
    %195 = vmatprep.subr.mxu0 0.0
    %196 = vmatpush1.xpose.msra.mxu0 %v191
    %197 = vmatprep.subr.mxu0 0.0
    %198 = vmatpush1.xpose.msra.mxu0 %v193
    %199 = vmatprep.subr.mxu0 0.0
    %200 = vmatpush1.xpose.msra.mxu0 0.0
    %201 = vmatprep.subr.mxu0 0.0
    %202 = vmatpush1.xpose.msra.mxu0 0.0
    %203 = vmatprep.subr.mxu0 0.0
    %204 = vmatpush1.xpose.msra.mxu0 0.0
    %205 = vmatprep.subr.mxu0 0.0
    %206 = vmatpush1.xpose.msra.mxu0 0.0
    %207 = vmatprep.subr.mxu0 0.0
    %208 = vmatpush1.xpose.msra.mxu0 0.0
    %209 = vmatprep.subr.mxu0 0.0
    %210 = vmatpush1.xpose.msra.mxu0 0.0
    %211 = vmatprep.subr.mxu0 0.0
    %212 = vmatpush1.xpose.msra.mxu0 0.0
    %213 = vmatprep.subr.mxu0 0.0
    %214 = vmatpush1.xpose.msra.mxu0 0.0
    %215 = vmatprep.subr.mxu0 0.0
    %216 = vmatpush1.xpose.msra.mxu0 0.0
    %217 = vmatprep.subr.mxu0 0.0
    %218 = vmatpush1.xpose.msra.mxu0 0.0
    %219 = vmatprep.subr.mxu0 0.0
    %220 = vmatpush1.xpose.msra.mxu0 0.0
    %221 = vmatprep.subr.mxu0 0.0
    %222 = vmatpush1.xpose.msra.mxu0 0.0
    %223 = vmatprep.subr.mxu0 0.0
    %224 = vmatpush1.xpose.msra.mxu0 0.0
    %225 = vmatprep.subr.mxu0 0.0
    %226 = vmatpush1.xpose.msra.mxu0 0.0
    %227 = vmatprep.subr.mxu0 0.0
    %228 = vmatpush1.xpose.msra.mxu0 0.0
    %229 = vmatprep.subr.mxu0 0.0
    %230 = vmatpush1.xpose.msra.mxu0 0.0
    %231 = vmatprep.subr.mxu0 0.0
    %232 = vmatpush1.xpose.msra.mxu0 0.0
    %233 = vmatprep.subr.mxu0 0.0
    %234 = vmatpush1.xpose.msra.mxu0 0.0
    %235 = vmatprep.subr.mxu0 0.0
    %236 = vmatpush1.xpose.msra.mxu0 0.0
    %237 = vmatprep.subr.mxu0 0.0
    %238 = vmatpush1.xpose.msra.mxu0 0.0
    %239 = vmatprep.subr.mxu0 0.0
    %240 = vmatpush1.xpose.msra.mxu0 0.0
    %241 = vmatprep.subr.mxu0 0.0
    %242 = vmatpush1.xpose.msra.mxu0 0.0
    %243 = vmatprep.subr.mxu0 0.0
    %244 = vmatpush1.xpose.msra.mxu0 0.0
    %245 = vmatprep.subr.mxu0 0.0
    %246 = vmatpush1.xpose.msra.mxu0 0.0
    %247 = vmatprep.subr.mxu0 0.0
    %248 = vmatpush1.xpose.msra.mxu0 0.0
    %249 = vmatprep.subr.mxu0 0.0
    %250 = vmatpush1.xpose.msra.mxu0 0.0
    %251 = vmatprep.subr.mxu0 0.0
    %252 = vmatpush1.xpose.msra.mxu0 0.0
    %253 = vmatprep.subr.mxu0 0.0
    %254 = vmatpush1.xpose.msra.mxu0 0.0
    %255 = vmatprep.subr.mxu0 0.0
    %256 = vmatpush1.xpose.msra.mxu0 0.0
    %257 = vmatprep.subr.mxu0 0.0
    %258 = vmatpush1.xpose.msra.mxu0 0.0
    %259 = vmatprep.mubr.f32.mxu0 0.0
    %260 = vmatmul.mubr.f32.gmra.mrb[0].mxu0 %v187
    %v261 = vpop.f32.mrb[0].mxu0
    %v262 = vadd.f32 0.0, %v261
    %v263 = vpop.f32.mrb[0].mxu0
    %264 = vmatprep.mubr.f32.mxu0 0.0
    %265 = vmatmul.mubr.f32.gmra.mrb[0].mxu0 %v189
    %v266 = vpop.f32.mrb[0].mxu0
    %v267 = vadd.f32 0.0, %v266
    %v268 = vpop.f32.mrb[0].mxu0
    %269 = vdwg.mxu0
    %v270 = vmul.f32 %v262, 0.35355338
    %v271 = vmul.f32 %v267, 0.35355338
    %v272 = vadd.f32 %v270, %v23
    %v273 = vadd.f32 %v271, %v24
    %vm274 = vcmask 130048
    %v275 = vsel %vm274, %v272, -inf
    %276 = vmax.xlane.f32.xlu0 %v275
    %v277 = vpop.xlane.xlu0 %276
    %v278 = vsel %vm274, %v273, -inf
    %279 = vmax.xlane.f32.xlu0 %v278
    %v280 = vpop.xlane.xlu0 %279
    %v281 = vsub.f32 %v272, %v277
    %v282 = vsub.f32 %v273, %v280
    %v283 = vmul.f32 %v281, 1.442695
    %v284 = vpow.pop %v283
    %v285 = vmul.f32 %v282, 1.442695
    %v286 = vpow.pop %v285
    %v287 = vsel %vm274, %v284, 0.0
    %288 = vadd.xlane.f32.xlu0 %v287
    %v289 = vpop.xlane.xlu0 %288
    %v290 = vsel %vm274, %v286, 0.0
    %291 = vadd.xlane.f32.xlu0 %v290
    %v292 = vpop.xlane.xlu0 %291
    %v293 = vrcp.pop %v289
    %v294 = vrcp.pop %v292
    %v295 = vmul.f32 %v284, %v293
    %v296 = vmul.f32 %v286, %v294
    %297 = vrot.lane.b32.xlu0 %v172, 64
    %v298 = vpop.permute.xlu0 %297
    %299 = vrot.lane.b32.xlu0 %v177, 64
    %v300 = vpop.permute.xlu0 %299
    %v304 = vsel %vm274, %v295, 0
    %v307 = vsel %vm274, %v296, 0
    %309 = vmatprep.subr.mxu0 0.0
    %310 = vmatpush1.msra.mxu0 %v298
    %311 = vmatprep.subr.mxu0 0.0
    %312 = vmatpush1.msra.mxu0 %v300
    %313 = vmatprep.subr.mxu0 0.0
    %314 = vmatpush1.msra.mxu0 0.0
    %315 = vmatprep.subr.mxu0 0.0
    %316 = vmatpush1.msra.mxu0 0.0
    %317 = vmatprep.subr.mxu0 0.0
    %318 = vmatpush1.msra.mxu0 0.0
    %319 = vmatprep.subr.mxu0 0.0
    %320 = vmatpush1.msra.mxu0 0.0
    %321 = vmatprep.subr.mxu0 0.0
    %322 = vmatpush1.msra.mxu0 0.0
    %323 = vmatprep.subr.mxu0 0.0
    %324 = vmatpush1.msra.mxu0 0.0
    %325 = vmatprep.subr.mxu0 0.0
    %326 = vmatpush1.msra.mxu0 0.0
    %327 = vmatprep.subr.mxu0 0.0
    %328 = vmatpush1.msra.mxu0 0.0
    %329 = vmatprep.subr.mxu0 0.0
    %330 = vmatpush1.msra.mxu0 0.0
    %331 = vmatprep.subr.mxu0 0.0
    %332 = vmatpush1.msra.mxu0 0.0
    %333 = vmatprep.subr.mxu0 0.0
    %334 = vmatpush1.msra.mxu0 0.0
    %335 = vmatprep.subr.mxu0 0.0
    %336 = vmatpush1.msra.mxu0 0.0
    %337 = vmatprep.subr.mxu0 0.0
    %338 = vmatpush1.msra.mxu0 0.0
    %339 = vmatprep.subr.mxu0 0.0
    %340 = vmatpush1.msra.mxu0 0.0
    %341 = vmatprep.subr.mxu0 0.0
    %342 = vmatpush1.msra.mxu0 0.0
    %343 = vmatprep.subr.mxu0 0.0
    %344 = vmatpush1.msra.mxu0 0.0
    %345 = vmatprep.subr.mxu0 0.0
    %346 = vmatpush1.msra.mxu0 0.0
    %347 = vmatprep.subr.mxu0 0.0
    %348 = vmatpush1.msra.mxu0 0.0
    %349 = vmatprep.subr.mxu0 0.0
    %350 = vmatpush1.msra.mxu0 0.0
    %351 = vmatprep.subr.mxu0 0.0
    %352 = vmatpush1.msra.mxu0 0.0
    %353 = vmatprep.subr.mxu0 0.0
    %354 = vmatpush1.msra.mxu0 0.0
    %355 = vmatprep.subr.mxu0 0.0
    %356 = vmatpush1.msra.mxu0 0.0
    %357 = vmatprep.subr.mxu0 0.0
    %358 = vmatpush1.msra.mxu0 0.0
    %359 = vmatprep.subr.mxu0 0.0
    %360 = vmatpush1.msra.mxu0 0.0
    %361 = vmatprep.subr.mxu0 0.0
    %362 = vmatpush1.msra.mxu0 0.0
    %363 = vmatprep.subr.mxu0 0.0
    %364 = vmatpush1.msra.mxu0 0.0
    %365 = vmatprep.subr.mxu0 0.0
    %366 = vmatpush1.msra.mxu0 0.0
    %367 = vmatprep.subr.mxu0 0.0
    %368 = vmatpush1.msra.mxu0 0.0
    %369 = vmatprep.subr.mxu0 0.0
    %370 = vmatpush1.msra.mxu0 0.0
    %371 = vmatprep.subr.mxu0 0.0
    %372 = vmatpush1.msra.mxu0 0.0
    %373 = vmatprep.mubr.f32.mxu0 0.0
    %374 = vmatmul.mubr.f32.gmra.mrb[0].mxu0 %v304
    %v375 = vpop.f32.mrb[0].mxu0
    %v376 = vadd.f32 0.0, %v375
    %v377 = vpop.f32.mrb[0].mxu0
    %378 = vmatprep.mubr.f32.mxu0 0.0
    %379 = vmatmul.mubr.f32.gmra.mrb[0].mxu0 %v307
    %v380 = vpop.f32.mrb[0].mxu0
    %v381 = vadd.f32 0.0, %v380
    %v382 = vpop.f32.mrb[0].mxu0
    %383 = vdwg.mxu0
    %384 = vrot.lane.b32.xlu0 %v172, 120
    %v385 = vpop.permute.xlu0 %384
    %386 = vrot.lane.b32.xlu0 %v177, 120
    %v387 = vpop.permute.xlu0 %386
    %388 = vrot.lane.b32.xlu0 %v172, 88
    %v389 = vpop.permute.xlu0 %388
    %390 = vrot.lane.b32.xlu0 %v177, 88
    %v391 = vpop.permute.xlu0 %390
    %v392 = vsel %vm186, %v385, 0
    %v394 = vsel %vm186, %v387, 0
    %v396 = vsel %vm186, %v389, 0
    %v398 = vsel %vm186, %v391, 0
    %400 = vmatprep.subr.mxu0 0.0
    %401 = vmatpush1.xpose.msra.mxu0 %v396
    %402 = vmatprep.subr.mxu0 0.0
    %403 = vmatpush1.xpose.msra.mxu0 %v398
    %404 = vmatprep.subr.mxu0 0.0
    %405 = vmatpush1.xpose.msra.mxu0 0.0
    %406 = vmatprep.subr.mxu0 0.0
    %407 = vmatpush1.xpose.msra.mxu0 0.0
    %408 = vmatprep.subr.mxu0 0.0
    %409 = vmatpush1.xpose.msra.mxu0 0.0
    %410 = vmatprep.subr.mxu0 0.0
    %411 = vmatpush1.xpose.msra.mxu0 0.0
    %412 = vmatprep.subr.mxu0 0.0
    %413 = vmatpush1.xpose.msra.mxu0 0.0
    %414 = vmatprep.subr.mxu0 0.0
    %415 = vmatpush1.xpose.msra.mxu0 0.0
    %416 = vmatprep.subr.mxu0 0.0
    %417 = vmatpush1.xpose.msra.mxu0 0.0
    %418 = vmatprep.subr.mxu0 0.0
    %419 = vmatpush1.xpose.msra.mxu0 0.0
    %420 = vmatprep.subr.mxu0 0.0
    %421 = vmatpush1.xpose.msra.mxu0 0.0
    %422 = vmatprep.subr.mxu0 0.0
    %423 = vmatpush1.xpose.msra.mxu0 0.0
    %424 = vmatprep.subr.mxu0 0.0
    %425 = vmatpush1.xpose.msra.mxu0 0.0
    %426 = vmatprep.subr.mxu0 0.0
    %427 = vmatpush1.xpose.msra.mxu0 0.0
    %428 = vmatprep.subr.mxu0 0.0
    %429 = vmatpush1.xpose.msra.mxu0 0.0
    %430 = vmatprep.subr.mxu0 0.0
    %431 = vmatpush1.xpose.msra.mxu0 0.0
    %432 = vmatprep.subr.mxu0 0.0
    %433 = vmatpush1.xpose.msra.mxu0 0.0
    %434 = vmatprep.subr.mxu0 0.0
    %435 = vmatpush1.xpose.msra.mxu0 0.0
    %436 = vmatprep.subr.mxu0 0.0
    %437 = vmatpush1.xpose.msra.mxu0 0.0
    %438 = vmatprep.subr.mxu0 0.0
    %439 = vmatpush1.xpose.msra.mxu0 0.0
    %440 = vmatprep.subr.mxu0 0.0
    %441 = vmatpush1.xpose.msra.mxu0 0.0
    %442 = vmatprep.subr.mxu0 0.0
    %443 = vmatpush1.xpose.msra.mxu0 0.0
    %444 = vmatprep.subr.mxu0 0.0
    %445 = vmatpush1.xpose.msra.mxu0 0.0
    %446 = vmatprep.subr.mxu0 0.0
    %447 = vmatpush1.xpose.msra.mxu0 0.0
    %448 = vmatprep.subr.mxu0 0.0
    %449 = vmatpush1.xpose.msra.mxu0 0.0
    %450 = vmatprep.subr.mxu0 0.0
    %451 = vmatpush1.xpose.msra.mxu0 0.0
    %452 = vmatprep.subr.mxu0 0.0
    %453 = vmatpush1.xpose.msra.mxu0 0.0
    %454 = vmatprep.subr.mxu0 0.0
    %455 = vmatpush1.xpose.msra.mxu0 0.0
    %456 = vmatprep.subr.mxu0 0.0
    %457 = vmatpush1.xpose.msra.mxu0 0.0
    %458 = vmatprep.subr.mxu0 0.0
    %459 = vmatpush1.xpose.msra.mxu0 0.0
    %460 = vmatprep.subr.mxu0 0.0
    %461 = vmatpush1.xpose.msra.mxu0 0.0
    %462 = vmatprep.subr.mxu0 0.0
    %463 = vmatpush1.xpose.msra.mxu0 0.0
    %464 = vmatprep.mubr.f32.mxu0 0.0
    %465 = vmatmul.mubr.f32.gmra.mrb[0].mxu0 %v392
    %v466 = vpop.f32.mrb[0].mxu0
    %v467 = vadd.f32 0.0, %v466
    %v468 = vpop.f32.mrb[0].mxu0
    %469 = vmatprep.mubr.f32.mxu0 0.0
    %470 = vmatmul.mubr.f32.gmra.mrb[0].mxu0 %v394
    %v471 = vpop.f32.mrb[0].mxu0
    %v472 = vadd.f32 0.0, %v471
    %v473 = vpop.f32.mrb[0].mxu0
    %474 = vdwg.mxu0
    %v475 = vmul.f32 %v467, 0.35355338
    %v476 = vmul.f32 %v472, 0.35355338
    %v477 = vadd.f32 %v475, %v23
    %v478 = vadd.f32 %v476, %v24
    %v479 = vsel %vm274, %v477, -inf
    %480 = vmax.xlane.f32.xlu0 %v479
    %v481 = vpop.xlane.xlu0 %480
    %v482 = vsel %vm274, %v478, -inf
    %483 = vmax.xlane.f32.xlu0 %v482
    %v484 = vpop.xlane.xlu0 %483
    %v485 = vsub.f32 %v477, %v481
    %v486 = vsub.f32 %v478, %v484
    %v487 = vmul.f32 %v485, 1.442695
    %v488 = vpow.pop %v487
    %v489 = vmul.f32 %v486, 1.442695
    %v490 = vpow.pop %v489
    %v491 = vsel %vm274, %v488, 0.0
    %492 = vadd.xlane.f32.xlu0 %v491
    %v493 = vpop.xlane.xlu0 %492
    %v494 = vsel %vm274, %v490, 0.0
    %495 = vadd.xlane.f32.xlu0 %v494
    %v496 = vpop.xlane.xlu0 %495
    %v497 = vrcp.pop %v493
    %v498 = vrcp.pop %v496
    %v499 = vmul.f32 %v488, %v497
    %v500 = vmul.f32 %v490, %v498
    %501 = vrot.lane.b32.xlu0 %v172, 56
    %v502 = vpop.permute.xlu0 %501
    %503 = vrot.lane.b32.xlu0 %v177, 56
    %v504 = vpop.permute.xlu0 %503
    %v508 = vsel %vm274, %v499, 0
    %v511 = vsel %vm274, %v500, 0
    %513 = vmatprep.subr.mxu0 0.0
    %514 = vmatpush1.msra.mxu0 %v502
    %515 = vmatprep.subr.mxu0 0.0
    %516 = vmatpush1.msra.mxu0 %v504
    %517 = vmatprep.subr.mxu0 0.0
    %518 = vmatpush1.msra.mxu0 0.0
    %519 = vmatprep.subr.mxu0 0.0
    %520 = vmatpush1.msra.mxu0 0.0
    %521 = vmatprep.subr.mxu0 0.0
    %522 = vmatpush1.msra.mxu0 0.0
    %523 = vmatprep.subr.mxu0 0.0
    %524 = vmatpush1.msra.mxu0 0.0
    %525 = vmatprep.subr.mxu0 0.0
    %526 = vmatpush1.msra.mxu0 0.0
    %527 = vmatprep.subr.mxu0 0.0
    %528 = vmatpush1.msra.mxu0 0.0
    %529 = vmatprep.subr.mxu0 0.0
    %530 = vmatpush1.msra.mxu0 0.0
    %531 = vmatprep.subr.mxu0 0.0
    %532 = vmatpush1.msra.mxu0 0.0
    %533 = vmatprep.subr.mxu0 0.0
    %534 = vmatpush1.msra.mxu0 0.0
    %535 = vmatprep.subr.mxu0 0.0
    %536 = vmatpush1.msra.mxu0 0.0
    %537 = vmatprep.subr.mxu0 0.0
    %538 = vmatpush1.msra.mxu0 0.0
    %539 = vmatprep.subr.mxu0 0.0
    %540 = vmatpush1.msra.mxu0 0.0
    %541 = vmatprep.subr.mxu0 0.0
    %542 = vmatpush1.msra.mxu0 0.0
    %543 = vmatprep.subr.mxu0 0.0
    %544 = vmatpush1.msra.mxu0 0.0
    %545 = vmatprep.subr.mxu0 0.0
    %546 = vmatpush1.msra.mxu0 0.0
    %547 = vmatprep.subr.mxu0 0.0
    %548 = vmatpush1.msra.mxu0 0.0
    %549 = vmatprep.subr.mxu0 0.0
    %550 = vmatpush1.msra.mxu0 0.0
    %551 = vmatprep.subr.mxu0 0.0
    %552 = vmatpush1.msra.mxu0 0.0
    %553 = vmatprep.subr.mxu0 0.0
    %554 = vmatpush1.msra.mxu0 0.0
    %555 = vmatprep.subr.mxu0 0.0
    %556 = vmatpush1.msra.mxu0 0.0
    %557 = vmatprep.subr.mxu0 0.0
    %558 = vmatpush1.msra.mxu0 0.0
    %559 = vmatprep.subr.mxu0 0.0
    %560 = vmatpush1.msra.mxu0 0.0
    %561 = vmatprep.subr.mxu0 0.0
    %562 = vmatpush1.msra.mxu0 0.0
    %563 = vmatprep.subr.mxu0 0.0
    %564 = vmatpush1.msra.mxu0 0.0
    %565 = vmatprep.subr.mxu0 0.0
    %566 = vmatpush1.msra.mxu0 0.0
    %567 = vmatprep.subr.mxu0 0.0
    %568 = vmatpush1.msra.mxu0 0.0
    %569 = vmatprep.subr.mxu0 0.0
    %570 = vmatpush1.msra.mxu0 0.0
    %571 = vmatprep.subr.mxu0 0.0
    %572 = vmatpush1.msra.mxu0 0.0
    %573 = vmatprep.subr.mxu0 0.0
    %574 = vmatpush1.msra.mxu0 0.0
    %575 = vmatprep.subr.mxu0 0.0
    %576 = vmatpush1.msra.mxu0 0.0
    %577 = vmatprep.mubr.f32.mxu0 0.0
    %578 = vmatmul.mubr.f32.gmra.mrb[0].mxu0 %v508
    %v579 = vpop.f32.mrb[0].mxu0
    %v580 = vadd.f32 0.0, %v579
    %v581 = vpop.f32.mrb[0].mxu0
    %582 = vmatprep.mubr.f32.mxu0 0.0
    %583 = vmatmul.mubr.f32.gmra.mrb[0].mxu0 %v511
    %v584 = vpop.f32.mrb[0].mxu0
    %v585 = vadd.f32 0.0, %v584
    %v586 = vpop.f32.mrb[0].mxu0
    %587 = vdwg.mxu0
    %588 = vrot.lane.b32.xlu0 %v172, 112
    %v589 = vpop.permute.xlu0 %588
    %590 = vrot.lane.b32.xlu0 %v177, 112
    %v591 = vpop.permute.xlu0 %590
    %592 = vrot.lane.b32.xlu0 %v172, 80
    %v593 = vpop.permute.xlu0 %592
    %594 = vrot.lane.b32.xlu0 %v177, 80
    %v595 = vpop.permute.xlu0 %594
    %v596 = vsel %vm186, %v589, 0
    %v598 = vsel %vm186, %v591, 0
    %v600 = vsel %vm186, %v593, 0
    %v602 = vsel %vm186, %v595, 0
    %604 = vmatprep.subr.mxu0 0.0
    %605 = vmatpush1.xpose.msra.mxu0 %v600
    %606 = vmatprep.subr.mxu0 0.0
    %607 = vmatpush1.xpose.msra.mxu0 %v602
    %608 = vmatprep.subr.mxu0 0.0
    %609 = vmatpush1.xpose.msra.mxu0 0.0
    %610 = vmatprep.subr.mxu0 0.0
    %611 = vmatpush1.xpose.msra.mxu0 0.0
    %612 = vmatprep.subr.mxu0 0.0
    %613 = vmatpush1.xpose.msra.mxu0 0.0
    %614 = vmatprep.subr.mxu0 0.0
    %615 = vmatpush1.xpose.msra.mxu0 0.0
    %616 = vmatprep.subr.mxu0 0.0
    %617 = vmatpush1.xpose.msra.mxu0 0.0
    %618 = vmatprep.subr.mxu0 0.0
    %619 = vmatpush1.xpose.msra.mxu0 0.0
    %620 = vmatprep.subr.mxu0 0.0
    %621 = vmatpush1.xpose.msra.mxu0 0.0
    %622 = vmatprep.subr.mxu0 0.0
    %623 = vmatpush1.xpose.msra.mxu0 0.0
    %624 = vmatprep.subr.mxu0 0.0
    %625 = vmatpush1.xpose.msra.mxu0 0.0
    %626 = vmatprep.subr.mxu0 0.0
    %627 = vmatpush1.xpose.msra.mxu0 0.0
    %628 = vmatprep.subr.mxu0 0.0
    %629 = vmatpush1.xpose.msra.mxu0 0.0
    %630 = vmatprep.subr.mxu0 0.0
    %631 = vmatpush1.xpose.msra.mxu0 0.0
    %632 = vmatprep.subr.mxu0 0.0
    %633 = vmatpush1.xpose.msra.mxu0 0.0
    %634 = vmatprep.subr.mxu0 0.0
    %635 = vmatpush1.xpose.msra.mxu0 0.0
    %636 = vmatprep.subr.mxu0 0.0
    %637 = vmatpush1.xpose.msra.mxu0 0.0
    %638 = vmatprep.subr.mxu0 0.0
    %639 = vmatpush1.xpose.msra.mxu0 0.0
    %640 = vmatprep.subr.mxu0 0.0
    %641 = vmatpush1.xpose.msra.mxu0 0.0
    %642 = vmatprep.subr.mxu0 0.0
    %643 = vmatpush1.xpose.msra.mxu0 0.0
    %644 = vmatprep.subr.mxu0 0.0
    %645 = vmatpush1.xpose.msra.mxu0 0.0
    %646 = vmatprep.subr.mxu0 0.0
    %647 = vmatpush1.xpose.msra.mxu0 0.0
    %648 = vmatprep.subr.mxu0 0.0
    %649 = vmatpush1.xpose.msra.mxu0 0.0
    %650 = vmatprep.subr.mxu0 0.0
    %651 = vmatpush1.xpose.msra.mxu0 0.0
    %652 = vmatprep.subr.mxu0 0.0
    %653 = vmatpush1.xpose.msra.mxu0 0.0
    %654 = vmatprep.subr.mxu0 0.0
    %655 = vmatpush1.xpose.msra.mxu0 0.0
    %656 = vmatprep.subr.mxu0 0.0
    %657 = vmatpush1.xpose.msra.mxu0 0.0
    %658 = vmatprep.subr.mxu0 0.0
    %659 = vmatpush1.xpose.msra.mxu0 0.0
    %660 = vmatprep.subr.mxu0 0.0
    %661 = vmatpush1.xpose.msra.mxu0 0.0
    %662 = vmatprep.subr.mxu0 0.0
    %663 = vmatpush1.xpose.msra.mxu0 0.0
    %664 = vmatprep.subr.mxu0 0.0
    %665 = vmatpush1.xpose.msra.mxu0 0.0
    %666 = vmatprep.subr.mxu0 0.0
    %667 = vmatpush1.xpose.msra.mxu0 0.0
    %668 = vmatprep.mubr.f32.mxu0 0.0
    %669 = vmatmul.mubr.f32.gmra.mrb[0].mxu0 %v596
    %v670 = vpop.f32.mrb[0].mxu0
    %v671 = vadd.f32 0.0, %v670
    %v672 = vpop.f32.mrb[0].mxu0
    %673 = vmatprep.mubr.f32.mxu0 0.0
    %674 = vmatmul.mubr.f32.gmra.mrb[0].mxu0 %v598
    %v675 = vpop.f32.mrb[0].mxu0
    %v676 = vadd.f32 0.0, %v675
    %v677 = vpop.f32.mrb[0].mxu0
    %678 = vdwg.mxu0
    %v679 = vmul.f32 %v671, 0.35355338
    %v680 = vmul.f32 %v676, 0.35355338
    %v681 = vadd.f32 %v679, %v23
    %v682 = vadd.f32 %v680, %v24
    %v683 = vsel %vm274, %v681, -inf
    %684 = vmax.xlane.f32.xlu0 %v683
    %v685 = vpop.xlane.xlu0 %684
    %v686 = vsel %vm274, %v682, -inf
    %687 = vmax.xlane.f32.xlu0 %v686
    %v688 = vpop.xlane.xlu0 %687
    %v689 = vsub.f32 %v681, %v685
    %v690 = vsub.f32 %v682, %v688
    %v691 = vmul.f32 %v689, 1.442695
    %v692 = vpow.pop %v691
    %v693 = vmul.f32 %v690, 1.442695
    %v694 = vpow.pop %v693
    %v695 = vsel %vm274, %v692, 0.0
    %696 = vadd.xlane.f32.xlu0 %v695
    %v697 = vpop.xlane.xlu0 %696
    %v698 = vsel %vm274, %v694, 0.0
    %699 = vadd.xlane.f32.xlu0 %v698
    %v700 = vpop.xlane.xlu0 %699
    %v701 = vrcp.pop %v697
    %v702 = vrcp.pop %v700
    %v703 = vmul.f32 %v692, %v701
    %v704 = vmul.f32 %v694, %v702
    %705 = vrot.lane.b32.xlu0 %v172, 48
    %v706 = vpop.permute.xlu0 %705
    %707 = vrot.lane.b32.xlu0 %v177, 48
    %v708 = vpop.permute.xlu0 %707
    %v712 = vsel %vm274, %v703, 0
    %v715 = vsel %vm274, %v704, 0
    %717 = vmatprep.subr.mxu0 0.0
    %718 = vmatpush1.msra.mxu0 %v706
    %719 = vmatprep.subr.mxu0 0.0
    %720 = vmatpush1.msra.mxu0 %v708
    %721 = vmatprep.subr.mxu0 0.0
    %722 = vmatpush1.msra.mxu0 0.0
    %723 = vmatprep.subr.mxu0 0.0
    %724 = vmatpush1.msra.mxu0 0.0
    %725 = vmatprep.subr.mxu0 0.0
    %726 = vmatpush1.msra.mxu0 0.0
    %727 = vmatprep.subr.mxu0 0.0
    %728 = vmatpush1.msra.mxu0 0.0
    %729 = vmatprep.subr.mxu0 0.0
    %730 = vmatpush1.msra.mxu0 0.0
    %731 = vmatprep.subr.mxu0 0.0
    %732 = vmatpush1.msra.mxu0 0.0
    %733 = vmatprep.subr.mxu0 0.0
    %734 = vmatpush1.msra.mxu0 0.0
    %735 = vmatprep.subr.mxu0 0.0
    %736 = vmatpush1.msra.mxu0 0.0
    %737 = vmatprep.subr.mxu0 0.0
    %738 = vmatpush1.msra.mxu0 0.0
    %739 = vmatprep.subr.mxu0 0.0
    %740 = vmatpush1.msra.mxu0 0.0
    %741 = vmatprep.subr.mxu0 0.0
    %742 = vmatpush1.msra.mxu0 0.0
    %743 = vmatprep.subr.mxu0 0.0
    %744 = vmatpush1.msra.mxu0 0.0
    %745 = vmatprep.subr.mxu0 0.0
    %746 = vmatpush1.msra.mxu0 0.0
    %747 = vmatprep.subr.mxu0 0.0
    %748 = vmatpush1.msra.mxu0 0.0
    %749 = vmatprep.subr.mxu0 0.0
    %750 = vmatpush1.msra.mxu0 0.0
    %751 = vmatprep.subr.mxu0 0.0
    %752 = vmatpush1.msra.mxu0 0.0
    %753 = vmatprep.subr.mxu0 0.0
    %754 = vmatpush1.msra.mxu0 0.0
    %755 = vmatprep.subr.mxu0 0.0
    %756 = vmatpush1.msra.mxu0 0.0
    %757 = vmatprep.subr.mxu0 0.0
    %758 = vmatpush1.msra.mxu0 0.0
    %759 = vmatprep.subr.mxu0 0.0
    %760 = vmatpush1.msra.mxu0 0.0
    %761 = vmatprep.subr.mxu0 0.0
    %762 = vmatpush1.msra.mxu0 0.0
    %763 = vmatprep.subr.mxu0 0.0
    %764 = vmatpush1.msra.mxu0 0.0
    %765 = vmatprep.subr.mxu0 0.0
    %766 = vmatpush1.msra.mxu0 0.0
    %767 = vmatprep.subr.mxu0 0.0
    %768 = vmatpush1.msra.mxu0 0.0
    %769 = vmatprep.subr.mxu0 0.0
    %770 = vmatpush1.msra.mxu0 0.0
    %771 = vmatprep.subr.mxu0 0.0
    %772 = vmatpush1.msra.mxu0 0.0
    %773 = vmatprep.subr.mxu0 0.0
    %774 = vmatpush1.msra.mxu0 0.0
    %775 = vmatprep.subr.mxu0 0.0
    %776 = vmatpush1.msra.mxu0 0.0
    %777 = vmatprep.subr.mxu0 0.0
    %778 = vmatpush1.msra.mxu0 0.0
    %779 = vmatprep.subr.mxu0 0.0
    %780 = vmatpush1.msra.mxu0 0.0
    %781 = vmatprep.mubr.f32.mxu0 0.0
    %782 = vmatmul.mubr.f32.gmra.mrb[0].mxu0 %v712
    %v783 = vpop.f32.mrb[0].mxu0
    %v784 = vadd.f32 0.0, %v783
    %v785 = vpop.f32.mrb[0].mxu0
    %786 = vmatprep.mubr.f32.mxu0 0.0
    %787 = vmatmul.mubr.f32.gmra.mrb[0].mxu0 %v715
    %v788 = vpop.f32.mrb[0].mxu0
    %v789 = vadd.f32 0.0, %v788
    %v790 = vpop.f32.mrb[0].mxu0
    %791 = vdwg.mxu0
    %792 = vrot.lane.b32.xlu0 %v172, 104
    %v793 = vpop.permute.xlu0 %792
    %794 = vrot.lane.b32.xlu0 %v177, 104
    %v795 = vpop.permute.xlu0 %794
    %796 = vrot.lane.b32.xlu0 %v172, 72
    %v797 = vpop.permute.xlu0 %796
    %798 = vrot.lane.b32.xlu0 %v177, 72
    %v799 = vpop.permute.xlu0 %798
    %v800 = vsel %vm186, %v793, 0
    %v802 = vsel %vm186, %v795, 0
    %v804 = vsel %vm186, %v797, 0
    %v806 = vsel %vm186, %v799, 0
    %808 = vmatprep.subr.mxu0 0.0
    %809 = vmatpush1.xpose.msra.mxu0 %v804
    %810 = vmatprep.subr.mxu0 0.0
    %811 = vmatpush1.xpose.msra.mxu0 %v806
    %812 = vmatprep.subr.mxu0 0.0
    %813 = vmatpush1.xpose.msra.mxu0 0.0
    %814 = vmatprep.subr.mxu0 0.0
    %815 = vmatpush1.xpose.msra.mxu0 0.0
    %816 = vmatprep.subr.mxu0 0.0
    %817 = vmatpush1.xpose.msra.mxu0 0.0
    %818 = vmatprep.subr.mxu0 0.0
    %819 = vmatpush1.xpose.msra.mxu0 0.0
    %820 = vmatprep.subr.mxu0 0.0
    %821 = vmatpush1.xpose.msra.mxu0 0.0
    %822 = vmatprep.subr.mxu0 0.0
    %823 = vmatpush1.xpose.msra.mxu0 0.0
    %824 = vmatprep.subr.mxu0 0.0
    %825 = vmatpush1.xpose.msra.mxu0 0.0
    %826 = vmatprep.subr.mxu0 0.0
    %827 = vmatpush1.xpose.msra.mxu0 0.0
    %828 = vmatprep.subr.mxu0 0.0
    %829 = vmatpush1.xpose.msra.mxu0 0.0
    %830 = vmatprep.subr.mxu0 0.0
    %831 = vmatpush1.xpose.msra.mxu0 0.0
    %832 = vmatprep.subr.mxu0 0.0
    %833 = vmatpush1.xpose.msra.mxu0 0.0
    %834 = vmatprep.subr.mxu0 0.0
    %835 = vmatpush1.xpose.msra.mxu0 0.0
    %836 = vmatprep.subr.mxu0 0.0
    %837 = vmatpush1.xpose.msra.mxu0 0.0
    %838 = vmatprep.subr.mxu0 0.0
    %839 = vmatpush1.xpose.msra.mxu0 0.0
    %840 = vmatprep.subr.mxu0 0.0
    %841 = vmatpush1.xpose.msra.mxu0 0.0
    %842 = vmatprep.subr.mxu0 0.0
    %843 = vmatpush1.xpose.msra.mxu0 0.0
    %844 = vmatprep.subr.mxu0 0.0
    %845 = vmatpush1.xpose.msra.mxu0 0.0
    %846 = vmatprep.subr.mxu0 0.0
    %847 = vmatpush1.xpose.msra.mxu0 0.0
    %848 = vmatprep.subr.mxu0 0.0
    %849 = vmatpush1.xpose.msra.mxu0 0.0
    %850 = vmatprep.subr.mxu0 0.0
    %851 = vmatpush1.xpose.msra.mxu0 0.0
    %852 = vmatprep.subr.mxu0 0.0
    %853 = vmatpush1.xpose.msra.mxu0 0.0
    %854 = vmatprep.subr.mxu0 0.0
    %855 = vmatpush1.xpose.msra.mxu0 0.0
    %856 = vmatprep.subr.mxu0 0.0
    %857 = vmatpush1.xpose.msra.mxu0 0.0
    %858 = vmatprep.subr.mxu0 0.0
    %859 = vmatpush1.xpose.msra.mxu0 0.0
    %860 = vmatprep.subr.mxu0 0.0
    %861 = vmatpush1.xpose.msra.mxu0 0.0
    %862 = vmatprep.subr.mxu0 0.0
    %863 = vmatpush1.xpose.msra.mxu0 0.0
    %864 = vmatprep.subr.mxu0 0.0
    %865 = vmatpush1.xpose.msra.mxu0 0.0
    %866 = vmatprep.subr.mxu0 0.0
    %867 = vmatpush1.xpose.msra.mxu0 0.0
    %868 = vmatprep.subr.mxu0 0.0
    %869 = vmatpush1.xpose.msra.mxu0 0.0
    %870 = vmatprep.subr.mxu0 0.0
    %871 = vmatpush1.xpose.msra.mxu0 0.0
    %872 = vmatprep.mubr.f32.mxu0 0.0
    %873 = vmatmul.mubr.f32.gmra.mrb[0].mxu0 %v800
    %v874 = vpop.f32.mrb[0].mxu0
    %v875 = vadd.f32 0.0, %v874
    %v876 = vpop.f32.mrb[0].mxu0
    %877 = vmatprep.mubr.f32.mxu0 0.0
    %878 = vmatmul.mubr.f32.gmra.mrb[0].mxu0 %v802
    %v879 = vpop.f32.mrb[0].mxu0
    %v880 = vadd.f32 0.0, %v879
    %v881 = vpop.f32.mrb[0].mxu0
    %882 = vdwg.mxu0
    %v883 = vmul.f32 %v875, 0.35355338
    %v884 = vmul.f32 %v880, 0.35355338
    %v885 = vadd.f32 %v883, %v23
    %v886 = vadd.f32 %v884, %v24
    %v887 = vsel %vm274, %v885, -inf
    %888 = vmax.xlane.f32.xlu0 %v887
    %v889 = vpop.xlane.xlu0 %888
    %v890 = vsel %vm274, %v886, -inf
    %891 = vmax.xlane.f32.xlu0 %v890
    %v892 = vpop.xlane.xlu0 %891
    %v893 = vsub.f32 %v885, %v889
    %v894 = vsub.f32 %v886, %v892
    %v895 = vmul.f32 %v893, 1.442695
    %v896 = vpow.pop %v895
    %v897 = vmul.f32 %v894, 1.442695
    %v898 = vpow.pop %v897
    %v899 = vsel %vm274, %v896, 0.0
    %900 = vadd.xlane.f32.xlu0 %v899
    %v901 = vpop.xlane.xlu0 %900
    %v902 = vsel %vm274, %v898, 0.0
    %903 = vadd.xlane.f32.xlu0 %v902
    %v904 = vpop.xlane.xlu0 %903
    %v905 = vrcp.pop %v901
    %v906 = vrcp.pop %v904
    %v907 = vmul.f32 %v896, %v905
    %v908 = vmul.f32 %v898, %v906
    %909 = vrot.lane.b32.xlu0 %v172, 40
    %v910 = vpop.permute.xlu0 %909
    %911 = vrot.lane.b32.xlu0 %v177, 40
    %v912 = vpop.permute.xlu0 %911
    %v916 = vsel %vm274, %v907, 0
    %v919 = vsel %vm274, %v908, 0
    %921 = vmatprep.subr.mxu0 0.0
    %922 = vmatpush1.msra.mxu0 %v910
    %923 = vmatprep.subr.mxu0 0.0
    %924 = vmatpush1.msra.mxu0 %v912
    %925 = vmatprep.subr.mxu0 0.0
    %926 = vmatpush1.msra.mxu0 0.0
    %927 = vmatprep.subr.mxu0 0.0
    %928 = vmatpush1.msra.mxu0 0.0
    %929 = vmatprep.subr.mxu0 0.0
    %930 = vmatpush1.msra.mxu0 0.0
    %931 = vmatprep.subr.mxu0 0.0
    %932 = vmatpush1.msra.mxu0 0.0
    %933 = vmatprep.subr.mxu0 0.0
    %934 = vmatpush1.msra.mxu0 0.0
    %935 = vmatprep.subr.mxu0 0.0
    %936 = vmatpush1.msra.mxu0 0.0
    %937 = vmatprep.subr.mxu0 0.0
    %938 = vmatpush1.msra.mxu0 0.0
    %939 = vmatprep.subr.mxu0 0.0
    %940 = vmatpush1.msra.mxu0 0.0
    %941 = vmatprep.subr.mxu0 0.0
    %942 = vmatpush1.msra.mxu0 0.0
    %943 = vmatprep.subr.mxu0 0.0
    %944 = vmatpush1.msra.mxu0 0.0
    %945 = vmatprep.subr.mxu0 0.0
    %946 = vmatpush1.msra.mxu0 0.0
    %947 = vmatprep.subr.mxu0 0.0
    %948 = vmatpush1.msra.mxu0 0.0
    %949 = vmatprep.subr.mxu0 0.0
    %950 = vmatpush1.msra.mxu0 0.0
    %951 = vmatprep.subr.mxu0 0.0
    %952 = vmatpush1.msra.mxu0 0.0
    %953 = vmatprep.subr.mxu0 0.0
    %954 = vmatpush1.msra.mxu0 0.0
    %955 = vmatprep.subr.mxu0 0.0
    %956 = vmatpush1.msra.mxu0 0.0
    %957 = vmatprep.subr.mxu0 0.0
    %958 = vmatpush1.msra.mxu0 0.0
    %959 = vmatprep.subr.mxu0 0.0
    %960 = vmatpush1.msra.mxu0 0.0
    %961 = vmatprep.subr.mxu0 0.0
    %962 = vmatpush1.msra.mxu0 0.0
    %963 = vmatprep.subr.mxu0 0.0
    %964 = vmatpush1.msra.mxu0 0.0
    %965 = vmatprep.subr.mxu0 0.0
    %966 = vmatpush1.msra.mxu0 0.0
    %967 = vmatprep.subr.mxu0 0.0
    %968 = vmatpush1.msra.mxu0 0.0
    %969 = vmatprep.subr.mxu0 0.0
    %970 = vmatpush1.msra.mxu0 0.0
    %971 = vmatprep.subr.mxu0 0.0
    %972 = vmatpush1.msra.mxu0 0.0
    %973 = vmatprep.subr.mxu0 0.0
    %974 = vmatpush1.msra.mxu0 0.0
    %975 = vmatprep.subr.mxu0 0.0
    %976 = vmatpush1.msra.mxu0 0.0
    %977 = vmatprep.subr.mxu0 0.0
    %978 = vmatpush1.msra.mxu0 0.0
    %979 = vmatprep.subr.mxu0 0.0
    %980 = vmatpush1.msra.mxu0 0.0
    %981 = vmatprep.subr.mxu0 0.0
    %982 = vmatpush1.msra.mxu0 0.0
    %983 = vmatprep.subr.mxu0 0.0
    %984 = vmatpush1.msra.mxu0 0.0
    %985 = vmatprep.mubr.f32.mxu0 0.0
    %986 = vmatmul.mubr.f32.gmra.mrb[0].mxu0 %v916
    %v987 = vpop.f32.mrb[0].mxu0
    %v988 = vadd.f32 0.0, %v987
    %v989 = vpop.f32.mrb[0].mxu0
    %990 = vmatprep.mubr.f32.mxu0 0.0
    %991 = vmatmul.mubr.f32.gmra.mrb[0].mxu0 %v919
    %v992 = vpop.f32.mrb[0].mxu0
    %v993 = vadd.f32 0.0, %v992
    %v994 = vpop.f32.mrb[0].mxu0
    %995 = vdwg.mxu0
    %998 = vrot.lane.b32.xlu0 %v580, 8
    %v999 = vpop.permute.xlu0 %998
    %1000 = vrot.lane.b32.xlu0 %v585, 8
    %v1001 = vpop.permute.xlu0 %1000
    %1006 = vrot.lane.b32.xlu0 %v784, 16
    %v1007 = vpop.permute.xlu0 %1006
    %1008 = vrot.lane.b32.xlu0 %v789, 16
    %v1009 = vpop.permute.xlu0 %1008
    %1014 = vrot.lane.b32.xlu0 %v988, 24
    %v1015 = vpop.permute.xlu0 %1014
    %1016 = vrot.lane.b32.xlu0 %v993, 24
    %v1017 = vpop.permute.xlu0 %1016
    %v1020 = vsel %vm186, %v376, %v999
    %v1021 = vsel %vm186, %v381, %v1001
    %v1022 = vsel %vm274, %v1020, %v1007
    %v1023 = vsel %vm274, %v1021, %v1009
    %vm1024 = vcmask 195584
    %v1025 = vsel %vm1024, %v1022, %v1015
    %v1026 = vsel %vm1024, %v1023, %v1017
    %v1027 = vlaneseq
    %v1028 = vshrl.u32 %v1027, 7
    %v1029 = vsub.s32 2, %v1028
    %v1030 = vrot.slane %v34, %v1029
    %1035 = vrot.lane.b32.xlu0 %v35, 32
    %v1036 = vpop.permute.xlu0 %1035
    %1037 = vrot.lane.b32.xlu0 %v37, 32
    %v1038 = vpop.permute.xlu0 %1037
    %1039 = vrot.lane.b32.xlu0 %v39, 32
    %v1040 = vpop.permute.xlu0 %1039
    %1041 = vrot.lane.b32.xlu0 %v41, 32
    %v1042 = vpop.permute.xlu0 %1041
    %v1048 = vsel %vm59, %v1025, 0
    %v1051 = vsel %vm59, %v1026, 0
    %1053 = vmatprep.subr.mxu0 0.0
    %1054 = vmatpush1.msra.mxu0 %v1036
    %1055 = vmatprep.subr.mxu0 0.0
    %1056 = vmatpush1.msra.mxu0 %v1038
    %1057 = vmatprep.subr.mxu0 0.0
    %1058 = vmatpush1.msra.mxu0 %v1040
    %1059 = vmatprep.subr.mxu0 0.0
    %1060 = vmatpush1.msra.mxu0 %v1042
    %1061 = vmatprep.subr.mxu0 0.0
    %1062 = vmatpush1.msra.mxu0 0.0
    %1063 = vmatprep.subr.mxu0 0.0
    %1064 = vmatpush1.msra.mxu0 0.0
    %1065 = vmatprep.subr.mxu0 0.0
    %1066 = vmatpush1.msra.mxu0 0.0
    %1067 = vmatprep.subr.mxu0 0.0
    %1068 = vmatpush1.msra.mxu0 0.0
    %1069 = vmatprep.subr.mxu0 0.0
    %1070 = vmatpush1.msra.mxu0 0.0
    %1071 = vmatprep.subr.mxu0 0.0
    %1072 = vmatpush1.msra.mxu0 0.0
    %1073 = vmatprep.subr.mxu0 0.0
    %1074 = vmatpush1.msra.mxu0 0.0
    %1075 = vmatprep.subr.mxu0 0.0
    %1076 = vmatpush1.msra.mxu0 0.0
    %1077 = vmatprep.subr.mxu0 0.0
    %1078 = vmatpush1.msra.mxu0 0.0
    %1079 = vmatprep.subr.mxu0 0.0
    %1080 = vmatpush1.msra.mxu0 0.0
    %1081 = vmatprep.subr.mxu0 0.0
    %1082 = vmatpush1.msra.mxu0 0.0
    %1083 = vmatprep.subr.mxu0 0.0
    %1084 = vmatpush1.msra.mxu0 0.0
    %1085 = vmatprep.subr.mxu0 0.0
    %1086 = vmatpush1.msra.mxu0 0.0
    %1087 = vmatprep.subr.mxu0 0.0
    %1088 = vmatpush1.msra.mxu0 0.0
    %1089 = vmatprep.subr.mxu0 0.0
    %1090 = vmatpush1.msra.mxu0 0.0
    %1091 = vmatprep.subr.mxu0 0.0
    %1092 = vmatpush1.msra.mxu0 0.0
    %1093 = vmatprep.subr.mxu0 0.0
    %1094 = vmatpush1.msra.mxu0 0.0
    %1095 = vmatprep.subr.mxu0 0.0
    %1096 = vmatpush1.msra.mxu0 0.0
    %1097 = vmatprep.subr.mxu0 0.0
    %1098 = vmatpush1.msra.mxu0 0.0
    %1099 = vmatprep.subr.mxu0 0.0
    %1100 = vmatpush1.msra.mxu0 0.0
    %1101 = vmatprep.subr.mxu0 0.0
    %1102 = vmatpush1.msra.mxu0 0.0
    %1103 = vmatprep.subr.mxu0 0.0
    %1104 = vmatpush1.msra.mxu0 0.0
    %1105 = vmatprep.subr.mxu0 0.0
    %1106 = vmatpush1.msra.mxu0 0.0
    %1107 = vmatprep.subr.mxu0 0.0
    %1108 = vmatpush1.msra.mxu0 0.0
    %1109 = vmatprep.subr.mxu0 0.0
    %1110 = vmatpush1.msra.mxu0 0.0
    %1111 = vmatprep.subr.mxu0 0.0
    %1112 = vmatpush1.msra.mxu0 0.0
    %1113 = vmatprep.subr.mxu0 0.0
    %1114 = vmatpush1.msra.mxu0 0.0
    %1115 = vmatprep.subr.mxu0 0.0
    %1116 = vmatpush1.msra.mxu0 0.0
    %1117 = vmatprep.mubr.f32.mxu0 0.0
    %1118 = vmatmul.mubr.f32.gmra.mrb[0].mxu0 %v1048
    %v1119 = vpop.f32.mrb[0].mxu0
    %v1120 = vadd.f32 %v1030, %v1119
    %v1121 = vpop.f32.mrb[0].mxu0
    %1122 = vmatprep.mubr.f32.mxu0 0.0
    %1123 = vmatmul.mubr.f32.gmra.mrb[0].mxu0 %v1051
    %v1124 = vpop.f32.mrb[0].mxu0
    %v1125 = vadd.f32 %v1030, %v1124
    %v1126 = vpop.f32.mrb[0].mxu0
    %1127 = vdwg.mxu0
    %v1128 = vadd.f32 %v1120, %v21
    %v1129 = vadd.f32 %v1125, %v22
    %v1130 = vsel %vm59, %v1128, 0.0
    %1131 = vadd.xlane.f32.xlu0 %v1130
    %v1132 = vpop.xlane.xlu0 %1131
    %v1133 = vsel %vm59, %v1129, 0.0
    %1134 = vadd.xlane.f32.xlu0 %v1133
    %v1135 = vpop.xlane.xlu0 %1134
    %v1136 = vmul.f32 %v1132, %v66
    %v1137 = vmul.f32 %v1135, %v66
    %v1138 = vsub.f32 %v1128, %v1136
    %v1139 = vsub.f32 %v1129, %v1137
    %v1140 = vmul.f32 %v1138, %v1138
    %v1141 = vmul.f32 %v1139, %v1139
    %v1142 = vsel %vm59, %v1140, 0.0
    %1143 = vadd.xlane.f32.xlu0 %v1142
    %v1144 = vpop.xlane.xlu0 %1143
    %v1145 = vsel %vm59, %v1141, 0.0
    %1146 = vadd.xlane.f32.xlu0 %v1145
    %v1147 = vpop.xlane.xlu0 %1146
    %v1148 = vmul.f32 %v1144, %v66
    %v1149 = vmul.f32 %v1147, %v66
    %v1150 = vadd.f32 %v1148, 1e-05
    %v1151 = vadd.f32 %v1149, 1e-05
    %v1152 = vrsqrt.pop %v1150
    %v1153 = vrsqrt.pop %v1151
    %v1154 = vmul.f32 %v1138, %v1152
    %v1155 = vmul.f32 %v1139, %v1153
    %v1156 = vlaneseq
    %v1157 = vshrl.u32 %v1156, 7
    %v1158 = vsub.s32 3, %v1157
    %v1159 = vrot.slane %v34, %v1158
    %v1160 = vmul.f32 %v1154, %v1159
    %v1161 = vmul.f32 %v1155, %v1159
    %v1162 = vlaneseq
    %v1163 = vshrl.u32 %v1162, 7
    %v1164 = vsub.s32 4, %v1163
    %v1165 = vrot.slane %v34, %v1164
    %v1166 = vadd.f32 %v1160, %v1165
    %v1167 = vadd.f32 %v1161, %v1165
    %v1168 = vlaneseq
    %v1169 = vshrl.u32 %v1168, 7
    %v1170 = vsub.s32 6, %v1169
    %v1171 = vrot.slane %v34, %v1170
    %v1173 = vsel %vm59, %v1166, 0
    %v1176 = vsel %vm59, %v1167, 0
    %1178 = vmatprep.subr.mxu0 0.0
    %1179 = vmatpush1.msra.mxu0 %v36
    %1180 = vmatprep.subr.mxu0 0.0
    %1181 = vmatpush1.msra.mxu0 %v38
    %1182 = vmatprep.subr.mxu0 0.0
    %1183 = vmatpush1.msra.mxu0 %v40
    %1184 = vmatprep.subr.mxu0 0.0
    %1185 = vmatpush1.msra.mxu0 %v42
    %1186 = vmatprep.subr.mxu0 0.0
    %1187 = vmatpush1.msra.mxu0 0.0
    %1188 = vmatprep.subr.mxu0 0.0
    %1189 = vmatpush1.msra.mxu0 0.0
    %1190 = vmatprep.subr.mxu0 0.0
    %1191 = vmatpush1.msra.mxu0 0.0
    %1192 = vmatprep.subr.mxu0 0.0
    %1193 = vmatpush1.msra.mxu0 0.0
    %1194 = vmatprep.subr.mxu0 0.0
    %1195 = vmatpush1.msra.mxu0 0.0
    %1196 = vmatprep.subr.mxu0 0.0
    %1197 = vmatpush1.msra.mxu0 0.0
    %1198 = vmatprep.subr.mxu0 0.0
    %1199 = vmatpush1.msra.mxu0 0.0
    %1200 = vmatprep.subr.mxu0 0.0
    %1201 = vmatpush1.msra.mxu0 0.0
    %1202 = vmatprep.subr.mxu0 0.0
    %1203 = vmatpush1.msra.mxu0 0.0
    %1204 = vmatprep.subr.mxu0 0.0
    %1205 = vmatpush1.msra.mxu0 0.0
    %1206 = vmatprep.subr.mxu0 0.0
    %1207 = vmatpush1.msra.mxu0 0.0
    %1208 = vmatprep.subr.mxu0 0.0
    %1209 = vmatpush1.msra.mxu0 0.0
    %1210 = vmatprep.subr.mxu0 0.0
    %1211 = vmatpush1.msra.mxu0 0.0
    %1212 = vmatprep.subr.mxu0 0.0
    %1213 = vmatpush1.msra.mxu0 0.0
    %1214 = vmatprep.subr.mxu0 0.0
    %1215 = vmatpush1.msra.mxu0 0.0
    %1216 = vmatprep.subr.mxu0 0.0
    %1217 = vmatpush1.msra.mxu0 0.0
    %1218 = vmatprep.subr.mxu0 0.0
    %1219 = vmatpush1.msra.mxu0 0.0
    %1220 = vmatprep.subr.mxu0 0.0
    %1221 = vmatpush1.msra.mxu0 0.0
    %1222 = vmatprep.subr.mxu0 0.0
    %1223 = vmatpush1.msra.mxu0 0.0
    %1224 = vmatprep.subr.mxu0 0.0
    %1225 = vmatpush1.msra.mxu0 0.0
    %1226 = vmatprep.subr.mxu0 0.0
    %1227 = vmatpush1.msra.mxu0 0.0
    %1228 = vmatprep.subr.mxu0 0.0
    %1229 = vmatpush1.msra.mxu0 0.0
    %1230 = vmatprep.subr.mxu0 0.0
    %1231 = vmatpush1.msra.mxu0 0.0
    %1232 = vmatprep.subr.mxu0 0.0
    %1233 = vmatpush1.msra.mxu0 0.0
    %1234 = vmatprep.subr.mxu0 0.0
    %1235 = vmatpush1.msra.mxu0 0.0
    %1236 = vmatprep.subr.mxu0 0.0
    %1237 = vmatpush1.msra.mxu0 0.0
    %1238 = vmatprep.subr.mxu0 0.0
    %1239 = vmatpush1.msra.mxu0 0.0
    %1240 = vmatprep.subr.mxu0 0.0
    %1241 = vmatpush1.msra.mxu0 0.0
    %1242 = vmatprep.mubr.f32.mxu0 0.0
    %1243 = vmatmul.mubr.f32.gmra.mrb[0].mxu0 %v1173
    %v1244 = vpop.f32.mrb[0].mxu0
    %v1245 = vadd.f32 %v1171, %v1244
    %v1246 = vpop.f32.mrb[0].mxu0
    %1247 = vmatprep.mubr.f32.mxu0 0.0
    %1248 = vmatmul.mubr.f32.gmra.mrb[0].mxu0 %v1176
    %v1249 = vpop.f32.mrb[0].mxu0
    %v1250 = vadd.f32 %v1171, %v1249
    %v1251 = vpop.f32.mrb[0].mxu0
    %1252 = vdwg.mxu0
    %v1253 = vmul.f32 %v1245, 0.5
    %v1254 = vmul.f32 %v1250, 0.5
    %v1255 = vmul.f32 %v1245, 0.044715
    %v1256 = vmul.f32 %v1250, 0.044715
    %v1257 = vmul.f32 %v1255, %v1245
    %v1258 = vmul.f32 %v1256, %v1250
    %v1259 = vmul.f32 %v1257, %v1245
    %v1260 = vmul.f32 %v1258, %v1250
    %v1261 = vadd.f32 %v1245, %v1259
    %v1262 = vadd.f32 %v1250, %v1260
    %v1263 = vmul.f32 %v1261, 0.7978846
    %v1264 = vmul.f32 %v1262, 0.7978846
    %v1265 = vtanh.pop %v1263
    %v1266 = vtanh.pop %v1264
    %v1267 = vadd.f32 %v1265, 1.0
    %v1268 = vadd.f32 %v1266, 1.0
    %v1269 = vmul.f32 %v1253, %v1267
    %v1270 = vmul.f32 %v1254, %v1268
    %v1271 = vlaneseq
    %v1272 = vshrl.u32 %v1271, 7
    %v1273 = vsub.s32 5, %v1272
    %v1274 = vrot.slane %v34, %v1273
    %1275 = vmatprep.subr.mxu0 0.0
    %1276 = vmatpush1.msra.mxu0 %v43
    %1277 = vmatprep.subr.mxu0 0.0
    %1278 = vmatpush1.msra.mxu0 %v44
    %1279 = vmatprep.subr.mxu0 0.0
    %1280 = vmatpush1.msra.mxu0 %v45
    %1281 = vmatprep.subr.mxu0 0.0
    %1282 = vmatpush1.msra.mxu0 %v46
    %1283 = vmatprep.subr.mxu0 0.0
    %1284 = vmatpush1.msra.mxu0 %v47
    %1285 = vmatprep.subr.mxu0 0.0
    %1286 = vmatpush1.msra.mxu0 %v48
    %1287 = vmatprep.subr.mxu0 0.0
    %1288 = vmatpush1.msra.mxu0 %v49
    %1289 = vmatprep.subr.mxu0 0.0
    %1290 = vmatpush1.msra.mxu0 %v50
    %1291 = vmatprep.subr.mxu0 0.0
    %1292 = vmatpush1.msra.mxu0 %v51
    %1293 = vmatprep.subr.mxu0 0.0
    %1294 = vmatpush1.msra.mxu0 %v52
    %1295 = vmatprep.subr.mxu0 0.0
    %1296 = vmatpush1.msra.mxu0 %v53
    %1297 = vmatprep.subr.mxu0 0.0
    %1298 = vmatpush1.msra.mxu0 %v54
    %1299 = vmatprep.subr.mxu0 0.0
    %1300 = vmatpush1.msra.mxu0 %v55
    %1301 = vmatprep.subr.mxu0 0.0
    %1302 = vmatpush1.msra.mxu0 %v56
    %1303 = vmatprep.subr.mxu0 0.0
    %1304 = vmatpush1.msra.mxu0 %v57
    %1305 = vmatprep.subr.mxu0 0.0
    %1306 = vmatpush1.msra.mxu0 %v58
    %1307 = vmatprep.subr.mxu0 0.0
    %1308 = vmatpush1.msra.mxu0 0.0
    %1309 = vmatprep.subr.mxu0 0.0
    %1310 = vmatpush1.msra.mxu0 0.0
    %1311 = vmatprep.subr.mxu0 0.0
    %1312 = vmatpush1.msra.mxu0 0.0
    %1313 = vmatprep.subr.mxu0 0.0
    %1314 = vmatpush1.msra.mxu0 0.0
    %1315 = vmatprep.subr.mxu0 0.0
    %1316 = vmatpush1.msra.mxu0 0.0
    %1317 = vmatprep.subr.mxu0 0.0
    %1318 = vmatpush1.msra.mxu0 0.0
    %1319 = vmatprep.subr.mxu0 0.0
    %1320 = vmatpush1.msra.mxu0 0.0
    %1321 = vmatprep.subr.mxu0 0.0
    %1322 = vmatpush1.msra.mxu0 0.0
    %1323 = vmatprep.subr.mxu0 0.0
    %1324 = vmatpush1.msra.mxu0 0.0
    %1325 = vmatprep.subr.mxu0 0.0
    %1326 = vmatpush1.msra.mxu0 0.0
    %1327 = vmatprep.subr.mxu0 0.0
    %1328 = vmatpush1.msra.mxu0 0.0
    %1329 = vmatprep.subr.mxu0 0.0
    %1330 = vmatpush1.msra.mxu0 0.0
    %1331 = vmatprep.subr.mxu0 0.0
    %1332 = vmatpush1.msra.mxu0 0.0
    %1333 = vmatprep.subr.mxu0 0.0
    %1334 = vmatpush1.msra.mxu0 0.0
    %1335 = vmatprep.subr.mxu0 0.0
    %1336 = vmatpush1.msra.mxu0 0.0
    %1337 = vmatprep.subr.mxu0 0.0
    %1338 = vmatpush1.msra.mxu0 0.0
    %1339 = vmatprep.mubr.f32.mxu0 0.0
    %1340 = vmatmul.mubr.f32.gmra.mrb[0].mxu0 %v1269
    %v1341 = vpop.f32.mrb[0].mxu0
    %v1342 = vadd.f32 %v1274, %v1341
    %v1343 = vpop.f32.mrb[0].mxu0
    %1344 = vmatprep.mubr.f32.mxu0 0.0
    %1345 = vmatmul.mubr.f32.gmra.mrb[0].mxu0 %v1270
    %v1346 = vpop.f32.mrb[0].mxu0
    %v1347 = vadd.f32 %v1274, %v1346
    %v1348 = vpop.f32.mrb[0].mxu0
    %1349 = vdwg.mxu0
    %v1350 = vadd.f32 %v1342, %v1128
    %v1351 = vadd.f32 %v1347, %v1129
    %s1352 = scalar_lea.vmem %s1, 8
    %v1353 = vld [vmem:[%s1352] sm:$0x7f]
    %s1354 = scalar_lea.vmem %s2, 64
    %v1355 = vld [vmem:[%s1354] sm:$0xff]
    %v1356 = vld [vmem:[%s1354 + $0x8] sm:$0xff]
    %v1357 = vld [vmem:[%s1354 + $0x10] sm:$0xff]
    %v1358 = vld [vmem:[%s1354 + $0x18] sm:$0xff]
    %v1359 = vld [vmem:[%s1354 + $0x20] sm:$0xff]
    %v1360 = vld [vmem:[%s1354 + $0x28] sm:$0xff]
    %v1361 = vld [vmem:[%s1354 + $0x30] sm:$0xff]
    %v1362 = vld [vmem:[%s1354 + $0x38] sm:$0xff]
    %s1363 = scalar_lea.vmem %s3, 128
    %v1364 = vld [vmem:[%s1363] sm:$0xff]
    %v1365 = vld [vmem:[%s1363 + $0x8] sm:$0xff]
    %v1366 = vld [vmem:[%s1363 + $0x10] sm:$0xff]
    %v1367 = vld [vmem:[%s1363 + $0x18] sm:$0xff]
    %v1368 = vld [vmem:[%s1363 + $0x20] sm:$0xff]
    %v1369 = vld [vmem:[%s1363 + $0x28] sm:$0xff]
    %v1370 = vld [vmem:[%s1363 + $0x30] sm:$0xff]
    %v1371 = vld [vmem:[%s1363 + $0x38] sm:$0xff]
    %v1372 = vld [vmem:[%s1363 + $0x40] sm:$0xff]
    %v1373 = vld [vmem:[%s1363 + $0x48] sm:$0xff]
    %v1374 = vld [vmem:[%s1363 + $0x50] sm:$0xff]
    %v1375 = vld [vmem:[%s1363 + $0x58] sm:$0xff]
    %v1376 = vld [vmem:[%s1363 + $0x60] sm:$0xff]
    %v1377 = vld [vmem:[%s1363 + $0x68] sm:$0xff]
    %v1378 = vld [vmem:[%s1363 + $0x70] sm:$0xff]
    %v1379 = vld [vmem:[%s1363 + $0x78] sm:$0xff]
    %v1380 = vsel %vm59, %v1350, 0.0
    %1381 = vadd.xlane.f32.xlu0 %v1380
    %v1382 = vpop.xlane.xlu0 %1381
    %v1383 = vsel %vm59, %v1351, 0.0
    %1384 = vadd.xlane.f32.xlu0 %v1383
    %v1385 = vpop.xlane.xlu0 %1384
    %v1386 = vmul.f32 %v1382, %v66
    %v1387 = vmul.f32 %v1385, %v66
    %v1388 = vsub.f32 %v1350, %v1386
    %v1389 = vsub.f32 %v1351, %v1387
    %v1390 = vmul.f32 %v1388, %v1388
    %v1391 = vmul.f32 %v1389, %v1389
    %v1392 = vsel %vm59, %v1390, 0.0
    %1393 = vadd.xlane.f32.xlu0 %v1392
    %v1394 = vpop.xlane.xlu0 %1393
    %v1395 = vsel %vm59, %v1391, 0.0
    %1396 = vadd.xlane.f32.xlu0 %v1395
    %v1397 = vpop.xlane.xlu0 %1396
    %v1398 = vmul.f32 %v1394, %v66
    %v1399 = vmul.f32 %v1397, %v66
    %v1400 = vadd.f32 %v1398, 1e-05
    %v1401 = vadd.f32 %v1399, 1e-05
    %v1402 = vrsqrt.pop %v1400
    %v1403 = vrsqrt.pop %v1401
    %v1404 = vmul.f32 %v1388, %v1402
    %v1405 = vmul.f32 %v1389, %v1403
    %v1406 = vlaneseq
    %v1407 = vshrl.u32 %v1406, 7
    %v1408 = vsub.s32 0, %v1407
    %v1409 = vrot.slane %v1353, %v1408
    %v1410 = vmul.f32 %v1404, %v1409
    %v1411 = vmul.f32 %v1405, %v1409
    %v1412 = vlaneseq
    %v1413 = vshrl.u32 %v1412, 7
    %v1414 = vsub.s32 1, %v1413
    %v1415 = vrot.slane %v1353, %v1414
    %v1416 = vadd.f32 %v1410, %v1415
    %v1417 = vadd.f32 %v1411, %v1415
    %v1419 = vsel %vm59, %v1416, 0
    %v1422 = vsel %vm59, %v1417, 0
    %1424 = vmatprep.subr.mxu0 0.0
    %1425 = vmatpush1.msra.mxu0 %v1355
    %1426 = vmatprep.subr.mxu0 0.0
    %1427 = vmatpush1.msra.mxu0 %v1357
    %1428 = vmatprep.subr.mxu0 0.0
    %1429 = vmatpush1.msra.mxu0 %v1359
    %1430 = vmatprep.subr.mxu0 0.0
    %1431 = vmatpush1.msra.mxu0 %v1361
    %1432 = vmatprep.subr.mxu0 0.0
    %1433 = vmatpush1.msra.mxu0 0.0
    %1434 = vmatprep.subr.mxu0 0.0
    %1435 = vmatpush1.msra.mxu0 0.0
    %1436 = vmatprep.subr.mxu0 0.0
    %1437 = vmatpush1.msra.mxu0 0.0
    %1438 = vmatprep.subr.mxu0 0.0
    %1439 = vmatpush1.msra.mxu0 0.0
    %1440 = vmatprep.subr.mxu0 0.0
    %1441 = vmatpush1.msra.mxu0 0.0
    %1442 = vmatprep.subr.mxu0 0.0
    %1443 = vmatpush1.msra.mxu0 0.0
    %1444 = vmatprep.subr.mxu0 0.0
    %1445 = vmatpush1.msra.mxu0 0.0
    %1446 = vmatprep.subr.mxu0 0.0
    %1447 = vmatpush1.msra.mxu0 0.0
    %1448 = vmatprep.subr.mxu0 0.0
    %1449 = vmatpush1.msra.mxu0 0.0
    %1450 = vmatprep.subr.mxu0 0.0
    %1451 = vmatpush1.msra.mxu0 0.0
    %1452 = vmatprep.subr.mxu0 0.0
    %1453 = vmatpush1.msra.mxu0 0.0
    %1454 = vmatprep.subr.mxu0 0.0
    %1455 = vmatpush1.msra.mxu0 0.0
    %1456 = vmatprep.subr.mxu0 0.0
    %1457 = vmatpush1.msra.mxu0 0.0
    %1458 = vmatprep.subr.mxu0 0.0
    %1459 = vmatpush1.msra.mxu0 0.0
    %1460 = vmatprep.subr.mxu0 0.0
    %1461 = vmatpush1.msra.mxu0 0.0
    %1462 = vmatprep.subr.mxu0 0.0
    %1463 = vmatpush1.msra.mxu0 0.0
    %1464 = vmatprep.subr.mxu0 0.0
    %1465 = vmatpush1.msra.mxu0 0.0
    %1466 = vmatprep.subr.mxu0 0.0
    %1467 = vmatpush1.msra.mxu0 0.0
    %1468 = vmatprep.subr.mxu0 0.0
    %1469 = vmatpush1.msra.mxu0 0.0
    %1470 = vmatprep.subr.mxu0 0.0
    %1471 = vmatpush1.msra.mxu0 0.0
    %1472 = vmatprep.subr.mxu0 0.0
    %1473 = vmatpush1.msra.mxu0 0.0
    %1474 = vmatprep.subr.mxu0 0.0
    %1475 = vmatpush1.msra.mxu0 0.0
    %1476 = vmatprep.subr.mxu0 0.0
    %1477 = vmatpush1.msra.mxu0 0.0
    %1478 = vmatprep.subr.mxu0 0.0
    %1479 = vmatpush1.msra.mxu0 0.0
    %1480 = vmatprep.subr.mxu0 0.0
    %1481 = vmatpush1.msra.mxu0 0.0
    %1482 = vmatprep.subr.mxu0 0.0
    %1483 = vmatpush1.msra.mxu0 0.0
    %1484 = vmatprep.subr.mxu0 0.0
    %1485 = vmatpush1.msra.mxu0 0.0
    %1486 = vmatprep.subr.mxu0 0.0
    %1487 = vmatpush1.msra.mxu0 0.0
    %1488 = vmatprep.mubr.f32.mxu0 0.0
    %1489 = vmatmul.mubr.f32.gmra.mrb[0].mxu0 %v1419
    %v1490 = vpop.f32.mrb[0].mxu0
    %v1491 = vadd.f32 0.0, %v1490
    %v1492 = vpop.f32.mrb[0].mxu0
    %1493 = vmatprep.mubr.f32.mxu0 0.0
    %1494 = vmatmul.mubr.f32.gmra.mrb[0].mxu0 %v1422
    %v1495 = vpop.f32.mrb[0].mxu0
    %v1496 = vadd.f32 0.0, %v1495
    %v1497 = vpop.f32.mrb[0].mxu0
    %1498 = vdwg.mxu0
    %1501 = vrot.lane.b32.xlu0 %v1491, 96
    %v1502 = vpop.permute.xlu0 %1501
    %1503 = vrot.lane.b32.xlu0 %v1496, 96
    %v1504 = vpop.permute.xlu0 %1503
    %v1505 = vsel %vm186, %v1491, 0
    %v1507 = vsel %vm186, %v1496, 0
    %v1509 = vsel %vm186, %v1502, 0
    %v1511 = vsel %vm186, %v1504, 0
    %1513 = vmatprep.subr.mxu0 0.0
    %1514 = vmatpush1.xpose.msra.mxu0 %v1509
    %1515 = vmatprep.subr.mxu0 0.0
    %1516 = vmatpush1.xpose.msra.mxu0 %v1511
    %1517 = vmatprep.subr.mxu0 0.0
    %1518 = vmatpush1.xpose.msra.mxu0 0.0
    %1519 = vmatprep.subr.mxu0 0.0
    %1520 = vmatpush1.xpose.msra.mxu0 0.0
    %1521 = vmatprep.subr.mxu0 0.0
    %1522 = vmatpush1.xpose.msra.mxu0 0.0
    %1523 = vmatprep.subr.mxu0 0.0
    %1524 = vmatpush1.xpose.msra.mxu0 0.0
    %1525 = vmatprep.subr.mxu0 0.0
    %1526 = vmatpush1.xpose.msra.mxu0 0.0
    %1527 = vmatprep.subr.mxu0 0.0
    %1528 = vmatpush1.xpose.msra.mxu0 0.0
    %1529 = vmatprep.subr.mxu0 0.0
    %1530 = vmatpush1.xpose.msra.mxu0 0.0
    %1531 = vmatprep.subr.mxu0 0.0
    %1532 = vmatpush1.xpose.msra.mxu0 0.0
    %1533 = vmatprep.subr.mxu0 0.0
    %1534 = vmatpush1.xpose.msra.mxu0 0.0
    %1535 = vmatprep.subr.mxu0 0.0
    %1536 = vmatpush1.xpose.msra.mxu0 0.0
    %1537 = vmatprep.subr.mxu0 0.0
    %1538 = vmatpush1.xpose.msra.mxu0 0.0
    %1539 = vmatprep.subr.mxu0 0.0
    %1540 = vmatpush1.xpose.msra.mxu0 0.0
    %1541 = vmatprep.subr.mxu0 0.0
    %1542 = vmatpush1.xpose.msra.mxu0 0.0
    %1543 = vmatprep.subr.mxu0 0.0
    %1544 = vmatpush1.xpose.msra.mxu0 0.0
    %1545 = vmatprep.subr.mxu0 0.0
    %1546 = vmatpush1.xpose.msra.mxu0 0.0
    %1547 = vmatprep.subr.mxu0 0.0
    %1548 = vmatpush1.xpose.msra.mxu0 0.0
    %1549 = vmatprep.subr.mxu0 0.0
    %1550 = vmatpush1.xpose.msra.mxu0 0.0
    %1551 = vmatprep.subr.mxu0 0.0
    %1552 = vmatpush1.xpose.msra.mxu0 0.0
    %1553 = vmatprep.subr.mxu0 0.0
    %1554 = vmatpush1.xpose.msra.mxu0 0.0
    %1555 = vmatprep.subr.mxu0 0.0
    %1556 = vmatpush1.xpose.msra.mxu0 0.0
    %1557 = vmatprep.subr.mxu0 0.0
    %1558 = vmatpush1.xpose.msra.mxu0 0.0
    %1559 = vmatprep.subr.mxu0 0.0
    %1560 = vmatpush1.xpose.msra.mxu0 0.0
    %1561 = vmatprep.subr.mxu0 0.0
    %1562 = vmatpush1.xpose.msra.mxu0 0.0
    %1563 = vmatprep.subr.mxu0 0.0
    %1564 = vmatpush1.xpose.msra.mxu0 0.0
    %1565 = vmatprep.subr.mxu0 0.0
    %1566 = vmatpush1.xpose.msra.mxu0 0.0
    %1567 = vmatprep.subr.mxu0 0.0
    %1568 = vmatpush1.xpose.msra.mxu0 0.0
    %1569 = vmatprep.subr.mxu0 0.0
    %1570 = vmatpush1.xpose.msra.mxu0 0.0
    %1571 = vmatprep.subr.mxu0 0.0
    %1572 = vmatpush1.xpose.msra.mxu0 0.0
    %1573 = vmatprep.subr.mxu0 0.0
    %1574 = vmatpush1.xpose.msra.mxu0 0.0
    %1575 = vmatprep.subr.mxu0 0.0
    %1576 = vmatpush1.xpose.msra.mxu0 0.0
    %1577 = vmatprep.mubr.f32.mxu0 0.0
    %1578 = vmatmul.mubr.f32.gmra.mrb[0].mxu0 %v1505
    %v1579 = vpop.f32.mrb[0].mxu0
    %v1580 = vadd.f32 0.0, %v1579
    %v1581 = vpop.f32.mrb[0].mxu0
    %1582 = vmatprep.mubr.f32.mxu0 0.0
    %1583 = vmatmul.mubr.f32.gmra.mrb[0].mxu0 %v1507
    %v1584 = vpop.f32.mrb[0].mxu0
    %v1585 = vadd.f32 0.0, %v1584
    %v1586 = vpop.f32.mrb[0].mxu0
    %1587 = vdwg.mxu0
    %v1588 = vmul.f32 %v1580, 0.35355338
    %v1589 = vmul.f32 %v1585, 0.35355338
    %v1590 = vadd.f32 %v1588, %v23
    %v1591 = vadd.f32 %v1589, %v24
    %v1592 = vsel %vm274, %v1590, -inf
    %1593 = vmax.xlane.f32.xlu0 %v1592
    %v1594 = vpop.xlane.xlu0 %1593
    %v1595 = vsel %vm274, %v1591, -inf
    %1596 = vmax.xlane.f32.xlu0 %v1595
    %v1597 = vpop.xlane.xlu0 %1596
    %v1598 = vsub.f32 %v1590, %v1594
    %v1599 = vsub.f32 %v1591, %v1597
    %v1600 = vmul.f32 %v1598, 1.442695
    %v1601 = vpow.pop %v1600
    %v1602 = vmul.f32 %v1599, 1.442695
    %v1603 = vpow.pop %v1602
    %v1604 = vsel %vm274, %v1601, 0.0
    %1605 = vadd.xlane.f32.xlu0 %v1604
    %v1606 = vpop.xlane.xlu0 %1605
    %v1607 = vsel %vm274, %v1603, 0.0
    %1608 = vadd.xlane.f32.xlu0 %v1607
    %v1609 = vpop.xlane.xlu0 %1608
    %v1610 = vrcp.pop %v1606
    %v1611 = vrcp.pop %v1609
    %v1612 = vmul.f32 %v1601, %v1610
    %v1613 = vmul.f32 %v1603, %v1611
    %1614 = vrot.lane.b32.xlu0 %v1491, 64
    %v1615 = vpop.permute.xlu0 %1614
    %1616 = vrot.lane.b32.xlu0 %v1496, 64
    %v1617 = vpop.permute.xlu0 %1616
    %v1621 = vsel %vm274, %v1612, 0
    %v1624 = vsel %vm274, %v1613, 0
    %1626 = vmatprep.subr.mxu0 0.0
    %1627 = vmatpush1.msra.mxu0 %v1615
    %1628 = vmatprep.subr.mxu0 0.0
    %1629 = vmatpush1.msra.mxu0 %v1617
    %1630 = vmatprep.subr.mxu0 0.0
    %1631 = vmatpush1.msra.mxu0 0.0
    %1632 = vmatprep.subr.mxu0 0.0
    %1633 = vmatpush1.msra.mxu0 0.0
    %1634 = vmatprep.subr.mxu0 0.0
    %1635 = vmatpush1.msra.mxu0 0.0
    %1636 = vmatprep.subr.mxu0 0.0
    %1637 = vmatpush1.msra.mxu0 0.0
    %1638 = vmatprep.subr.mxu0 0.0
    %1639 = vmatpush1.msra.mxu0 0.0
    %1640 = vmatprep.subr.mxu0 0.0
    %1641 = vmatpush1.msra.mxu0 0.0
    %1642 = vmatprep.subr.mxu0 0.0
    %1643 = vmatpush1.msra.mxu0 0.0
    %1644 = vmatprep.subr.mxu0 0.0
    %1645 = vmatpush1.msra.mxu0 0.0
    %1646 = vmatprep.subr.mxu0 0.0
    %1647 = vmatpush1.msra.mxu0 0.0
    %1648 = vmatprep.subr.mxu0 0.0
    %1649 = vmatpush1.msra.mxu0 0.0
    %1650 = vmatprep.subr.mxu0 0.0
    %1651 = vmatpush1.msra.mxu0 0.0
    %1652 = vmatprep.subr.mxu0 0.0
    %1653 = vmatpush1.msra.mxu0 0.0
    %1654 = vmatprep.subr.mxu0 0.0
    %1655 = vmatpush1.msra.mxu0 0.0
    %1656 = vmatprep.subr.mxu0 0.0
    %1657 = vmatpush1.msra.mxu0 0.0
    %1658 = vmatprep.subr.mxu0 0.0
    %1659 = vmatpush1.msra.mxu0 0.0
    %1660 = vmatprep.subr.mxu0 0.0
    %1661 = vmatpush1.msra.mxu0 0.0
    %1662 = vmatprep.subr.mxu0 0.0
    %1663 = vmatpush1.msra.mxu0 0.0
    %1664 = vmatprep.subr.mxu0 0.0
    %1665 = vmatpush1.msra.mxu0 0.0
    %1666 = vmatprep.subr.mxu0 0.0
    %1667 = vmatpush1.msra.mxu0 0.0
    %1668 = vmatprep.subr.mxu0 0.0
    %1669 = vmatpush1.msra.mxu0 0.0
    %1670 = vmatprep.subr.mxu0 0.0
    %1671 = vmatpush1.msra.mxu0 0.0
    %1672 = vmatprep.subr.mxu0 0.0
    %1673 = vmatpush1.msra.mxu0 0.0
    %1674 = vmatprep.subr.mxu0 0.0
    %1675 = vmatpush1.msra.mxu0 0.0
    %1676 = vmatprep.subr.mxu0 0.0
    %1677 = vmatpush1.msra.mxu0 0.0
    %1678 = vmatprep.subr.mxu0 0.0
    %1679 = vmatpush1.msra.mxu0 0.0
    %1680 = vmatprep.subr.mxu0 0.0
    %1681 = vmatpush1.msra.mxu0 0.0
    %1682 = vmatprep.subr.mxu0 0.0
    %1683 = vmatpush1.msra.mxu0 0.0
    %1684 = vmatprep.subr.mxu0 0.0
    %1685 = vmatpush1.msra.mxu0 0.0
    %1686 = vmatprep.subr.mxu0 0.0
    %1687 = vmatpush1.msra.mxu0 0.0
    %1688 = vmatprep.subr.mxu0 0.0
    %1689 = vmatpush1.msra.mxu0 0.0
    %1690 = vmatprep.mubr.f32.mxu0 0.0
    %1691 = vmatmul.mubr.f32.gmra.mrb[0].mxu0 %v1621
    %v1692 = vpop.f32.mrb[0].mxu0
    %v1693 = vadd.f32 0.0, %v1692
    %v1694 = vpop.f32.mrb[0].mxu0
    %1695 = vmatprep.mubr.f32.mxu0 0.0
    %1696 = vmatmul.mubr.f32.gmra.mrb[0].mxu0 %v1624
    %v1697 = vpop.f32.mrb[0].mxu0
    %v1698 = vadd.f32 0.0, %v1697
    %v1699 = vpop.f32.mrb[0].mxu0
    %1700 = vdwg.mxu0
    %1701 = vrot.lane.b32.xlu0 %v1491, 120
    %v1702 = vpop.permute.xlu0 %1701
    %1703 = vrot.lane.b32.xlu0 %v1496, 120
    %v1704 = vpop.permute.xlu0 %1703
    %1705 = vrot.lane.b32.xlu0 %v1491, 88
    %v1706 = vpop.permute.xlu0 %1705
    %1707 = vrot.lane.b32.xlu0 %v1496, 88
    %v1708 = vpop.permute.xlu0 %1707
    %v1709 = vsel %vm186, %v1702, 0
    %v1711 = vsel %vm186, %v1704, 0
    %v1713 = vsel %vm186, %v1706, 0
    %v1715 = vsel %vm186, %v1708, 0
    %1717 = vmatprep.subr.mxu0 0.0
    %1718 = vmatpush1.xpose.msra.mxu0 %v1713
    %1719 = vmatprep.subr.mxu0 0.0
    %1720 = vmatpush1.xpose.msra.mxu0 %v1715
    %1721 = vmatprep.subr.mxu0 0.0
    %1722 = vmatpush1.xpose.msra.mxu0 0.0
    %1723 = vmatprep.subr.mxu0 0.0
    %1724 = vmatpush1.xpose.msra.mxu0 0.0
    %1725 = vmatprep.subr.mxu0 0.0
    %1726 = vmatpush1.xpose.msra.mxu0 0.0
    %1727 = vmatprep.subr.mxu0 0.0
    %1728 = vmatpush1.xpose.msra.mxu0 0.0
    %1729 = vmatprep.subr.mxu0 0.0
    %1730 = vmatpush1.xpose.msra.mxu0 0.0
    %1731 = vmatprep.subr.mxu0 0.0
    %1732 = vmatpush1.xpose.msra.mxu0 0.0
    %1733 = vmatprep.subr.mxu0 0.0
    %1734 = vmatpush1.xpose.msra.mxu0 0.0
    %1735 = vmatprep.subr.mxu0 0.0
    %1736 = vmatpush1.xpose.msra.mxu0 0.0
    %1737 = vmatprep.subr.mxu0 0.0
    %1738 = vmatpush1.xpose.msra.mxu0 0.0
    %1739 = vmatprep.subr.mxu0 0.0
    %1740 = vmatpush1.xpose.msra.mxu0 0.0
    %1741 = vmatprep.subr.mxu0 0.0
    %1742 = vmatpush1.xpose.msra.mxu0 0.0
    %1743 = vmatprep.subr.mxu0 0.0
    %1744 = vmatpush1.xpose.msra.mxu0 0.0
    %1745 = vmatprep.subr.mxu0 0.0
    %1746 = vmatpush1.xpose.msra.mxu0 0.0
    %1747 = vmatprep.subr.mxu0 0.0
    %1748 = vmatpush1.xpose.msra.mxu0 0.0
    %1749 = vmatprep.subr.mxu0 0.0
    %1750 = vmatpush1.xpose.msra.mxu0 0.0
    %1751 = vmatprep.subr.mxu0 0.0
    %1752 = vmatpush1.xpose.msra.mxu0 0.0
    %1753 = vmatprep.subr.mxu0 0.0
    %1754 = vmatpush1.xpose.msra.mxu0 0.0
    %1755 = vmatprep.subr.mxu0 0.0
    %1756 = vmatpush1.xpose.msra.mxu0 0.0
    %1757 = vmatprep.subr.mxu0 0.0
    %1758 = vmatpush1.xpose.msra.mxu0 0.0
    %1759 = vmatprep.subr.mxu0 0.0
    %1760 = vmatpush1.xpose.msra.mxu0 0.0
    %1761 = vmatprep.subr.mxu0 0.0
    %1762 = vmatpush1.xpose.msra.mxu0 0.0
    %1763 = vmatprep.subr.mxu0 0.0
    %1764 = vmatpush1.xpose.msra.mxu0 0.0
    %1765 = vmatprep.subr.mxu0 0.0
    %1766 = vmatpush1.xpose.msra.mxu0 0.0
    %1767 = vmatprep.subr.mxu0 0.0
    %1768 = vmatpush1.xpose.msra.mxu0 0.0
    %1769 = vmatprep.subr.mxu0 0.0
    %1770 = vmatpush1.xpose.msra.mxu0 0.0
    %1771 = vmatprep.subr.mxu0 0.0
    %1772 = vmatpush1.xpose.msra.mxu0 0.0
    %1773 = vmatprep.subr.mxu0 0.0
    %1774 = vmatpush1.xpose.msra.mxu0 0.0
    %1775 = vmatprep.subr.mxu0 0.0
    %1776 = vmatpush1.xpose.msra.mxu0 0.0
    %1777 = vmatprep.subr.mxu0 0.0
    %1778 = vmatpush1.xpose.msra.mxu0 0.0
    %1779 = vmatprep.subr.mxu0 0.0
    %1780 = vmatpush1.xpose.msra.mxu0 0.0
    %1781 = vmatprep.mubr.f32.mxu0 0.0
    %1782 = vmatmul.mubr.f32.gmra.mrb[0].mxu0 %v1709
    %v1783 = vpop.f32.mrb[0].mxu0
    %v1784 = vadd.f32 0.0, %v1783
    %v1785 = vpop.f32.mrb[0].mxu0
    %1786 = vmatprep.mubr.f32.mxu0 0.0
    %1787 = vmatmul.mubr.f32.gmra.mrb[0].mxu0 %v1711
    %v1788 = vpop.f32.mrb[0].mxu0
    %v1789 = vadd.f32 0.0, %v1788
    %v1790 = vpop.f32.mrb[0].mxu0
    %1791 = vdwg.mxu0
    %v1792 = vmul.f32 %v1784, 0.35355338
    %v1793 = vmul.f32 %v1789, 0.35355338
    %v1794 = vadd.f32 %v1792, %v23
    %v1795 = vadd.f32 %v1793, %v24
    %v1796 = vsel %vm274, %v1794, -inf
    %1797 = vmax.xlane.f32.xlu0 %v1796
    %v1798 = vpop.xlane.xlu0 %1797
    %v1799 = vsel %vm274, %v1795, -inf
    %1800 = vmax.xlane.f32.xlu0 %v1799
    %v1801 = vpop.xlane.xlu0 %1800
    %v1802 = vsub.f32 %v1794, %v1798
    %v1803 = vsub.f32 %v1795, %v1801
    %v1804 = vmul.f32 %v1802, 1.442695
    %v1805 = vpow.pop %v1804
    %v1806 = vmul.f32 %v1803, 1.442695
    %v1807 = vpow.pop %v1806
    %v1808 = vsel %vm274, %v1805, 0.0
    %1809 = vadd.xlane.f32.xlu0 %v1808
    %v1810 = vpop.xlane.xlu0 %1809
    %v1811 = vsel %vm274, %v1807, 0.0
    %1812 = vadd.xlane.f32.xlu0 %v1811
    %v1813 = vpop.xlane.xlu0 %1812
    %v1814 = vrcp.pop %v1810
    %v1815 = vrcp.pop %v1813
    %v1816 = vmul.f32 %v1805, %v1814
    %v1817 = vmul.f32 %v1807, %v1815
    %1818 = vrot.lane.b32.xlu0 %v1491, 56
    %v1819 = vpop.permute.xlu0 %1818
    %1820 = vrot.lane.b32.xlu0 %v1496, 56
    %v1821 = vpop.permute.xlu0 %1820
    %v1825 = vsel %vm274, %v1816, 0
    %v1828 = vsel %vm274, %v1817, 0
    %1830 = vmatprep.subr.mxu0 0.0
    %1831 = vmatpush1.msra.mxu0 %v1819
    %1832 = vmatprep.subr.mxu0 0.0
    %1833 = vmatpush1.msra.mxu0 %v1821
    %1834 = vmatprep.subr.mxu0 0.0
    %1835 = vmatpush1.msra.mxu0 0.0
    %1836 = vmatprep.subr.mxu0 0.0
    %1837 = vmatpush1.msra.mxu0 0.0
    %1838 = vmatprep.subr.mxu0 0.0
    %1839 = vmatpush1.msra.mxu0 0.0
    %1840 = vmatprep.subr.mxu0 0.0
    %1841 = vmatpush1.msra.mxu0 0.0
    %1842 = vmatprep.subr.mxu0 0.0
    %1843 = vmatpush1.msra.mxu0 0.0
    %1844 = vmatprep.subr.mxu0 0.0
    %1845 = vmatpush1.msra.mxu0 0.0
    %1846 = vmatprep.subr.mxu0 0.0
    %1847 = vmatpush1.msra.mxu0 0.0
    %1848 = vmatprep.subr.mxu0 0.0
    %1849 = vmatpush1.msra.mxu0 0.0
    %1850 = vmatprep.subr.mxu0 0.0
    %1851 = vmatpush1.msra.mxu0 0.0
    %1852 = vmatprep.subr.mxu0 0.0
    %1853 = vmatpush1.msra.mxu0 0.0
    %1854 = vmatprep.subr.mxu0 0.0
    %1855 = vmatpush1.msra.mxu0 0.0
    %1856 = vmatprep.subr.mxu0 0.0
    %1857 = vmatpush1.msra.mxu0 0.0
    %1858 = vmatprep.subr.mxu0 0.0
    %1859 = vmatpush1.msra.mxu0 0.0
    %1860 = vmatprep.subr.mxu0 0.0
    %1861 = vmatpush1.msra.mxu0 0.0
    %1862 = vmatprep.subr.mxu0 0.0
    %1863 = vmatpush1.msra.mxu0 0.0
    %1864 = vmatprep.subr.mxu0 0.0
    %1865 = vmatpush1.msra.mxu0 0.0
    %1866 = vmatprep.subr.mxu0 0.0
    %1867 = vmatpush1.msra.mxu0 0.0
    %1868 = vmatprep.subr.mxu0 0.0
    %1869 = vmatpush1.msra.mxu0 0.0
    %1870 = vmatprep.subr.mxu0 0.0
    %1871 = vmatpush1.msra.mxu0 0.0
    %1872 = vmatprep.subr.mxu0 0.0
    %1873 = vmatpush1.msra.mxu0 0.0
    %1874 = vmatprep.subr.mxu0 0.0
    %1875 = vmatpush1.msra.mxu0 0.0
    %1876 = vmatprep.subr.mxu0 0.0
    %1877 = vmatpush1.msra.mxu0 0.0
    %1878 = vmatprep.subr.mxu0 0.0
    %1879 = vmatpush1.msra.mxu0 0.0
    %1880 = vmatprep.subr.mxu0 0.0
    %1881 = vmatpush1.msra.mxu0 0.0
    %1882 = vmatprep.subr.mxu0 0.0
    %1883 = vmatpush1.msra.mxu0 0.0
    %1884 = vmatprep.subr.mxu0 0.0
    %1885 = vmatpush1.msra.mxu0 0.0
    %1886 = vmatprep.subr.mxu0 0.0
    %1887 = vmatpush1.msra.mxu0 0.0
    %1888 = vmatprep.subr.mxu0 0.0
    %1889 = vmatpush1.msra.mxu0 0.0
    %1890 = vmatprep.subr.mxu0 0.0
    %1891 = vmatpush1.msra.mxu0 0.0
    %1892 = vmatprep.subr.mxu0 0.0
    %1893 = vmatpush1.msra.mxu0 0.0
    %1894 = vmatprep.mubr.f32.mxu0 0.0
    %1895 = vmatmul.mubr.f32.gmra.mrb[0].mxu0 %v1825
    %v1896 = vpop.f32.mrb[0].mxu0
    %v1897 = vadd.f32 0.0, %v1896
    %v1898 = vpop.f32.mrb[0].mxu0
    %1899 = vmatprep.mubr.f32.mxu0 0.0
    %1900 = vmatmul.mubr.f32.gmra.mrb[0].mxu0 %v1828
    %v1901 = vpop.f32.mrb[0].mxu0
    %v1902 = vadd.f32 0.0, %v1901
    %v1903 = vpop.f32.mrb[0].mxu0
    %1904 = vdwg.mxu0
    %1905 = vrot.lane.b32.xlu0 %v1491, 112
    %v1906 = vpop.permute.xlu0 %1905
    %1907 = vrot.lane.b32.xlu0 %v1496, 112
    %v1908 = vpop.permute.xlu0 %1907
    %1909 = vrot.lane.b32.xlu0 %v1491, 80
    %v1910 = vpop.permute.xlu0 %1909
    %1911 = vrot.lane.b32.xlu0 %v1496, 80
    %v1912 = vpop.permute.xlu0 %1911
    %v1913 = vsel %vm186, %v1906, 0
    %v1915 = vsel %vm186, %v1908, 0
    %v1917 = vsel %vm186, %v1910, 0
    %v1919 = vsel %vm186, %v1912, 0
    %1921 = vmatprep.subr.mxu0 0.0
    %1922 = vmatpush1.xpose.msra.mxu0 %v1917
    %1923 = vmatprep.subr.mxu0 0.0
    %1924 = vmatpush1.xpose.msra.mxu0 %v1919
    %1925 = vmatprep.subr.mxu0 0.0
    %1926 = vmatpush1.xpose.msra.mxu0 0.0
    %1927 = vmatprep.subr.mxu0 0.0
    %1928 = vmatpush1.xpose.msra.mxu0 0.0
    %1929 = vmatprep.subr.mxu0 0.0
    %1930 = vmatpush1.xpose.msra.mxu0 0.0
    %1931 = vmatprep.subr.mxu0 0.0
    %1932 = vmatpush1.xpose.msra.mxu0 0.0
    %1933 = vmatprep.subr.mxu0 0.0
    %1934 = vmatpush1.xpose.msra.mxu0 0.0
    %1935 = vmatprep.subr.mxu0 0.0
    %1936 = vmatpush1.xpose.msra.mxu0 0.0
    %1937 = vmatprep.subr.mxu0 0.0
    %1938 = vmatpush1.xpose.msra.mxu0 0.0
    %1939 = vmatprep.subr.mxu0 0.0
    %1940 = vmatpush1.xpose.msra.mxu0 0.0
    %1941 = vmatprep.subr.mxu0 0.0
    %1942 = vmatpush1.xpose.msra.mxu0 0.0
    %1943 = vmatprep.subr.mxu0 0.0
    %1944 = vmatpush1.xpose.msra.mxu0 0.0
    %1945 = vmatprep.subr.mxu0 0.0
    %1946 = vmatpush1.xpose.msra.mxu0 0.0
    %1947 = vmatprep.subr.mxu0 0.0
    %1948 = vmatpush1.xpose.msra.mxu0 0.0
    %1949 = vmatprep.subr.mxu0 0.0
    %1950 = vmatpush1.xpose.msra.mxu0 0.0
    %1951 = vmatprep.subr.mxu0 0.0
    %1952 = vmatpush1.xpose.msra.mxu0 0.0
    %1953 = vmatprep.subr.mxu0 0.0
    %1954 = vmatpush1.xpose.msra.mxu0 0.0
    %1955 = vmatprep.subr.mxu0 0.0
    %1956 = vmatpush1.xpose.msra.mxu0 0.0
    %1957 = vmatprep.subr.mxu0 0.0
    %1958 = vmatpush1.xpose.msra.mxu0 0.0
    %1959 = vmatprep.subr.mxu0 0.0
    %1960 = vmatpush1.xpose.msra.mxu0 0.0
    %1961 = vmatprep.subr.mxu0 0.0
    %1962 = vmatpush1.xpose.msra.mxu0 0.0
    %1963 = vmatprep.subr.mxu0 0.0
    %1964 = vmatpush1.xpose.msra.mxu0 0.0
    %1965 = vmatprep.subr.mxu0 0.0
    %1966 = vmatpush1.xpose.msra.mxu0 0.0
    %1967 = vmatprep.subr.mxu0 0.0
    %1968 = vmatpush1.xpose.msra.mxu0 0.0
    %1969 = vmatprep.subr.mxu0 0.0
    %1970 = vmatpush1.xpose.msra.mxu0 0.0
    %1971 = vmatprep.subr.mxu0 0.0
    %1972 = vmatpush1.xpose.msra.mxu0 0.0
    %1973 = vmatprep.subr.mxu0 0.0
    %1974 = vmatpush1.xpose.msra.mxu0 0.0
    %1975 = vmatprep.subr.mxu0 0.0
    %1976 = vmatpush1.xpose.msra.mxu0 0.0
    %1977 = vmatprep.subr.mxu0 0.0
    %1978 = vmatpush1.xpose.msra.mxu0 0.0
    %1979 = vmatprep.subr.mxu0 0.0
    %1980 = vmatpush1.xpose.msra.mxu0 0.0
    %1981 = vmatprep.subr.mxu0 0.0
    %1982 = vmatpush1.xpose.msra.mxu0 0.0
    %1983 = vmatprep.subr.mxu0 0.0
    %1984 = vmatpush1.xpose.msra.mxu0 0.0
    %1985 = vmatprep.mubr.f32.mxu0 0.0
    %1986 = vmatmul.mubr.f32.gmra.mrb[0].mxu0 %v1913
    %v1987 = vpop.f32.mrb[0].mxu0
    %v1988 = vadd.f32 0.0, %v1987
    %v1989 = vpop.f32.mrb[0].mxu0
    %1990 = vmatprep.mubr.f32.mxu0 0.0
    %1991 = vmatmul.mubr.f32.gmra.mrb[0].mxu0 %v1915
    %v1992 = vpop.f32.mrb[0].mxu0
    %v1993 = vadd.f32 0.0, %v1992
    %v1994 = vpop.f32.mrb[0].mxu0
    %1995 = vdwg.mxu0
    %v1996 = vmul.f32 %v1988, 0.35355338
    %v1997 = vmul.f32 %v1993, 0.35355338
    %v1998 = vadd.f32 %v1996, %v23
    %v1999 = vadd.f32 %v1997, %v24
    %v2000 = vsel %vm274, %v1998, -inf
    %2001 = vmax.xlane.f32.xlu0 %v2000
    %v2002 = vpop.xlane.xlu0 %2001
    %v2003 = vsel %vm274, %v1999, -inf
    %2004 = vmax.xlane.f32.xlu0 %v2003
    %v2005 = vpop.xlane.xlu0 %2004
    %v2006 = vsub.f32 %v1998, %v2002
    %v2007 = vsub.f32 %v1999, %v2005
    %v2008 = vmul.f32 %v2006, 1.442695
    %v2009 = vpow.pop %v2008
    %v2010 = vmul.f32 %v2007, 1.442695
    %v2011 = vpow.pop %v2010
    %v2012 = vsel %vm274, %v2009, 0.0
    %2013 = vadd.xlane.f32.xlu0 %v2012
    %v2014 = vpop.xlane.xlu0 %2013
    %v2015 = vsel %vm274, %v2011, 0.0
    %2016 = vadd.xlane.f32.xlu0 %v2015
    %v2017 = vpop.xlane.xlu0 %2016
    %v2018 = vrcp.pop %v2014
    %v2019 = vrcp.pop %v2017
    %v2020 = vmul.f32 %v2009, %v2018
    %v2021 = vmul.f32 %v2011, %v2019
    %2022 = vrot.lane.b32.xlu0 %v1491, 48
    %v2023 = vpop.permute.xlu0 %2022
    %2024 = vrot.lane.b32.xlu0 %v1496, 48
    %v2025 = vpop.permute.xlu0 %2024
    %v2029 = vsel %vm274, %v2020, 0
    %v2032 = vsel %vm274, %v2021, 0
    %2034 = vmatprep.subr.mxu0 0.0
    %2035 = vmatpush1.msra.mxu0 %v2023
    %2036 = vmatprep.subr.mxu0 0.0
    %2037 = vmatpush1.msra.mxu0 %v2025
    %2038 = vmatprep.subr.mxu0 0.0
    %2039 = vmatpush1.msra.mxu0 0.0
    %2040 = vmatprep.subr.mxu0 0.0
    %2041 = vmatpush1.msra.mxu0 0.0
    %2042 = vmatprep.subr.mxu0 0.0
    %2043 = vmatpush1.msra.mxu0 0.0
    %2044 = vmatprep.subr.mxu0 0.0
    %2045 = vmatpush1.msra.mxu0 0.0
    %2046 = vmatprep.subr.mxu0 0.0
    %2047 = vmatpush1.msra.mxu0 0.0
    %2048 = vmatprep.subr.mxu0 0.0
    %2049 = vmatpush1.msra.mxu0 0.0
    %2050 = vmatprep.subr.mxu0 0.0
    %2051 = vmatpush1.msra.mxu0 0.0
    %2052 = vmatprep.subr.mxu0 0.0
    %2053 = vmatpush1.msra.mxu0 0.0
    %2054 = vmatprep.subr.mxu0 0.0
    %2055 = vmatpush1.msra.mxu0 0.0
    %2056 = vmatprep.subr.mxu0 0.0
    %2057 = vmatpush1.msra.mxu0 0.0
    %2058 = vmatprep.subr.mxu0 0.0
    %2059 = vmatpush1.msra.mxu0 0.0
    %2060 = vmatprep.subr.mxu0 0.0
    %2061 = vmatpush1.msra.mxu0 0.0
    %2062 = vmatprep.subr.mxu0 0.0
    %2063 = vmatpush1.msra.mxu0 0.0
    %2064 = vmatprep.subr.mxu0 0.0
    %2065 = vmatpush1.msra.mxu0 0.0
    %2066 = vmatprep.subr.mxu0 0.0
    %2067 = vmatpush1.msra.mxu0 0.0
    %2068 = vmatprep.subr.mxu0 0.0
    %2069 = vmatpush1.msra.mxu0 0.0
    %2070 = vmatprep.subr.mxu0 0.0
    %2071 = vmatpush1.msra.mxu0 0.0
    %2072 = vmatprep.subr.mxu0 0.0
    %2073 = vmatpush1.msra.mxu0 0.0
    %2074 = vmatprep.subr.mxu0 0.0
    %2075 = vmatpush1.msra.mxu0 0.0
    %2076 = vmatprep.subr.mxu0 0.0
    %2077 = vmatpush1.msra.mxu0 0.0
    %2078 = vmatprep.subr.mxu0 0.0
    %2079 = vmatpush1.msra.mxu0 0.0
    %2080 = vmatprep.subr.mxu0 0.0
    %2081 = vmatpush1.msra.mxu0 0.0
    %2082 = vmatprep.subr.mxu0 0.0
    %2083 = vmatpush1.msra.mxu0 0.0
    %2084 = vmatprep.subr.mxu0 0.0
    %2085 = vmatpush1.msra.mxu0 0.0
    %2086 = vmatprep.subr.mxu0 0.0
    %2087 = vmatpush1.msra.mxu0 0.0
    %2088 = vmatprep.subr.mxu0 0.0
    %2089 = vmatpush1.msra.mxu0 0.0
    %2090 = vmatprep.subr.mxu0 0.0
    %2091 = vmatpush1.msra.mxu0 0.0
    %2092 = vmatprep.subr.mxu0 0.0
    %2093 = vmatpush1.msra.mxu0 0.0
    %2094 = vmatprep.subr.mxu0 0.0
    %2095 = vmatpush1.msra.mxu0 0.0
    %2096 = vmatprep.subr.mxu0 0.0
    %2097 = vmatpush1.msra.mxu0 0.0
    %2098 = vmatprep.mubr.f32.mxu0 0.0
    %2099 = vmatmul.mubr.f32.gmra.mrb[0].mxu0 %v2029
    %v2100 = vpop.f32.mrb[0].mxu0
    %v2101 = vadd.f32 0.0, %v2100
    %v2102 = vpop.f32.mrb[0].mxu0
    %2103 = vmatprep.mubr.f32.mxu0 0.0
    %2104 = vmatmul.mubr.f32.gmra.mrb[0].mxu0 %v2032
    %v2105 = vpop.f32.mrb[0].mxu0
    %v2106 = vadd.f32 0.0, %v2105
    %v2107 = vpop.f32.mrb[0].mxu0
    %2108 = vdwg.mxu0
    %2109 = vrot.lane.b32.xlu0 %v1491, 104
    %v2110 = vpop.permute.xlu0 %2109
    %2111 = vrot.lane.b32.xlu0 %v1496, 104
    %v2112 = vpop.permute.xlu0 %2111
    %2113 = vrot.lane.b32.xlu0 %v1491, 72
    %v2114 = vpop.permute.xlu0 %2113
    %2115 = vrot.lane.b32.xlu0 %v1496, 72
    %v2116 = vpop.permute.xlu0 %2115
    %v2117 = vsel %vm186, %v2110, 0
    %v2119 = vsel %vm186, %v2112, 0
    %v2121 = vsel %vm186, %v2114, 0
    %v2123 = vsel %vm186, %v2116, 0
    %2125 = vmatprep.subr.mxu0 0.0
    %2126 = vmatpush1.xpose.msra.mxu0 %v2121
    %2127 = vmatprep.subr.mxu0 0.0
    %2128 = vmatpush1.xpose.msra.mxu0 %v2123
    %2129 = vmatprep.subr.mxu0 0.0
    %2130 = vmatpush1.xpose.msra.mxu0 0.0
    %2131 = vmatprep.subr.mxu0 0.0
    %2132 = vmatpush1.xpose.msra.mxu0 0.0
    %2133 = vmatprep.subr.mxu0 0.0
    %2134 = vmatpush1.xpose.msra.mxu0 0.0
    %2135 = vmatprep.subr.mxu0 0.0
    %2136 = vmatpush1.xpose.msra.mxu0 0.0
    %2137 = vmatprep.subr.mxu0 0.0
    %2138 = vmatpush1.xpose.msra.mxu0 0.0
    %2139 = vmatprep.subr.mxu0 0.0
    %2140 = vmatpush1.xpose.msra.mxu0 0.0
    %2141 = vmatprep.subr.mxu0 0.0
    %2142 = vmatpush1.xpose.msra.mxu0 0.0
    %2143 = vmatprep.subr.mxu0 0.0
    %2144 = vmatpush1.xpose.msra.mxu0 0.0
    %2145 = vmatprep.subr.mxu0 0.0
    %2146 = vmatpush1.xpose.msra.mxu0 0.0
    %2147 = vmatprep.subr.mxu0 0.0
    %2148 = vmatpush1.xpose.msra.mxu0 0.0
    %2149 = vmatprep.subr.mxu0 0.0
    %2150 = vmatpush1.xpose.msra.mxu0 0.0
    %2151 = vmatprep.subr.mxu0 0.0
    %2152 = vmatpush1.xpose.msra.mxu0 0.0
    %2153 = vmatprep.subr.mxu0 0.0
    %2154 = vmatpush1.xpose.msra.mxu0 0.0
    %2155 = vmatprep.subr.mxu0 0.0
    %2156 = vmatpush1.xpose.msra.mxu0 0.0
    %2157 = vmatprep.subr.mxu0 0.0
    %2158 = vmatpush1.xpose.msra.mxu0 0.0
    %2159 = vmatprep.subr.mxu0 0.0
    %2160 = vmatpush1.xpose.msra.mxu0 0.0
    %2161 = vmatprep.subr.mxu0 0.0
    %2162 = vmatpush1.xpose.msra.mxu0 0.0
    %2163 = vmatprep.subr.mxu0 0.0
    %2164 = vmatpush1.xpose.msra.mxu0 0.0
    %2165 = vmatprep.subr.mxu0 0.0
    %2166 = vmatpush1.xpose.msra.mxu0 0.0
    %2167 = vmatprep.subr.mxu0 0.0
    %2168 = vmatpush1.xpose.msra.mxu0 0.0
    %2169 = vmatprep.subr.mxu0 0.0
    %2170 = vmatpush1.xpose.msra.mxu0 0.0
    %2171 = vmatprep.subr.mxu0 0.0
    %2172 = vmatpush1.xpose.msra.mxu0 0.0
    %2173 = vmatprep.subr.mxu0 0.0
    %2174 = vmatpush1.xpose.msra.mxu0 0.0
    %2175 = vmatprep.subr.mxu0 0.0
    %2176 = vmatpush1.xpose.msra.mxu0 0.0
    %2177 = vmatprep.subr.mxu0 0.0
    %2178 = vmatpush1.xpose.msra.mxu0 0.0
    %2179 = vmatprep.subr.mxu0 0.0
    %2180 = vmatpush1.xpose.msra.mxu0 0.0
    %2181 = vmatprep.subr.mxu0 0.0
    %2182 = vmatpush1.xpose.msra.mxu0 0.0
    %2183 = vmatprep.subr.mxu0 0.0
    %2184 = vmatpush1.xpose.msra.mxu0 0.0
    %2185 = vmatprep.subr.mxu0 0.0
    %2186 = vmatpush1.xpose.msra.mxu0 0.0
    %2187 = vmatprep.subr.mxu0 0.0
    %2188 = vmatpush1.xpose.msra.mxu0 0.0
    %2189 = vmatprep.mubr.f32.mxu0 0.0
    %2190 = vmatmul.mubr.f32.gmra.mrb[0].mxu0 %v2117
    %v2191 = vpop.f32.mrb[0].mxu0
    %v2192 = vadd.f32 0.0, %v2191
    %v2193 = vpop.f32.mrb[0].mxu0
    %2194 = vmatprep.mubr.f32.mxu0 0.0
    %2195 = vmatmul.mubr.f32.gmra.mrb[0].mxu0 %v2119
    %v2196 = vpop.f32.mrb[0].mxu0
    %v2197 = vadd.f32 0.0, %v2196
    %v2198 = vpop.f32.mrb[0].mxu0
    %2199 = vdwg.mxu0
    %v2200 = vmul.f32 %v2192, 0.35355338
    %v2201 = vmul.f32 %v2197, 0.35355338
    %v2202 = vadd.f32 %v2200, %v23
    %v2203 = vadd.f32 %v2201, %v24
    %v2204 = vsel %vm274, %v2202, -inf
    %2205 = vmax.xlane.f32.xlu0 %v2204
    %v2206 = vpop.xlane.xlu0 %2205
    %v2207 = vsel %vm274, %v2203, -inf
    %2208 = vmax.xlane.f32.xlu0 %v2207
    %v2209 = vpop.xlane.xlu0 %2208
    %v2210 = vsub.f32 %v2202, %v2206
    %v2211 = vsub.f32 %v2203, %v2209
    %v2212 = vmul.f32 %v2210, 1.442695
    %v2213 = vpow.pop %v2212
    %v2214 = vmul.f32 %v2211, 1.442695
    %v2215 = vpow.pop %v2214
    %v2216 = vsel %vm274, %v2213, 0.0
    %2217 = vadd.xlane.f32.xlu0 %v2216
    %v2218 = vpop.xlane.xlu0 %2217
    %v2219 = vsel %vm274, %v2215, 0.0
    %2220 = vadd.xlane.f32.xlu0 %v2219
    %v2221 = vpop.xlane.xlu0 %2220
    %v2222 = vrcp.pop %v2218
    %v2223 = vrcp.pop %v2221
    %v2224 = vmul.f32 %v2213, %v2222
    %v2225 = vmul.f32 %v2215, %v2223
    %2226 = vrot.lane.b32.xlu0 %v1491, 40
    %v2227 = vpop.permute.xlu0 %2226
    %2228 = vrot.lane.b32.xlu0 %v1496, 40
    %v2229 = vpop.permute.xlu0 %2228
    %v2233 = vsel %vm274, %v2224, 0
    %v2236 = vsel %vm274, %v2225, 0
    %2238 = vmatprep.subr.mxu0 0.0
    %2239 = vmatpush1.msra.mxu0 %v2227
    %2240 = vmatprep.subr.mxu0 0.0
    %2241 = vmatpush1.msra.mxu0 %v2229
    %2242 = vmatprep.subr.mxu0 0.0
    %2243 = vmatpush1.msra.mxu0 0.0
    %2244 = vmatprep.subr.mxu0 0.0
    %2245 = vmatpush1.msra.mxu0 0.0
    %2246 = vmatprep.subr.mxu0 0.0
    %2247 = vmatpush1.msra.mxu0 0.0
    %2248 = vmatprep.subr.mxu0 0.0
    %2249 = vmatpush1.msra.mxu0 0.0
    %2250 = vmatprep.subr.mxu0 0.0
    %2251 = vmatpush1.msra.mxu0 0.0
    %2252 = vmatprep.subr.mxu0 0.0
    %2253 = vmatpush1.msra.mxu0 0.0
    %2254 = vmatprep.subr.mxu0 0.0
    %2255 = vmatpush1.msra.mxu0 0.0
    %2256 = vmatprep.subr.mxu0 0.0
    %2257 = vmatpush1.msra.mxu0 0.0
    %2258 = vmatprep.subr.mxu0 0.0
    %2259 = vmatpush1.msra.mxu0 0.0
    %2260 = vmatprep.subr.mxu0 0.0
    %2261 = vmatpush1.msra.mxu0 0.0
    %2262 = vmatprep.subr.mxu0 0.0
    %2263 = vmatpush1.msra.mxu0 0.0
    %2264 = vmatprep.subr.mxu0 0.0
    %2265 = vmatpush1.msra.mxu0 0.0
    %2266 = vmatprep.subr.mxu0 0.0
    %2267 = vmatpush1.msra.mxu0 0.0
    %2268 = vmatprep.subr.mxu0 0.0
    %2269 = vmatpush1.msra.mxu0 0.0
    %2270 = vmatprep.subr.mxu0 0.0
    %2271 = vmatpush1.msra.mxu0 0.0
    %2272 = vmatprep.subr.mxu0 0.0
    %2273 = vmatpush1.msra.mxu0 0.0
    %2274 = vmatprep.subr.mxu0 0.0
    %2275 = vmatpush1.msra.mxu0 0.0
    %2276 = vmatprep.subr.mxu0 0.0
    %2277 = vmatpush1.msra.mxu0 0.0
    %2278 = vmatprep.subr.mxu0 0.0
    %2279 = vmatpush1.msra.mxu0 0.0
    %2280 = vmatprep.subr.mxu0 0.0
    %2281 = vmatpush1.msra.mxu0 0.0
    %2282 = vmatprep.subr.mxu0 0.0
    %2283 = vmatpush1.msra.mxu0 0.0
    %2284 = vmatprep.subr.mxu0 0.0
    %2285 = vmatpush1.msra.mxu0 0.0
    %2286 = vmatprep.subr.mxu0 0.0
    %2287 = vmatpush1.msra.mxu0 0.0
    %2288 = vmatprep.subr.mxu0 0.0
    %2289 = vmatpush1.msra.mxu0 0.0
    %2290 = vmatprep.subr.mxu0 0.0
    %2291 = vmatpush1.msra.mxu0 0.0
    %2292 = vmatprep.subr.mxu0 0.0
    %2293 = vmatpush1.msra.mxu0 0.0
    %2294 = vmatprep.subr.mxu0 0.0
    %2295 = vmatpush1.msra.mxu0 0.0
    %2296 = vmatprep.subr.mxu0 0.0
    %2297 = vmatpush1.msra.mxu0 0.0
    %2298 = vmatprep.subr.mxu0 0.0
    %2299 = vmatpush1.msra.mxu0 0.0
    %2300 = vmatprep.subr.mxu0 0.0
    %2301 = vmatpush1.msra.mxu0 0.0
    %2302 = vmatprep.mubr.f32.mxu0 0.0
    %2303 = vmatmul.mubr.f32.gmra.mrb[0].mxu0 %v2233
    %v2304 = vpop.f32.mrb[0].mxu0
    %v2305 = vadd.f32 0.0, %v2304
    %v2306 = vpop.f32.mrb[0].mxu0
    %2307 = vmatprep.mubr.f32.mxu0 0.0
    %2308 = vmatmul.mubr.f32.gmra.mrb[0].mxu0 %v2236
    %v2309 = vpop.f32.mrb[0].mxu0
    %v2310 = vadd.f32 0.0, %v2309
    %v2311 = vpop.f32.mrb[0].mxu0
    %2312 = vdwg.mxu0
    %2315 = vrot.lane.b32.xlu0 %v1897, 8
    %v2316 = vpop.permute.xlu0 %2315
    %2317 = vrot.lane.b32.xlu0 %v1902, 8
    %v2318 = vpop.permute.xlu0 %2317
    %2323 = vrot.lane.b32.xlu0 %v2101, 16
    %v2324 = vpop.permute.xlu0 %2323
    %2325 = vrot.lane.b32.xlu0 %v2106, 16
    %v2326 = vpop.permute.xlu0 %2325
    %2331 = vrot.lane.b32.xlu0 %v2305, 24
    %v2332 = vpop.permute.xlu0 %2331
    %2333 = vrot.lane.b32.xlu0 %v2310, 24
    %v2334 = vpop.permute.xlu0 %2333
    %v2337 = vsel %vm186, %v1693, %v2316
    %v2338 = vsel %vm186, %v1698, %v2318
    %v2339 = vsel %vm274, %v2337, %v2324
    %v2340 = vsel %vm274, %v2338, %v2326
    %v2341 = vsel %vm1024, %v2339, %v2332
    %v2342 = vsel %vm1024, %v2340, %v2334
    %v2343 = vlaneseq
    %v2344 = vshrl.u32 %v2343, 7
    %v2345 = vsub.s32 2, %v2344
    %v2346 = vrot.slane %v1353, %v2345
    %2351 = vrot.lane.b32.xlu0 %v1355, 32
    %v2352 = vpop.permute.xlu0 %2351
    %2353 = vrot.lane.b32.xlu0 %v1357, 32
    %v2354 = vpop.permute.xlu0 %2353
    %2355 = vrot.lane.b32.xlu0 %v1359, 32
    %v2356 = vpop.permute.xlu0 %2355
    %2357 = vrot.lane.b32.xlu0 %v1361, 32
    %v2358 = vpop.permute.xlu0 %2357
    %v2364 = vsel %vm59, %v2341, 0
    %v2367 = vsel %vm59, %v2342, 0
    %2369 = vmatprep.subr.mxu0 0.0
    %2370 = vmatpush1.msra.mxu0 %v2352
    %2371 = vmatprep.subr.mxu0 0.0
    %2372 = vmatpush1.msra.mxu0 %v2354
    %2373 = vmatprep.subr.mxu0 0.0
    %2374 = vmatpush1.msra.mxu0 %v2356
    %2375 = vmatprep.subr.mxu0 0.0
    %2376 = vmatpush1.msra.mxu0 %v2358
    %2377 = vmatprep.subr.mxu0 0.0
    %2378 = vmatpush1.msra.mxu0 0.0
    %2379 = vmatprep.subr.mxu0 0.0
    %2380 = vmatpush1.msra.mxu0 0.0
    %2381 = vmatprep.subr.mxu0 0.0
    %2382 = vmatpush1.msra.mxu0 0.0
    %2383 = vmatprep.subr.mxu0 0.0
    %2384 = vmatpush1.msra.mxu0 0.0
    %2385 = vmatprep.subr.mxu0 0.0
    %2386 = vmatpush1.msra.mxu0 0.0
    %2387 = vmatprep.subr.mxu0 0.0
    %2388 = vmatpush1.msra.mxu0 0.0
    %2389 = vmatprep.subr.mxu0 0.0
    %2390 = vmatpush1.msra.mxu0 0.0
    %2391 = vmatprep.subr.mxu0 0.0
    %2392 = vmatpush1.msra.mxu0 0.0
    %2393 = vmatprep.subr.mxu0 0.0
    %2394 = vmatpush1.msra.mxu0 0.0
    %2395 = vmatprep.subr.mxu0 0.0
    %2396 = vmatpush1.msra.mxu0 0.0
    %2397 = vmatprep.subr.mxu0 0.0
    %2398 = vmatpush1.msra.mxu0 0.0
    %2399 = vmatprep.subr.mxu0 0.0
    %2400 = vmatpush1.msra.mxu0 0.0
    %2401 = vmatprep.subr.mxu0 0.0
    %2402 = vmatpush1.msra.mxu0 0.0
    %2403 = vmatprep.subr.mxu0 0.0
    %2404 = vmatpush1.msra.mxu0 0.0
    %2405 = vmatprep.subr.mxu0 0.0
    %2406 = vmatpush1.msra.mxu0 0.0
    %2407 = vmatprep.subr.mxu0 0.0
    %2408 = vmatpush1.msra.mxu0 0.0
    %2409 = vmatprep.subr.mxu0 0.0
    %2410 = vmatpush1.msra.mxu0 0.0
    %2411 = vmatprep.subr.mxu0 0.0
    %2412 = vmatpush1.msra.mxu0 0.0
    %2413 = vmatprep.subr.mxu0 0.0
    %2414 = vmatpush1.msra.mxu0 0.0
    %2415 = vmatprep.subr.mxu0 0.0
    %2416 = vmatpush1.msra.mxu0 0.0
    %2417 = vmatprep.subr.mxu0 0.0
    %2418 = vmatpush1.msra.mxu0 0.0
    %2419 = vmatprep.subr.mxu0 0.0
    %2420 = vmatpush1.msra.mxu0 0.0
    %2421 = vmatprep.subr.mxu0 0.0
    %2422 = vmatpush1.msra.mxu0 0.0
    %2423 = vmatprep.subr.mxu0 0.0
    %2424 = vmatpush1.msra.mxu0 0.0
    %2425 = vmatprep.subr.mxu0 0.0
    %2426 = vmatpush1.msra.mxu0 0.0
    %2427 = vmatprep.subr.mxu0 0.0
    %2428 = vmatpush1.msra.mxu0 0.0
    %2429 = vmatprep.subr.mxu0 0.0
    %2430 = vmatpush1.msra.mxu0 0.0
    %2431 = vmatprep.subr.mxu0 0.0
    %2432 = vmatpush1.msra.mxu0 0.0
    %2433 = vmatprep.mubr.f32.mxu0 0.0
    %2434 = vmatmul.mubr.f32.gmra.mrb[0].mxu0 %v2364
    %v2435 = vpop.f32.mrb[0].mxu0
    %v2436 = vadd.f32 %v2346, %v2435
    %v2437 = vpop.f32.mrb[0].mxu0
    %2438 = vmatprep.mubr.f32.mxu0 0.0
    %2439 = vmatmul.mubr.f32.gmra.mrb[0].mxu0 %v2367
    %v2440 = vpop.f32.mrb[0].mxu0
    %v2441 = vadd.f32 %v2346, %v2440
    %v2442 = vpop.f32.mrb[0].mxu0
    %2443 = vdwg.mxu0
    %v2444 = vadd.f32 %v2436, %v1350
    %v2445 = vadd.f32 %v2441, %v1351
    %v2446 = vsel %vm59, %v2444, 0.0
    %2447 = vadd.xlane.f32.xlu0 %v2446
    %v2448 = vpop.xlane.xlu0 %2447
    %v2449 = vsel %vm59, %v2445, 0.0
    %2450 = vadd.xlane.f32.xlu0 %v2449
    %v2451 = vpop.xlane.xlu0 %2450
    %v2452 = vmul.f32 %v2448, %v66
    %v2453 = vmul.f32 %v2451, %v66
    %v2454 = vsub.f32 %v2444, %v2452
    %v2455 = vsub.f32 %v2445, %v2453
    %v2456 = vmul.f32 %v2454, %v2454
    %v2457 = vmul.f32 %v2455, %v2455
    %v2458 = vsel %vm59, %v2456, 0.0
    %2459 = vadd.xlane.f32.xlu0 %v2458
    %v2460 = vpop.xlane.xlu0 %2459
    %v2461 = vsel %vm59, %v2457, 0.0
    %2462 = vadd.xlane.f32.xlu0 %v2461
    %v2463 = vpop.xlane.xlu0 %2462
    %v2464 = vmul.f32 %v2460, %v66
    %v2465 = vmul.f32 %v2463, %v66
    %v2466 = vadd.f32 %v2464, 1e-05
    %v2467 = vadd.f32 %v2465, 1e-05
    %v2468 = vrsqrt.pop %v2466
    %v2469 = vrsqrt.pop %v2467
    %v2470 = vmul.f32 %v2454, %v2468
    %v2471 = vmul.f32 %v2455, %v2469
    %v2472 = vlaneseq
    %v2473 = vshrl.u32 %v2472, 7
    %v2474 = vsub.s32 3, %v2473
    %v2475 = vrot.slane %v1353, %v2474
    %v2476 = vmul.f32 %v2470, %v2475
    %v2477 = vmul.f32 %v2471, %v2475
    %v2478 = vlaneseq
    %v2479 = vshrl.u32 %v2478, 7
    %v2480 = vsub.s32 4, %v2479
    %v2481 = vrot.slane %v1353, %v2480
    %v2482 = vadd.f32 %v2476, %v2481
    %v2483 = vadd.f32 %v2477, %v2481
    %v2484 = vlaneseq
    %v2485 = vshrl.u32 %v2484, 7
    %v2486 = vsub.s32 6, %v2485
    %v2487 = vrot.slane %v1353, %v2486
    %v2489 = vsel %vm59, %v2482, 0
    %v2492 = vsel %vm59, %v2483, 0
    %2494 = vmatprep.subr.mxu0 0.0
    %2495 = vmatpush1.msra.mxu0 %v1356
    %2496 = vmatprep.subr.mxu0 0.0
    %2497 = vmatpush1.msra.mxu0 %v1358
    %2498 = vmatprep.subr.mxu0 0.0
    %2499 = vmatpush1.msra.mxu0 %v1360
    %2500 = vmatprep.subr.mxu0 0.0
    %2501 = vmatpush1.msra.mxu0 %v1362
    %2502 = vmatprep.subr.mxu0 0.0
    %2503 = vmatpush1.msra.mxu0 0.0
    %2504 = vmatprep.subr.mxu0 0.0
    %2505 = vmatpush1.msra.mxu0 0.0
    %2506 = vmatprep.subr.mxu0 0.0
    %2507 = vmatpush1.msra.mxu0 0.0
    %2508 = vmatprep.subr.mxu0 0.0
    %2509 = vmatpush1.msra.mxu0 0.0
    %2510 = vmatprep.subr.mxu0 0.0
    %2511 = vmatpush1.msra.mxu0 0.0
    %2512 = vmatprep.subr.mxu0 0.0
    %2513 = vmatpush1.msra.mxu0 0.0
    %2514 = vmatprep.subr.mxu0 0.0
    %2515 = vmatpush1.msra.mxu0 0.0
    %2516 = vmatprep.subr.mxu0 0.0
    %2517 = vmatpush1.msra.mxu0 0.0
    %2518 = vmatprep.subr.mxu0 0.0
    %2519 = vmatpush1.msra.mxu0 0.0
    %2520 = vmatprep.subr.mxu0 0.0
    %2521 = vmatpush1.msra.mxu0 0.0
    %2522 = vmatprep.subr.mxu0 0.0
    %2523 = vmatpush1.msra.mxu0 0.0
    %2524 = vmatprep.subr.mxu0 0.0
    %2525 = vmatpush1.msra.mxu0 0.0
    %2526 = vmatprep.subr.mxu0 0.0
    %2527 = vmatpush1.msra.mxu0 0.0
    %2528 = vmatprep.subr.mxu0 0.0
    %2529 = vmatpush1.msra.mxu0 0.0
    %2530 = vmatprep.subr.mxu0 0.0
    %2531 = vmatpush1.msra.mxu0 0.0
    %2532 = vmatprep.subr.mxu0 0.0
    %2533 = vmatpush1.msra.mxu0 0.0
    %2534 = vmatprep.subr.mxu0 0.0
    %2535 = vmatpush1.msra.mxu0 0.0
    %2536 = vmatprep.subr.mxu0 0.0
    %2537 = vmatpush1.msra.mxu0 0.0
    %2538 = vmatprep.subr.mxu0 0.0
    %2539 = vmatpush1.msra.mxu0 0.0
    %2540 = vmatprep.subr.mxu0 0.0
    %2541 = vmatpush1.msra.mxu0 0.0
    %2542 = vmatprep.subr.mxu0 0.0
    %2543 = vmatpush1.msra.mxu0 0.0
    %2544 = vmatprep.subr.mxu0 0.0
    %2545 = vmatpush1.msra.mxu0 0.0
    %2546 = vmatprep.subr.mxu0 0.0
    %2547 = vmatpush1.msra.mxu0 0.0
    %2548 = vmatprep.subr.mxu0 0.0
    %2549 = vmatpush1.msra.mxu0 0.0
    %2550 = vmatprep.subr.mxu0 0.0
    %2551 = vmatpush1.msra.mxu0 0.0
    %2552 = vmatprep.subr.mxu0 0.0
    %2553 = vmatpush1.msra.mxu0 0.0
    %2554 = vmatprep.subr.mxu0 0.0
    %2555 = vmatpush1.msra.mxu0 0.0
    %2556 = vmatprep.subr.mxu0 0.0
    %2557 = vmatpush1.msra.mxu0 0.0
    %2558 = vmatprep.mubr.f32.mxu0 0.0
    %2559 = vmatmul.mubr.f32.gmra.mrb[0].mxu0 %v2489
    %v2560 = vpop.f32.mrb[0].mxu0
    %v2561 = vadd.f32 %v2487, %v2560
    %v2562 = vpop.f32.mrb[0].mxu0
    %2563 = vmatprep.mubr.f32.mxu0 0.0
    %2564 = vmatmul.mubr.f32.gmra.mrb[0].mxu0 %v2492
    %v2565 = vpop.f32.mrb[0].mxu0
    %v2566 = vadd.f32 %v2487, %v2565
    %v2567 = vpop.f32.mrb[0].mxu0
    %2568 = vdwg.mxu0
    %v2569 = vmul.f32 %v2561, 0.5
    %v2570 = vmul.f32 %v2566, 0.5
    %v2571 = vmul.f32 %v2561, 0.044715
    %v2572 = vmul.f32 %v2566, 0.044715
    %v2573 = vmul.f32 %v2571, %v2561
    %v2574 = vmul.f32 %v2572, %v2566
    %v2575 = vmul.f32 %v2573, %v2561
    %v2576 = vmul.f32 %v2574, %v2566
    %v2577 = vadd.f32 %v2561, %v2575
    %v2578 = vadd.f32 %v2566, %v2576
    %v2579 = vmul.f32 %v2577, 0.7978846
    %v2580 = vmul.f32 %v2578, 0.7978846
    %v2581 = vtanh.pop %v2579
    %v2582 = vtanh.pop %v2580
    %v2583 = vadd.f32 %v2581, 1.0
    %v2584 = vadd.f32 %v2582, 1.0
    %v2585 = vmul.f32 %v2569, %v2583
    %v2586 = vmul.f32 %v2570, %v2584
    %v2587 = vlaneseq
    %v2588 = vshrl.u32 %v2587, 7
    %v2589 = vsub.s32 5, %v2588
    %v2590 = vrot.slane %v1353, %v2589
    %2591 = vmatprep.subr.mxu0 0.0
    %2592 = vmatpush1.msra.mxu0 %v1364
    %2593 = vmatprep.subr.mxu0 0.0
    %2594 = vmatpush1.msra.mxu0 %v1365
    %2595 = vmatprep.subr.mxu0 0.0
    %2596 = vmatpush1.msra.mxu0 %v1366
    %2597 = vmatprep.subr.mxu0 0.0
    %2598 = vmatpush1.msra.mxu0 %v1367
    %2599 = vmatprep.subr.mxu0 0.0
    %2600 = vmatpush1.msra.mxu0 %v1368
    %2601 = vmatprep.subr.mxu0 0.0
    %2602 = vmatpush1.msra.mxu0 %v1369
    %2603 = vmatprep.subr.mxu0 0.0
    %2604 = vmatpush1.msra.mxu0 %v1370
    %2605 = vmatprep.subr.mxu0 0.0
    %2606 = vmatpush1.msra.mxu0 %v1371
    %2607 = vmatprep.subr.mxu0 0.0
    %2608 = vmatpush1.msra.mxu0 %v1372
    %2609 = vmatprep.subr.mxu0 0.0
    %2610 = vmatpush1.msra.mxu0 %v1373
    %2611 = vmatprep.subr.mxu0 0.0
    %2612 = vmatpush1.msra.mxu0 %v1374
    %2613 = vmatprep.subr.mxu0 0.0
    %2614 = vmatpush1.msra.mxu0 %v1375
    %2615 = vmatprep.subr.mxu0 0.0
    %2616 = vmatpush1.msra.mxu0 %v1376
    %2617 = vmatprep.subr.mxu0 0.0
    %2618 = vmatpush1.msra.mxu0 %v1377
    %2619 = vmatprep.subr.mxu0 0.0
    %2620 = vmatpush1.msra.mxu0 %v1378
    %2621 = vmatprep.subr.mxu0 0.0
    %2622 = vmatpush1.msra.mxu0 %v1379
    %2623 = vmatprep.subr.mxu0 0.0
    %2624 = vmatpush1.msra.mxu0 0.0
    %2625 = vmatprep.subr.mxu0 0.0
    %2626 = vmatpush1.msra.mxu0 0.0
    %2627 = vmatprep.subr.mxu0 0.0
    %2628 = vmatpush1.msra.mxu0 0.0
    %2629 = vmatprep.subr.mxu0 0.0
    %2630 = vmatpush1.msra.mxu0 0.0
    %2631 = vmatprep.subr.mxu0 0.0
    %2632 = vmatpush1.msra.mxu0 0.0
    %2633 = vmatprep.subr.mxu0 0.0
    %2634 = vmatpush1.msra.mxu0 0.0
    %2635 = vmatprep.subr.mxu0 0.0
    %2636 = vmatpush1.msra.mxu0 0.0
    %2637 = vmatprep.subr.mxu0 0.0
    %2638 = vmatpush1.msra.mxu0 0.0
    %2639 = vmatprep.subr.mxu0 0.0
    %2640 = vmatpush1.msra.mxu0 0.0
    %2641 = vmatprep.subr.mxu0 0.0
    %2642 = vmatpush1.msra.mxu0 0.0
    %2643 = vmatprep.subr.mxu0 0.0
    %2644 = vmatpush1.msra.mxu0 0.0
    %2645 = vmatprep.subr.mxu0 0.0
    %2646 = vmatpush1.msra.mxu0 0.0
    %2647 = vmatprep.subr.mxu0 0.0
    %2648 = vmatpush1.msra.mxu0 0.0
    %2649 = vmatprep.subr.mxu0 0.0
    %2650 = vmatpush1.msra.mxu0 0.0
    %2651 = vmatprep.subr.mxu0 0.0
    %2652 = vmatpush1.msra.mxu0 0.0
    %2653 = vmatprep.subr.mxu0 0.0
    %2654 = vmatpush1.msra.mxu0 0.0
    %2655 = vmatprep.mubr.f32.mxu0 0.0
    %2656 = vmatmul.mubr.f32.gmra.mrb[0].mxu0 %v2585
    %v2657 = vpop.f32.mrb[0].mxu0
    %v2658 = vadd.f32 %v2590, %v2657
    %v2659 = vpop.f32.mrb[0].mxu0
    %2660 = vmatprep.mubr.f32.mxu0 0.0
    %2661 = vmatmul.mubr.f32.gmra.mrb[0].mxu0 %v2586
    %v2662 = vpop.f32.mrb[0].mxu0
    %v2663 = vadd.f32 %v2590, %v2662
    %v2664 = vpop.f32.mrb[0].mxu0
    %2665 = vdwg.mxu0
    %v2666 = vadd.f32 %v2658, %v2444
    %v2667 = vadd.f32 %v2663, %v2445
    %s2668 = scalar_lea.vmem %s1, 16
    %v2669 = vld [vmem:[%s2668] sm:$0x7f]
    %s2670 = scalar_lea.vmem %s2, 128
    %v2671 = vld [vmem:[%s2670] sm:$0xff]
    %v2672 = vld [vmem:[%s2670 + $0x8] sm:$0xff]
    %v2673 = vld [vmem:[%s2670 + $0x10] sm:$0xff]
    %v2674 = vld [vmem:[%s2670 + $0x18] sm:$0xff]
    %v2675 = vld [vmem:[%s2670 + $0x20] sm:$0xff]
    %v2676 = vld [vmem:[%s2670 + $0x28] sm:$0xff]
    %v2677 = vld [vmem:[%s2670 + $0x30] sm:$0xff]
    %v2678 = vld [vmem:[%s2670 + $0x38] sm:$0xff]
    %s2679 = scalar_lea.vmem %s3, 256
    %v2680 = vld [vmem:[%s2679] sm:$0xff]
    %v2681 = vld [vmem:[%s2679 + $0x8] sm:$0xff]
    %v2682 = vld [vmem:[%s2679 + $0x10] sm:$0xff]
    %v2683 = vld [vmem:[%s2679 + $0x18] sm:$0xff]
    %v2684 = vld [vmem:[%s2679 + $0x20] sm:$0xff]
    %v2685 = vld [vmem:[%s2679 + $0x28] sm:$0xff]
    %v2686 = vld [vmem:[%s2679 + $0x30] sm:$0xff]
    %v2687 = vld [vmem:[%s2679 + $0x38] sm:$0xff]
    %v2688 = vld [vmem:[%s2679 + $0x40] sm:$0xff]
    %v2689 = vld [vmem:[%s2679 + $0x48] sm:$0xff]
    %v2690 = vld [vmem:[%s2679 + $0x50] sm:$0xff]
    %v2691 = vld [vmem:[%s2679 + $0x58] sm:$0xff]
    %v2692 = vld [vmem:[%s2679 + $0x60] sm:$0xff]
    %v2693 = vld [vmem:[%s2679 + $0x68] sm:$0xff]
    %v2694 = vld [vmem:[%s2679 + $0x70] sm:$0xff]
    %v2695 = vld [vmem:[%s2679 + $0x78] sm:$0xff]
    %v2696 = vsel %vm59, %v2666, 0.0
    %2697 = vadd.xlane.f32.xlu0 %v2696
    %v2698 = vpop.xlane.xlu0 %2697
    %v2699 = vsel %vm59, %v2667, 0.0
    %2700 = vadd.xlane.f32.xlu0 %v2699
    %v2701 = vpop.xlane.xlu0 %2700
    %v2702 = vmul.f32 %v2698, %v66
    %v2703 = vmul.f32 %v2701, %v66
    %v2704 = vsub.f32 %v2666, %v2702
    %v2705 = vsub.f32 %v2667, %v2703
    %v2706 = vmul.f32 %v2704, %v2704
    %v2707 = vmul.f32 %v2705, %v2705
    %v2708 = vsel %vm59, %v2706, 0.0
    %2709 = vadd.xlane.f32.xlu0 %v2708
    %v2710 = vpop.xlane.xlu0 %2709
    %v2711 = vsel %vm59, %v2707, 0.0
    %2712 = vadd.xlane.f32.xlu0 %v2711
    %v2713 = vpop.xlane.xlu0 %2712
    %v2714 = vmul.f32 %v2710, %v66
    %v2715 = vmul.f32 %v2713, %v66
    %v2716 = vadd.f32 %v2714, 1e-05
    %v2717 = vadd.f32 %v2715, 1e-05
    %v2718 = vrsqrt.pop %v2716
    %v2719 = vrsqrt.pop %v2717
    %v2720 = vmul.f32 %v2704, %v2718
    %v2721 = vmul.f32 %v2705, %v2719
    %v2722 = vlaneseq
    %v2723 = vshrl.u32 %v2722, 7
    %v2724 = vsub.s32 0, %v2723
    %v2725 = vrot.slane %v2669, %v2724
    %v2726 = vmul.f32 %v2720, %v2725
    %v2727 = vmul.f32 %v2721, %v2725
    %v2728 = vlaneseq
    %v2729 = vshrl.u32 %v2728, 7
    %v2730 = vsub.s32 1, %v2729
    %v2731 = vrot.slane %v2669, %v2730
    %v2732 = vadd.f32 %v2726, %v2731
    %v2733 = vadd.f32 %v2727, %v2731
    %v2735 = vsel %vm59, %v2732, 0
    %v2738 = vsel %vm59, %v2733, 0
    %2740 = vmatprep.subr.mxu0 0.0
    %2741 = vmatpush1.msra.mxu0 %v2671
    %2742 = vmatprep.subr.mxu0 0.0
    %2743 = vmatpush1.msra.mxu0 %v2673
    %2744 = vmatprep.subr.mxu0 0.0
    %2745 = vmatpush1.msra.mxu0 %v2675
    %2746 = vmatprep.subr.mxu0 0.0
    %2747 = vmatpush1.msra.mxu0 %v2677
    %2748 = vmatprep.subr.mxu0 0.0
    %2749 = vmatpush1.msra.mxu0 0.0
    %2750 = vmatprep.subr.mxu0 0.0
    %2751 = vmatpush1.msra.mxu0 0.0
    %2752 = vmatprep.subr.mxu0 0.0
    %2753 = vmatpush1.msra.mxu0 0.0
    %2754 = vmatprep.subr.mxu0 0.0
    %2755 = vmatpush1.msra.mxu0 0.0
    %2756 = vmatprep.subr.mxu0 0.0
    %2757 = vmatpush1.msra.mxu0 0.0
    %2758 = vmatprep.subr.mxu0 0.0
    %2759 = vmatpush1.msra.mxu0 0.0
    %2760 = vmatprep.subr.mxu0 0.0
    %2761 = vmatpush1.msra.mxu0 0.0
    %2762 = vmatprep.subr.mxu0 0.0
    %2763 = vmatpush1.msra.mxu0 0.0
    %2764 = vmatprep.subr.mxu0 0.0
    %2765 = vmatpush1.msra.mxu0 0.0
    %2766 = vmatprep.subr.mxu0 0.0
    %2767 = vmatpush1.msra.mxu0 0.0
    %2768 = vmatprep.subr.mxu0 0.0
    %2769 = vmatpush1.msra.mxu0 0.0
    %2770 = vmatprep.subr.mxu0 0.0
    %2771 = vmatpush1.msra.mxu0 0.0
    %2772 = vmatprep.subr.mxu0 0.0
    %2773 = vmatpush1.msra.mxu0 0.0
    %2774 = vmatprep.subr.mxu0 0.0
    %2775 = vmatpush1.msra.mxu0 0.0
    %2776 = vmatprep.subr.mxu0 0.0
    %2777 = vmatpush1.msra.mxu0 0.0
    %2778 = vmatprep.subr.mxu0 0.0
    %2779 = vmatpush1.msra.mxu0 0.0
    %2780 = vmatprep.subr.mxu0 0.0
    %2781 = vmatpush1.msra.mxu0 0.0
    %2782 = vmatprep.subr.mxu0 0.0
    %2783 = vmatpush1.msra.mxu0 0.0
    %2784 = vmatprep.subr.mxu0 0.0
    %2785 = vmatpush1.msra.mxu0 0.0
    %2786 = vmatprep.subr.mxu0 0.0
    %2787 = vmatpush1.msra.mxu0 0.0
    %2788 = vmatprep.subr.mxu0 0.0
    %2789 = vmatpush1.msra.mxu0 0.0
    %2790 = vmatprep.subr.mxu0 0.0
    %2791 = vmatpush1.msra.mxu0 0.0
    %2792 = vmatprep.subr.mxu0 0.0
    %2793 = vmatpush1.msra.mxu0 0.0
    %2794 = vmatprep.subr.mxu0 0.0
    %2795 = vmatpush1.msra.mxu0 0.0
    %2796 = vmatprep.subr.mxu0 0.0
    %2797 = vmatpush1.msra.mxu0 0.0
    %2798 = vmatprep.subr.mxu0 0.0
    %2799 = vmatpush1.msra.mxu0 0.0
    %2800 = vmatprep.subr.mxu0 0.0
    %2801 = vmatpush1.msra.mxu0 0.0
    %2802 = vmatprep.subr.mxu0 0.0
    %2803 = vmatpush1.msra.mxu0 0.0
    %2804 = vmatprep.mubr.f32.mxu0 0.0
    %2805 = vmatmul.mubr.f32.gmra.mrb[0].mxu0 %v2735
    %v2806 = vpop.f32.mrb[0].mxu0
    %v2807 = vadd.f32 0.0, %v2806
    %v2808 = vpop.f32.mrb[0].mxu0
    %2809 = vmatprep.mubr.f32.mxu0 0.0
    %2810 = vmatmul.mubr.f32.gmra.mrb[0].mxu0 %v2738
    %v2811 = vpop.f32.mrb[0].mxu0
    %v2812 = vadd.f32 0.0, %v2811
    %v2813 = vpop.f32.mrb[0].mxu0
    %2814 = vdwg.mxu0
    %v2816 = vsel %vm274, %v30, 0
    %2818 = vmatprep.subr.mxu0 0.0
    %2819 = vmatpush1.msra.mxu0 %v2807
    %2820 = vmatprep.subr.mxu0 0.0
    %2821 = vmatpush1.msra.mxu0 %v2812
    %2822 = vmatprep.subr.mxu0 0.0
    %2823 = vmatpush1.msra.mxu0 0.0
    %2824 = vmatprep.subr.mxu0 0.0
    %2825 = vmatpush1.msra.mxu0 0.0
    %2826 = vmatprep.subr.mxu0 0.0
    %2827 = vmatpush1.msra.mxu0 0.0
    %2828 = vmatprep.subr.mxu0 0.0
    %2829 = vmatpush1.msra.mxu0 0.0
    %2830 = vmatprep.subr.mxu0 0.0
    %2831 = vmatpush1.msra.mxu0 0.0
    %2832 = vmatprep.subr.mxu0 0.0
    %2833 = vmatpush1.msra.mxu0 0.0
    %2834 = vmatprep.subr.mxu0 0.0
    %2835 = vmatpush1.msra.mxu0 0.0
    %2836 = vmatprep.subr.mxu0 0.0
    %2837 = vmatpush1.msra.mxu0 0.0
    %2838 = vmatprep.subr.mxu0 0.0
    %2839 = vmatpush1.msra.mxu0 0.0
    %2840 = vmatprep.subr.mxu0 0.0
    %2841 = vmatpush1.msra.mxu0 0.0
    %2842 = vmatprep.subr.mxu0 0.0
    %2843 = vmatpush1.msra.mxu0 0.0
    %2844 = vmatprep.subr.mxu0 0.0
    %2845 = vmatpush1.msra.mxu0 0.0
    %2846 = vmatprep.subr.mxu0 0.0
    %2847 = vmatpush1.msra.mxu0 0.0
    %2848 = vmatprep.subr.mxu0 0.0
    %2849 = vmatpush1.msra.mxu0 0.0
    %2850 = vmatprep.subr.mxu0 0.0
    %2851 = vmatpush1.msra.mxu0 0.0
    %2852 = vmatprep.subr.mxu0 0.0
    %2853 = vmatpush1.msra.mxu0 0.0
    %2854 = vmatprep.subr.mxu0 0.0
    %2855 = vmatpush1.msra.mxu0 0.0
    %2856 = vmatprep.subr.mxu0 0.0
    %2857 = vmatpush1.msra.mxu0 0.0
    %2858 = vmatprep.subr.mxu0 0.0
    %2859 = vmatpush1.msra.mxu0 0.0
    %2860 = vmatprep.subr.mxu0 0.0
    %2861 = vmatpush1.msra.mxu0 0.0
    %2862 = vmatprep.subr.mxu0 0.0
    %2863 = vmatpush1.msra.mxu0 0.0
    %2864 = vmatprep.subr.mxu0 0.0
    %2865 = vmatpush1.msra.mxu0 0.0
    %2866 = vmatprep.subr.mxu0 0.0
    %2867 = vmatpush1.msra.mxu0 0.0
    %2868 = vmatprep.subr.mxu0 0.0
    %2869 = vmatpush1.msra.mxu0 0.0
    %2870 = vmatprep.subr.mxu0 0.0
    %2871 = vmatpush1.msra.mxu0 0.0
    %2872 = vmatprep.subr.mxu0 0.0
    %2873 = vmatpush1.msra.mxu0 0.0
    %2874 = vmatprep.subr.mxu0 0.0
    %2875 = vmatpush1.msra.mxu0 0.0
    %2876 = vmatprep.subr.mxu0 0.0
    %2877 = vmatpush1.msra.mxu0 0.0
    %2878 = vmatprep.subr.mxu0 0.0
    %2879 = vmatpush1.msra.mxu0 0.0
    %2880 = vmatprep.subr.mxu0 0.0
    %2881 = vmatpush1.msra.mxu0 0.0
    %2882 = vmatprep.mubr.f32.mxu0 0.0
    %2883 = vmatmul.mubr.f32.gmra.mrb[0].mxu0 %v2816
    %v2884 = vpop.f32.mrb[0].mxu0
    %v2885 = vadd.f32 0.0, %v2884
    %v2886 = vpop.f32.mrb[0].mxu0
    %2887 = vdwg.mxu0
    %2890 = vrot.lane.b32.xlu0 %v2807, 96
    %v2891 = vpop.permute.xlu0 %2890
    %2892 = vrot.lane.b32.xlu0 %v2812, 96
    %v2893 = vpop.permute.xlu0 %2892
    %v2895 = vsel %vm186, %v2885, 0
    %v2897 = vsel %vm186, %v2891, 0
    %v2899 = vsel %vm186, %v2893, 0
    %2901 = vmatprep.subr.mxu0 0.0
    %2902 = vmatpush1.xpose.msra.mxu0 %v2897
    %2903 = vmatprep.subr.mxu0 0.0
    %2904 = vmatpush1.xpose.msra.mxu0 %v2899
    %2905 = vmatprep.subr.mxu0 0.0
    %2906 = vmatpush1.xpose.msra.mxu0 0.0
    %2907 = vmatprep.subr.mxu0 0.0
    %2908 = vmatpush1.xpose.msra.mxu0 0.0
    %2909 = vmatprep.subr.mxu0 0.0
    %2910 = vmatpush1.xpose.msra.mxu0 0.0
    %2911 = vmatprep.subr.mxu0 0.0
    %2912 = vmatpush1.xpose.msra.mxu0 0.0
    %2913 = vmatprep.subr.mxu0 0.0
    %2914 = vmatpush1.xpose.msra.mxu0 0.0
    %2915 = vmatprep.subr.mxu0 0.0
    %2916 = vmatpush1.xpose.msra.mxu0 0.0
    %2917 = vmatprep.subr.mxu0 0.0
    %2918 = vmatpush1.xpose.msra.mxu0 0.0
    %2919 = vmatprep.subr.mxu0 0.0
    %2920 = vmatpush1.xpose.msra.mxu0 0.0
    %2921 = vmatprep.subr.mxu0 0.0
    %2922 = vmatpush1.xpose.msra.mxu0 0.0
    %2923 = vmatprep.subr.mxu0 0.0
    %2924 = vmatpush1.xpose.msra.mxu0 0.0
    %2925 = vmatprep.subr.mxu0 0.0
    %2926 = vmatpush1.xpose.msra.mxu0 0.0
    %2927 = vmatprep.subr.mxu0 0.0
    %2928 = vmatpush1.xpose.msra.mxu0 0.0
    %2929 = vmatprep.subr.mxu0 0.0
    %2930 = vmatpush1.xpose.msra.mxu0 0.0
    %2931 = vmatprep.subr.mxu0 0.0
    %2932 = vmatpush1.xpose.msra.mxu0 0.0
    %2933 = vmatprep.subr.mxu0 0.0
    %2934 = vmatpush1.xpose.msra.mxu0 0.0
    %2935 = vmatprep.subr.mxu0 0.0
    %2936 = vmatpush1.xpose.msra.mxu0 0.0
    %2937 = vmatprep.subr.mxu0 0.0
    %2938 = vmatpush1.xpose.msra.mxu0 0.0
    %2939 = vmatprep.subr.mxu0 0.0
    %2940 = vmatpush1.xpose.msra.mxu0 0.0
    %2941 = vmatprep.subr.mxu0 0.0
    %2942 = vmatpush1.xpose.msra.mxu0 0.0
    %2943 = vmatprep.subr.mxu0 0.0
    %2944 = vmatpush1.xpose.msra.mxu0 0.0
    %2945 = vmatprep.subr.mxu0 0.0
    %2946 = vmatpush1.xpose.msra.mxu0 0.0
    %2947 = vmatprep.subr.mxu0 0.0
    %2948 = vmatpush1.xpose.msra.mxu0 0.0
    %2949 = vmatprep.subr.mxu0 0.0
    %2950 = vmatpush1.xpose.msra.mxu0 0.0
    %2951 = vmatprep.subr.mxu0 0.0
    %2952 = vmatpush1.xpose.msra.mxu0 0.0
    %2953 = vmatprep.subr.mxu0 0.0
    %2954 = vmatpush1.xpose.msra.mxu0 0.0
    %2955 = vmatprep.subr.mxu0 0.0
    %2956 = vmatpush1.xpose.msra.mxu0 0.0
    %2957 = vmatprep.subr.mxu0 0.0
    %2958 = vmatpush1.xpose.msra.mxu0 0.0
    %2959 = vmatprep.subr.mxu0 0.0
    %2960 = vmatpush1.xpose.msra.mxu0 0.0
    %2961 = vmatprep.subr.mxu0 0.0
    %2962 = vmatpush1.xpose.msra.mxu0 0.0
    %2963 = vmatprep.subr.mxu0 0.0
    %2964 = vmatpush1.xpose.msra.mxu0 0.0
    %2965 = vmatprep.mubr.f32.mxu0 0.0
    %2966 = vmatmul.mubr.f32.gmra.mrb[0].mxu0 %v2895
    %v2967 = vpop.f32.mrb[0].mxu0
    %v2968 = vadd.f32 0.0, %v2967
    %v2969 = vpop.f32.mrb[0].mxu0
    %2970 = vdwg.mxu0
    %v2971 = vmul.f32 %v2968, 0.35355338
    %v2972 = vadd.f32 %v2971, %v26
    %v2973 = vsel %vm274, %v2972, -inf
    %2974 = vmax.xlane.f32.xlu0 %v2973
    %v2975 = vpop.xlane.xlu0 %2974
    %v2976 = vsub.f32 %v2972, %v2975
    %v2977 = vmul.f32 %v2976, 1.442695
    %v2978 = vpow.pop %v2977
    %v2979 = vsel %vm274, %v2978, 0.0
    %2980 = vadd.xlane.f32.xlu0 %v2979
    %v2981 = vpop.xlane.xlu0 %2980
    %v2982 = vrcp.pop %v2981
    %v2983 = vmul.f32 %v2978, %v2982
    %2984 = vrot.lane.b32.xlu0 %v2807, 64
    %v2985 = vpop.permute.xlu0 %2984
    %2986 = vrot.lane.b32.xlu0 %v2812, 64
    %v2987 = vpop.permute.xlu0 %2986
    %v2991 = vsel %vm274, %v2983, 0
    %2993 = vmatprep.subr.mxu0 0.0
    %2994 = vmatpush1.msra.mxu0 %v2985
    %2995 = vmatprep.subr.mxu0 0.0
    %2996 = vmatpush1.msra.mxu0 %v2987
    %2997 = vmatprep.subr.mxu0 0.0
    %2998 = vmatpush1.msra.mxu0 0.0
    %2999 = vmatprep.subr.mxu0 0.0
    %3000 = vmatpush1.msra.mxu0 0.0
    %3001 = vmatprep.subr.mxu0 0.0
    %3002 = vmatpush1.msra.mxu0 0.0
    %3003 = vmatprep.subr.mxu0 0.0
    %3004 = vmatpush1.msra.mxu0 0.0
    %3005 = vmatprep.subr.mxu0 0.0
    %3006 = vmatpush1.msra.mxu0 0.0
    %3007 = vmatprep.subr.mxu0 0.0
    %3008 = vmatpush1.msra.mxu0 0.0
    %3009 = vmatprep.subr.mxu0 0.0
    %3010 = vmatpush1.msra.mxu0 0.0
    %3011 = vmatprep.subr.mxu0 0.0
    %3012 = vmatpush1.msra.mxu0 0.0
    %3013 = vmatprep.subr.mxu0 0.0
    %3014 = vmatpush1.msra.mxu0 0.0
    %3015 = vmatprep.subr.mxu0 0.0
    %3016 = vmatpush1.msra.mxu0 0.0
    %3017 = vmatprep.subr.mxu0 0.0
    %3018 = vmatpush1.msra.mxu0 0.0
    %3019 = vmatprep.subr.mxu0 0.0
    %3020 = vmatpush1.msra.mxu0 0.0
    %3021 = vmatprep.subr.mxu0 0.0
    %3022 = vmatpush1.msra.mxu0 0.0
    %3023 = vmatprep.subr.mxu0 0.0
    %3024 = vmatpush1.msra.mxu0 0.0
    %3025 = vmatprep.subr.mxu0 0.0
    %3026 = vmatpush1.msra.mxu0 0.0
    %3027 = vmatprep.subr.mxu0 0.0
    %3028 = vmatpush1.msra.mxu0 0.0
    %3029 = vmatprep.subr.mxu0 0.0
    %3030 = vmatpush1.msra.mxu0 0.0
    %3031 = vmatprep.subr.mxu0 0.0
    %3032 = vmatpush1.msra.mxu0 0.0
    %3033 = vmatprep.subr.mxu0 0.0
    %3034 = vmatpush1.msra.mxu0 0.0
    %3035 = vmatprep.subr.mxu0 0.0
    %3036 = vmatpush1.msra.mxu0 0.0
    %3037 = vmatprep.subr.mxu0 0.0
    %3038 = vmatpush1.msra.mxu0 0.0
    %3039 = vmatprep.subr.mxu0 0.0
    %3040 = vmatpush1.msra.mxu0 0.0
    %3041 = vmatprep.subr.mxu0 0.0
    %3042 = vmatpush1.msra.mxu0 0.0
    %3043 = vmatprep.subr.mxu0 0.0
    %3044 = vmatpush1.msra.mxu0 0.0
    %3045 = vmatprep.subr.mxu0 0.0
    %3046 = vmatpush1.msra.mxu0 0.0
    %3047 = vmatprep.subr.mxu0 0.0
    %3048 = vmatpush1.msra.mxu0 0.0
    %3049 = vmatprep.subr.mxu0 0.0
    %3050 = vmatpush1.msra.mxu0 0.0
    %3051 = vmatprep.subr.mxu0 0.0
    %3052 = vmatpush1.msra.mxu0 0.0
    %3053 = vmatprep.subr.mxu0 0.0
    %3054 = vmatpush1.msra.mxu0 0.0
    %3055 = vmatprep.subr.mxu0 0.0
    %3056 = vmatpush1.msra.mxu0 0.0
    %3057 = vmatprep.mubr.f32.mxu0 0.0
    %3058 = vmatmul.mubr.f32.gmra.mrb[0].mxu0 %v2991
    %v3059 = vpop.f32.mrb[0].mxu0
    %v3060 = vadd.f32 0.0, %v3059
    %v3061 = vpop.f32.mrb[0].mxu0
    %3062 = vdwg.mxu0
    %3063 = vrot.lane.b32.xlu0 %v2885, 120
    %v3064 = vpop.permute.xlu0 %3063
    %3065 = vrot.lane.b32.xlu0 %v2807, 88
    %v3066 = vpop.permute.xlu0 %3065
    %3067 = vrot.lane.b32.xlu0 %v2812, 88
    %v3068 = vpop.permute.xlu0 %3067
    %v3069 = vsel %vm186, %v3064, 0
    %v3071 = vsel %vm186, %v3066, 0
    %v3073 = vsel %vm186, %v3068, 0
    %3075 = vmatprep.subr.mxu0 0.0
    %3076 = vmatpush1.xpose.msra.mxu0 %v3071
    %3077 = vmatprep.subr.mxu0 0.0
    %3078 = vmatpush1.xpose.msra.mxu0 %v3073
    %3079 = vmatprep.subr.mxu0 0.0
    %3080 = vmatpush1.xpose.msra.mxu0 0.0
    %3081 = vmatprep.subr.mxu0 0.0
    %3082 = vmatpush1.xpose.msra.mxu0 0.0
    %3083 = vmatprep.subr.mxu0 0.0
    %3084 = vmatpush1.xpose.msra.mxu0 0.0
    %3085 = vmatprep.subr.mxu0 0.0
    %3086 = vmatpush1.xpose.msra.mxu0 0.0
    %3087 = vmatprep.subr.mxu0 0.0
    %3088 = vmatpush1.xpose.msra.mxu0 0.0
    %3089 = vmatprep.subr.mxu0 0.0
    %3090 = vmatpush1.xpose.msra.mxu0 0.0
    %3091 = vmatprep.subr.mxu0 0.0
    %3092 = vmatpush1.xpose.msra.mxu0 0.0
    %3093 = vmatprep.subr.mxu0 0.0
    %3094 = vmatpush1.xpose.msra.mxu0 0.0
    %3095 = vmatprep.subr.mxu0 0.0
    %3096 = vmatpush1.xpose.msra.mxu0 0.0
    %3097 = vmatprep.subr.mxu0 0.0
    %3098 = vmatpush1.xpose.msra.mxu0 0.0
    %3099 = vmatprep.subr.mxu0 0.0
    %3100 = vmatpush1.xpose.msra.mxu0 0.0
    %3101 = vmatprep.subr.mxu0 0.0
    %3102 = vmatpush1.xpose.msra.mxu0 0.0
    %3103 = vmatprep.subr.mxu0 0.0
    %3104 = vmatpush1.xpose.msra.mxu0 0.0
    %3105 = vmatprep.subr.mxu0 0.0
    %3106 = vmatpush1.xpose.msra.mxu0 0.0
    %3107 = vmatprep.subr.mxu0 0.0
    %3108 = vmatpush1.xpose.msra.mxu0 0.0
    %3109 = vmatprep.subr.mxu0 0.0
    %3110 = vmatpush1.xpose.msra.mxu0 0.0
    %3111 = vmatprep.subr.mxu0 0.0
    %3112 = vmatpush1.xpose.msra.mxu0 0.0
    %3113 = vmatprep.subr.mxu0 0.0
    %3114 = vmatpush1.xpose.msra.mxu0 0.0
    %3115 = vmatprep.subr.mxu0 0.0
    %3116 = vmatpush1.xpose.msra.mxu0 0.0
    %3117 = vmatprep.subr.mxu0 0.0
    %3118 = vmatpush1.xpose.msra.mxu0 0.0
    %3119 = vmatprep.subr.mxu0 0.0
    %3120 = vmatpush1.xpose.msra.mxu0 0.0
    %3121 = vmatprep.subr.mxu0 0.0
    %3122 = vmatpush1.xpose.msra.mxu0 0.0
    %3123 = vmatprep.subr.mxu0 0.0
    %3124 = vmatpush1.xpose.msra.mxu0 0.0
    %3125 = vmatprep.subr.mxu0 0.0
    %3126 = vmatpush1.xpose.msra.mxu0 0.0
    %3127 = vmatprep.subr.mxu0 0.0
    %3128 = vmatpush1.xpose.msra.mxu0 0.0
    %3129 = vmatprep.subr.mxu0 0.0
    %3130 = vmatpush1.xpose.msra.mxu0 0.0
    %3131 = vmatprep.subr.mxu0 0.0
    %3132 = vmatpush1.xpose.msra.mxu0 0.0
    %3133 = vmatprep.subr.mxu0 0.0
    %3134 = vmatpush1.xpose.msra.mxu0 0.0
    %3135 = vmatprep.subr.mxu0 0.0
    %3136 = vmatpush1.xpose.msra.mxu0 0.0
    %3137 = vmatprep.subr.mxu0 0.0
    %3138 = vmatpush1.xpose.msra.mxu0 0.0
    %3139 = vmatprep.mubr.f32.mxu0 0.0
    %3140 = vmatmul.mubr.f32.gmra.mrb[0].mxu0 %v3069
    %v3141 = vpop.f32.mrb[0].mxu0
    %v3142 = vadd.f32 0.0, %v3141
    %v3143 = vpop.f32.mrb[0].mxu0
    %3144 = vdwg.mxu0
    %v3145 = vmul.f32 %v3142, 0.35355338
    %v3146 = vadd.f32 %v3145, %v26
    %v3147 = vsel %vm274, %v3146, -inf
    %3148 = vmax.xlane.f32.xlu0 %v3147
    %v3149 = vpop.xlane.xlu0 %3148
    %v3150 = vsub.f32 %v3146, %v3149
    %v3151 = vmul.f32 %v3150, 1.442695
    %v3152 = vpow.pop %v3151
    %v3153 = vsel %vm274, %v3152, 0.0
    %3154 = vadd.xlane.f32.xlu0 %v3153
    %v3155 = vpop.xlane.xlu0 %3154
    %v3156 = vrcp.pop %v3155
    %v3157 = vmul.f32 %v3152, %v3156
    %3158 = vrot.lane.b32.xlu0 %v2807, 56
    %v3159 = vpop.permute.xlu0 %3158
    %3160 = vrot.lane.b32.xlu0 %v2812, 56
    %v3161 = vpop.permute.xlu0 %3160
    %v3165 = vsel %vm274, %v3157, 0
    %3167 = vmatprep.subr.mxu0 0.0
    %3168 = vmatpush1.msra.mxu0 %v3159
    %3169 = vmatprep.subr.mxu0 0.0
    %3170 = vmatpush1.msra.mxu0 %v3161
    %3171 = vmatprep.subr.mxu0 0.0
    %3172 = vmatpush1.msra.mxu0 0.0
    %3173 = vmatprep.subr.mxu0 0.0
    %3174 = vmatpush1.msra.mxu0 0.0
    %3175 = vmatprep.subr.mxu0 0.0
    %3176 = vmatpush1.msra.mxu0 0.0
    %3177 = vmatprep.subr.mxu0 0.0
    %3178 = vmatpush1.msra.mxu0 0.0
    %3179 = vmatprep.subr.mxu0 0.0
    %3180 = vmatpush1.msra.mxu0 0.0
    %3181 = vmatprep.subr.mxu0 0.0
    %3182 = vmatpush1.msra.mxu0 0.0
    %3183 = vmatprep.subr.mxu0 0.0
    %3184 = vmatpush1.msra.mxu0 0.0
    %3185 = vmatprep.subr.mxu0 0.0
    %3186 = vmatpush1.msra.mxu0 0.0
    %3187 = vmatprep.subr.mxu0 0.0
    %3188 = vmatpush1.msra.mxu0 0.0
    %3189 = vmatprep.subr.mxu0 0.0
    %3190 = vmatpush1.msra.mxu0 0.0
    %3191 = vmatprep.subr.mxu0 0.0
    %3192 = vmatpush1.msra.mxu0 0.0
    %3193 = vmatprep.subr.mxu0 0.0
    %3194 = vmatpush1.msra.mxu0 0.0
    %3195 = vmatprep.subr.mxu0 0.0
    %3196 = vmatpush1.msra.mxu0 0.0
    %3197 = vmatprep.subr.mxu0 0.0
    %3198 = vmatpush1.msra.mxu0 0.0
    %3199 = vmatprep.subr.mxu0 0.0
    %3200 = vmatpush1.msra.mxu0 0.0
    %3201 = vmatprep.subr.mxu0 0.0
    %3202 = vmatpush1.msra.mxu0 0.0
    %3203 = vmatprep.subr.mxu0 0.0
    %3204 = vmatpush1.msra.mxu0 0.0
    %3205 = vmatprep.subr.mxu0 0.0
    %3206 = vmatpush1.msra.mxu0 0.0
    %3207 = vmatprep.subr.mxu0 0.0
    %3208 = vmatpush1.msra.mxu0 0.0
    %3209 = vmatprep.subr.mxu0 0.0
    %3210 = vmatpush1.msra.mxu0 0.0
    %3211 = vmatprep.subr.mxu0 0.0
    %3212 = vmatpush1.msra.mxu0 0.0
    %3213 = vmatprep.subr.mxu0 0.0
    %3214 = vmatpush1.msra.mxu0 0.0
    %3215 = vmatprep.subr.mxu0 0.0
    %3216 = vmatpush1.msra.mxu0 0.0
    %3217 = vmatprep.subr.mxu0 0.0
    %3218 = vmatpush1.msra.mxu0 0.0
    %3219 = vmatprep.subr.mxu0 0.0
    %3220 = vmatpush1.msra.mxu0 0.0
    %3221 = vmatprep.subr.mxu0 0.0
    %3222 = vmatpush1.msra.mxu0 0.0
    %3223 = vmatprep.subr.mxu0 0.0
    %3224 = vmatpush1.msra.mxu0 0.0
    %3225 = vmatprep.subr.mxu0 0.0
    %3226 = vmatpush1.msra.mxu0 0.0
    %3227 = vmatprep.subr.mxu0 0.0
    %3228 = vmatpush1.msra.mxu0 0.0
    %3229 = vmatprep.subr.mxu0 0.0
    %3230 = vmatpush1.msra.mxu0 0.0
    %3231 = vmatprep.mubr.f32.mxu0 0.0
    %3232 = vmatmul.mubr.f32.gmra.mrb[0].mxu0 %v3165
    %v3233 = vpop.f32.mrb[0].mxu0
    %v3234 = vadd.f32 0.0, %v3233
    %v3235 = vpop.f32.mrb[0].mxu0
    %3236 = vdwg.mxu0
    %3237 = vrot.lane.b32.xlu0 %v2885, 112
    %v3238 = vpop.permute.xlu0 %3237
    %3239 = vrot.lane.b32.xlu0 %v2807, 80
    %v3240 = vpop.permute.xlu0 %3239
    %3241 = vrot.lane.b32.xlu0 %v2812, 80
    %v3242 = vpop.permute.xlu0 %3241
    %v3243 = vsel %vm186, %v3238, 0
    %v3245 = vsel %vm186, %v3240, 0
    %v3247 = vsel %vm186, %v3242, 0
    %3249 = vmatprep.subr.mxu0 0.0
    %3250 = vmatpush1.xpose.msra.mxu0 %v3245
    %3251 = vmatprep.subr.mxu0 0.0
    %3252 = vmatpush1.xpose.msra.mxu0 %v3247
    %3253 = vmatprep.subr.mxu0 0.0
    %3254 = vmatpush1.xpose.msra.mxu0 0.0
    %3255 = vmatprep.subr.mxu0 0.0
    %3256 = vmatpush1.xpose.msra.mxu0 0.0
    %3257 = vmatprep.subr.mxu0 0.0
    %3258 = vmatpush1.xpose.msra.mxu0 0.0
    %3259 = vmatprep.subr.mxu0 0.0
    %3260 = vmatpush1.xpose.msra.mxu0 0.0
    %3261 = vmatprep.subr.mxu0 0.0
    %3262 = vmatpush1.xpose.msra.mxu0 0.0
    %3263 = vmatprep.subr.mxu0 0.0
    %3264 = vmatpush1.xpose.msra.mxu0 0.0
    %3265 = vmatprep.subr.mxu0 0.0
    %3266 = vmatpush1.xpose.msra.mxu0 0.0
    %3267 = vmatprep.subr.mxu0 0.0
    %3268 = vmatpush1.xpose.msra.mxu0 0.0
    %3269 = vmatprep.subr.mxu0 0.0
    %3270 = vmatpush1.xpose.msra.mxu0 0.0
    %3271 = vmatprep.subr.mxu0 0.0
    %3272 = vmatpush1.xpose.msra.mxu0 0.0
    %3273 = vmatprep.subr.mxu0 0.0
    %3274 = vmatpush1.xpose.msra.mxu0 0.0
    %3275 = vmatprep.subr.mxu0 0.0
    %3276 = vmatpush1.xpose.msra.mxu0 0.0
    %3277 = vmatprep.subr.mxu0 0.0
    %3278 = vmatpush1.xpose.msra.mxu0 0.0
    %3279 = vmatprep.subr.mxu0 0.0
    %3280 = vmatpush1.xpose.msra.mxu0 0.0
    %3281 = vmatprep.subr.mxu0 0.0
    %3282 = vmatpush1.xpose.msra.mxu0 0.0
    %3283 = vmatprep.subr.mxu0 0.0
    %3284 = vmatpush1.xpose.msra.mxu0 0.0
    %3285 = vmatprep.subr.mxu0 0.0
    %3286 = vmatpush1.xpose.msra.mxu0 0.0
    %3287 = vmatprep.subr.mxu0 0.0
    %3288 = vmatpush1.xpose.msra.mxu0 0.0
    %3289 = vmatprep.subr.mxu0 0.0
    %3290 = vmatpush1.xpose.msra.mxu0 0.0
    %3291 = vmatprep.subr.mxu0 0.0
    %3292 = vmatpush1.xpose.msra.mxu0 0.0
    %3293 = vmatprep.subr.mxu0 0.0
    %3294 = vmatpush1.xpose.msra.mxu0 0.0
    %3295 = vmatprep.subr.mxu0 0.0
    %3296 = vmatpush1.xpose.msra.mxu0 0.0
    %3297 = vmatprep.subr.mxu0 0.0
    %3298 = vmatpush1.xpose.msra.mxu0 0.0
    %3299 = vmatprep.subr.mxu0 0.0
    %3300 = vmatpush1.xpose.msra.mxu0 0.0
    %3301 = vmatprep.subr.mxu0 0.0
    %3302 = vmatpush1.xpose.msra.mxu0 0.0
    %3303 = vmatprep.subr.mxu0 0.0
    %3304 = vmatpush1.xpose.msra.mxu0 0.0
    %3305 = vmatprep.subr.mxu0 0.0
    %3306 = vmatpush1.xpose.msra.mxu0 0.0
    %3307 = vmatprep.subr.mxu0 0.0
    %3308 = vmatpush1.xpose.msra.mxu0 0.0
    %3309 = vmatprep.subr.mxu0 0.0
    %3310 = vmatpush1.xpose.msra.mxu0 0.0
    %3311 = vmatprep.subr.mxu0 0.0
    %3312 = vmatpush1.xpose.msra.mxu0 0.0
    %3313 = vmatprep.mubr.f32.mxu0 0.0
    %3314 = vmatmul.mubr.f32.gmra.mrb[0].mxu0 %v3243
    %v3315 = vpop.f32.mrb[0].mxu0
    %v3316 = vadd.f32 0.0, %v3315
    %v3317 = vpop.f32.mrb[0].mxu0
    %3318 = vdwg.mxu0
    %v3319 = vmul.f32 %v3316, 0.35355338
    %v3320 = vadd.f32 %v3319, %v26
    %v3321 = vsel %vm274, %v3320, -inf
    %3322 = vmax.xlane.f32.xlu0 %v3321
    %v3323 = vpop.xlane.xlu0 %3322
    %v3324 = vsub.f32 %v3320, %v3323
    %v3325 = vmul.f32 %v3324, 1.442695
    %v3326 = vpow.pop %v3325
    %v3327 = vsel %vm274, %v3326, 0.0
    %3328 = vadd.xlane.f32.xlu0 %v3327
    %v3329 = vpop.xlane.xlu0 %3328
    %v3330 = vrcp.pop %v3329
    %v3331 = vmul.f32 %v3326, %v3330
    %3332 = vrot.lane.b32.xlu0 %v2807, 48
    %v3333 = vpop.permute.xlu0 %3332
    %3334 = vrot.lane.b32.xlu0 %v2812, 48
    %v3335 = vpop.permute.xlu0 %3334
    %v3339 = vsel %vm274, %v3331, 0
    %3341 = vmatprep.subr.mxu0 0.0
    %3342 = vmatpush1.msra.mxu0 %v3333
    %3343 = vmatprep.subr.mxu0 0.0
    %3344 = vmatpush1.msra.mxu0 %v3335
    %3345 = vmatprep.subr.mxu0 0.0
    %3346 = vmatpush1.msra.mxu0 0.0
    %3347 = vmatprep.subr.mxu0 0.0
    %3348 = vmatpush1.msra.mxu0 0.0
    %3349 = vmatprep.subr.mxu0 0.0
    %3350 = vmatpush1.msra.mxu0 0.0
    %3351 = vmatprep.subr.mxu0 0.0
    %3352 = vmatpush1.msra.mxu0 0.0
    %3353 = vmatprep.subr.mxu0 0.0
    %3354 = vmatpush1.msra.mxu0 0.0
    %3355 = vmatprep.subr.mxu0 0.0
    %3356 = vmatpush1.msra.mxu0 0.0
    %3357 = vmatprep.subr.mxu0 0.0
    %3358 = vmatpush1.msra.mxu0 0.0
    %3359 = vmatprep.subr.mxu0 0.0
    %3360 = vmatpush1.msra.mxu0 0.0
    %3361 = vmatprep.subr.mxu0 0.0
    %3362 = vmatpush1.msra.mxu0 0.0
    %3363 = vmatprep.subr.mxu0 0.0
    %3364 = vmatpush1.msra.mxu0 0.0
    %3365 = vmatprep.subr.mxu0 0.0
    %3366 = vmatpush1.msra.mxu0 0.0
    %3367 = vmatprep.subr.mxu0 0.0
    %3368 = vmatpush1.msra.mxu0 0.0
    %3369 = vmatprep.subr.mxu0 0.0
    %3370 = vmatpush1.msra.mxu0 0.0
    %3371 = vmatprep.subr.mxu0 0.0
    %3372 = vmatpush1.msra.mxu0 0.0
    %3373 = vmatprep.subr.mxu0 0.0
    %3374 = vmatpush1.msra.mxu0 0.0
    %3375 = vmatprep.subr.mxu0 0.0
    %3376 = vmatpush1.msra.mxu0 0.0
    %3377 = vmatprep.subr.mxu0 0.0
    %3378 = vmatpush1.msra.mxu0 0.0
    %3379 = vmatprep.subr.mxu0 0.0
    %3380 = vmatpush1.msra.mxu0 0.0
    %3381 = vmatprep.subr.mxu0 0.0
    %3382 = vmatpush1.msra.mxu0 0.0
    %3383 = vmatprep.subr.mxu0 0.0
    %3384 = vmatpush1.msra.mxu0 0.0
    %3385 = vmatprep.subr.mxu0 0.0
    %3386 = vmatpush1.msra.mxu0 0.0
    %3387 = vmatprep.subr.mxu0 0.0
    %3388 = vmatpush1.msra.mxu0 0.0
    %3389 = vmatprep.subr.mxu0 0.0
    %3390 = vmatpush1.msra.mxu0 0.0
    %3391 = vmatprep.subr.mxu0 0.0
    %3392 = vmatpush1.msra.mxu0 0.0
    %3393 = vmatprep.subr.mxu0 0.0
    %3394 = vmatpush1.msra.mxu0 0.0
    %3395 = vmatprep.subr.mxu0 0.0
    %3396 = vmatpush1.msra.mxu0 0.0
    %3397 = vmatprep.subr.mxu0 0.0
    %3398 = vmatpush1.msra.mxu0 0.0
    %3399 = vmatprep.subr.mxu0 0.0
    %3400 = vmatpush1.msra.mxu0 0.0
    %3401 = vmatprep.subr.mxu0 0.0
    %3402 = vmatpush1.msra.mxu0 0.0
    %3403 = vmatprep.subr.mxu0 0.0
    %3404 = vmatpush1.msra.mxu0 0.0
    %3405 = vmatprep.mubr.f32.mxu0 0.0
    %3406 = vmatmul.mubr.f32.gmra.mrb[0].mxu0 %v3339
    %v3407 = vpop.f32.mrb[0].mxu0
    %v3408 = vadd.f32 0.0, %v3407
    %v3409 = vpop.f32.mrb[0].mxu0
    %3410 = vdwg.mxu0
    %3411 = vrot.lane.b32.xlu0 %v2885, 104
    %v3412 = vpop.permute.xlu0 %3411
    %3413 = vrot.lane.b32.xlu0 %v2807, 72
    %v3414 = vpop.permute.xlu0 %3413
    %3415 = vrot.lane.b32.xlu0 %v2812, 72
    %v3416 = vpop.permute.xlu0 %3415
    %v3417 = vsel %vm186, %v3412, 0
    %v3419 = vsel %vm186, %v3414, 0
    %v3421 = vsel %vm186, %v3416, 0
    %3423 = vmatprep.subr.mxu0 0.0
    %3424 = vmatpush1.xpose.msra.mxu0 %v3419
    %3425 = vmatprep.subr.mxu0 0.0
    %3426 = vmatpush1.xpose.msra.mxu0 %v3421
    %3427 = vmatprep.subr.mxu0 0.0
    %3428 = vmatpush1.xpose.msra.mxu0 0.0
    %3429 = vmatprep.subr.mxu0 0.0
    %3430 = vmatpush1.xpose.msra.mxu0 0.0
    %3431 = vmatprep.subr.mxu0 0.0
    %3432 = vmatpush1.xpose.msra.mxu0 0.0
    %3433 = vmatprep.subr.mxu0 0.0
    %3434 = vmatpush1.xpose.msra.mxu0 0.0
    %3435 = vmatprep.subr.mxu0 0.0
    %3436 = vmatpush1.xpose.msra.mxu0 0.0
    %3437 = vmatprep.subr.mxu0 0.0
    %3438 = vmatpush1.xpose.msra.mxu0 0.0
    %3439 = vmatprep.subr.mxu0 0.0
    %3440 = vmatpush1.xpose.msra.mxu0 0.0
    %3441 = vmatprep.subr.mxu0 0.0
    %3442 = vmatpush1.xpose.msra.mxu0 0.0
    %3443 = vmatprep.subr.mxu0 0.0
    %3444 = vmatpush1.xpose.msra.mxu0 0.0
    %3445 = vmatprep.subr.mxu0 0.0
    %3446 = vmatpush1.xpose.msra.mxu0 0.0
    %3447 = vmatprep.subr.mxu0 0.0
    %3448 = vmatpush1.xpose.msra.mxu0 0.0
    %3449 = vmatprep.subr.mxu0 0.0
    %3450 = vmatpush1.xpose.msra.mxu0 0.0
    %3451 = vmatprep.subr.mxu0 0.0
    %3452 = vmatpush1.xpose.msra.mxu0 0.0
    %3453 = vmatprep.subr.mxu0 0.0
    %3454 = vmatpush1.xpose.msra.mxu0 0.0
    %3455 = vmatprep.subr.mxu0 0.0
    %3456 = vmatpush1.xpose.msra.mxu0 0.0
    %3457 = vmatprep.subr.mxu0 0.0
    %3458 = vmatpush1.xpose.msra.mxu0 0.0
    %3459 = vmatprep.subr.mxu0 0.0
    %3460 = vmatpush1.xpose.msra.mxu0 0.0
    %3461 = vmatprep.subr.mxu0 0.0
    %3462 = vmatpush1.xpose.msra.mxu0 0.0
    %3463 = vmatprep.subr.mxu0 0.0
    %3464 = vmatpush1.xpose.msra.mxu0 0.0
    %3465 = vmatprep.subr.mxu0 0.0
    %3466 = vmatpush1.xpose.msra.mxu0 0.0
    %3467 = vmatprep.subr.mxu0 0.0
    %3468 = vmatpush1.xpose.msra.mxu0 0.0
    %3469 = vmatprep.subr.mxu0 0.0
    %3470 = vmatpush1.xpose.msra.mxu0 0.0
    %3471 = vmatprep.subr.mxu0 0.0
    %3472 = vmatpush1.xpose.msra.mxu0 0.0
    %3473 = vmatprep.subr.mxu0 0.0
    %3474 = vmatpush1.xpose.msra.mxu0 0.0
    %3475 = vmatprep.subr.mxu0 0.0
    %3476 = vmatpush1.xpose.msra.mxu0 0.0
    %3477 = vmatprep.subr.mxu0 0.0
    %3478 = vmatpush1.xpose.msra.mxu0 0.0
    %3479 = vmatprep.subr.mxu0 0.0
    %3480 = vmatpush1.xpose.msra.mxu0 0.0
    %3481 = vmatprep.subr.mxu0 0.0
    %3482 = vmatpush1.xpose.msra.mxu0 0.0
    %3483 = vmatprep.subr.mxu0 0.0
    %3484 = vmatpush1.xpose.msra.mxu0 0.0
    %3485 = vmatprep.subr.mxu0 0.0
    %3486 = vmatpush1.xpose.msra.mxu0 0.0
    %3487 = vmatprep.mubr.f32.mxu0 0.0
    %3488 = vmatmul.mubr.f32.gmra.mrb[0].mxu0 %v3417
    %v3489 = vpop.f32.mrb[0].mxu0
    %v3490 = vadd.f32 0.0, %v3489
    %v3491 = vpop.f32.mrb[0].mxu0
    %3492 = vdwg.mxu0
    %v3493 = vmul.f32 %v3490, 0.35355338
    %v3494 = vadd.f32 %v3493, %v26
    %v3495 = vsel %vm274, %v3494, -inf
    %3496 = vmax.xlane.f32.xlu0 %v3495
    %v3497 = vpop.xlane.xlu0 %3496
    %v3498 = vsub.f32 %v3494, %v3497
    %v3499 = vmul.f32 %v3498, 1.442695
    %v3500 = vpow.pop %v3499
    %v3501 = vsel %vm274, %v3500, 0.0
    %3502 = vadd.xlane.f32.xlu0 %v3501
    %v3503 = vpop.xlane.xlu0 %3502
    %v3504 = vrcp.pop %v3503
    %v3505 = vmul.f32 %v3500, %v3504
    %3506 = vrot.lane.b32.xlu0 %v2807, 40
    %v3507 = vpop.permute.xlu0 %3506
    %3508 = vrot.lane.b32.xlu0 %v2812, 40
    %v3509 = vpop.permute.xlu0 %3508
    %v3513 = vsel %vm274, %v3505, 0
    %3515 = vmatprep.subr.mxu0 0.0
    %3516 = vmatpush1.msra.mxu0 %v3507
    %3517 = vmatprep.subr.mxu0 0.0
    %3518 = vmatpush1.msra.mxu0 %v3509
    %3519 = vmatprep.subr.mxu0 0.0
    %3520 = vmatpush1.msra.mxu0 0.0
    %3521 = vmatprep.subr.mxu0 0.0
    %3522 = vmatpush1.msra.mxu0 0.0
    %3523 = vmatprep.subr.mxu0 0.0
    %3524 = vmatpush1.msra.mxu0 0.0
    %3525 = vmatprep.subr.mxu0 0.0
    %3526 = vmatpush1.msra.mxu0 0.0
    %3527 = vmatprep.subr.mxu0 0.0
    %3528 = vmatpush1.msra.mxu0 0.0
    %3529 = vmatprep.subr.mxu0 0.0
    %3530 = vmatpush1.msra.mxu0 0.0
    %3531 = vmatprep.subr.mxu0 0.0
    %3532 = vmatpush1.msra.mxu0 0.0
    %3533 = vmatprep.subr.mxu0 0.0
    %3534 = vmatpush1.msra.mxu0 0.0
    %3535 = vmatprep.subr.mxu0 0.0
    %3536 = vmatpush1.msra.mxu0 0.0
    %3537 = vmatprep.subr.mxu0 0.0
    %3538 = vmatpush1.msra.mxu0 0.0
    %3539 = vmatprep.subr.mxu0 0.0
    %3540 = vmatpush1.msra.mxu0 0.0
    %3541 = vmatprep.subr.mxu0 0.0
    %3542 = vmatpush1.msra.mxu0 0.0
    %3543 = vmatprep.subr.mxu0 0.0
    %3544 = vmatpush1.msra.mxu0 0.0
    %3545 = vmatprep.subr.mxu0 0.0
    %3546 = vmatpush1.msra.mxu0 0.0
    %3547 = vmatprep.subr.mxu0 0.0
    %3548 = vmatpush1.msra.mxu0 0.0
    %3549 = vmatprep.subr.mxu0 0.0
    %3550 = vmatpush1.msra.mxu0 0.0
    %3551 = vmatprep.subr.mxu0 0.0
    %3552 = vmatpush1.msra.mxu0 0.0
    %3553 = vmatprep.subr.mxu0 0.0
    %3554 = vmatpush1.msra.mxu0 0.0
    %3555 = vmatprep.subr.mxu0 0.0
    %3556 = vmatpush1.msra.mxu0 0.0
    %3557 = vmatprep.subr.mxu0 0.0
    %3558 = vmatpush1.msra.mxu0 0.0
    %3559 = vmatprep.subr.mxu0 0.0
    %3560 = vmatpush1.msra.mxu0 0.0
    %3561 = vmatprep.subr.mxu0 0.0
    %3562 = vmatpush1.msra.mxu0 0.0
    %3563 = vmatprep.subr.mxu0 0.0
    %3564 = vmatpush1.msra.mxu0 0.0
    %3565 = vmatprep.subr.mxu0 0.0
    %3566 = vmatpush1.msra.mxu0 0.0
    %3567 = vmatprep.subr.mxu0 0.0
    %3568 = vmatpush1.msra.mxu0 0.0
    %3569 = vmatprep.subr.mxu0 0.0
    %3570 = vmatpush1.msra.mxu0 0.0
    %3571 = vmatprep.subr.mxu0 0.0
    %3572 = vmatpush1.msra.mxu0 0.0
    %3573 = vmatprep.subr.mxu0 0.0
    %3574 = vmatpush1.msra.mxu0 0.0
    %3575 = vmatprep.subr.mxu0 0.0
    %3576 = vmatpush1.msra.mxu0 0.0
    %3577 = vmatprep.subr.mxu0 0.0
    %3578 = vmatpush1.msra.mxu0 0.0
    %3579 = vmatprep.mubr.f32.mxu0 0.0
    %3580 = vmatmul.mubr.f32.gmra.mrb[0].mxu0 %v3513
    %v3581 = vpop.f32.mrb[0].mxu0
    %v3582 = vadd.f32 0.0, %v3581
    %v3583 = vpop.f32.mrb[0].mxu0
    %3584 = vdwg.mxu0
    %3586 = vrot.lane.b32.xlu0 %v3234, 8
    %v3587 = vpop.permute.xlu0 %3586
    %3590 = vrot.lane.b32.xlu0 %v3408, 16
    %v3591 = vpop.permute.xlu0 %3590
    %3594 = vrot.lane.b32.xlu0 %v3582, 24
    %v3595 = vpop.permute.xlu0 %3594
    %v3597 = vsel %vm186, %v3060, %v3587
    %v3598 = vsel %vm274, %v3597, %v3591
    %v3599 = vsel %vm1024, %v3598, %v3595
    %v3600 = vlaneseq
    %v3601 = vshrl.u32 %v3600, 7
    %v3602 = vsub.s32 2, %v3601
    %v3603 = vrot.slane %v2669, %v3602
    %3608 = vrot.lane.b32.xlu0 %v2671, 32
    %v3609 = vpop.permute.xlu0 %3608
    %3610 = vrot.lane.b32.xlu0 %v2673, 32
    %v3611 = vpop.permute.xlu0 %3610
    %3612 = vrot.lane.b32.xlu0 %v2675, 32
    %v3613 = vpop.permute.xlu0 %3612
    %3614 = vrot.lane.b32.xlu0 %v2677, 32
    %v3615 = vpop.permute.xlu0 %3614
    %v3621 = vsel %vm59, %v3599, 0
    %3623 = vmatprep.subr.mxu0 0.0
    %3624 = vmatpush1.msra.mxu0 %v3609
    %3625 = vmatprep.subr.mxu0 0.0
    %3626 = vmatpush1.msra.mxu0 %v3611
    %3627 = vmatprep.subr.mxu0 0.0
    %3628 = vmatpush1.msra.mxu0 %v3613
    %3629 = vmatprep.subr.mxu0 0.0
    %3630 = vmatpush1.msra.mxu0 %v3615
    %3631 = vmatprep.subr.mxu0 0.0
    %3632 = vmatpush1.msra.mxu0 0.0
    %3633 = vmatprep.subr.mxu0 0.0
    %3634 = vmatpush1.msra.mxu0 0.0
    %3635 = vmatprep.subr.mxu0 0.0
    %3636 = vmatpush1.msra.mxu0 0.0
    %3637 = vmatprep.subr.mxu0 0.0
    %3638 = vmatpush1.msra.mxu0 0.0
    %3639 = vmatprep.subr.mxu0 0.0
    %3640 = vmatpush1.msra.mxu0 0.0
    %3641 = vmatprep.subr.mxu0 0.0
    %3642 = vmatpush1.msra.mxu0 0.0
    %3643 = vmatprep.subr.mxu0 0.0
    %3644 = vmatpush1.msra.mxu0 0.0
    %3645 = vmatprep.subr.mxu0 0.0
    %3646 = vmatpush1.msra.mxu0 0.0
    %3647 = vmatprep.subr.mxu0 0.0
    %3648 = vmatpush1.msra.mxu0 0.0
    %3649 = vmatprep.subr.mxu0 0.0
    %3650 = vmatpush1.msra.mxu0 0.0
    %3651 = vmatprep.subr.mxu0 0.0
    %3652 = vmatpush1.msra.mxu0 0.0
    %3653 = vmatprep.subr.mxu0 0.0
    %3654 = vmatpush1.msra.mxu0 0.0
    %3655 = vmatprep.subr.mxu0 0.0
    %3656 = vmatpush1.msra.mxu0 0.0
    %3657 = vmatprep.subr.mxu0 0.0
    %3658 = vmatpush1.msra.mxu0 0.0
    %3659 = vmatprep.subr.mxu0 0.0
    %3660 = vmatpush1.msra.mxu0 0.0
    %3661 = vmatprep.subr.mxu0 0.0
    %3662 = vmatpush1.msra.mxu0 0.0
    %3663 = vmatprep.subr.mxu0 0.0
    %3664 = vmatpush1.msra.mxu0 0.0
    %3665 = vmatprep.subr.mxu0 0.0
    %3666 = vmatpush1.msra.mxu0 0.0
    %3667 = vmatprep.subr.mxu0 0.0
    %3668 = vmatpush1.msra.mxu0 0.0
    %3669 = vmatprep.subr.mxu0 0.0
    %3670 = vmatpush1.msra.mxu0 0.0
    %3671 = vmatprep.subr.mxu0 0.0
    %3672 = vmatpush1.msra.mxu0 0.0
    %3673 = vmatprep.subr.mxu0 0.0
    %3674 = vmatpush1.msra.mxu0 0.0
    %3675 = vmatprep.subr.mxu0 0.0
    %3676 = vmatpush1.msra.mxu0 0.0
    %3677 = vmatprep.subr.mxu0 0.0
    %3678 = vmatpush1.msra.mxu0 0.0
    %3679 = vmatprep.subr.mxu0 0.0
    %3680 = vmatpush1.msra.mxu0 0.0
    %3681 = vmatprep.subr.mxu0 0.0
    %3682 = vmatpush1.msra.mxu0 0.0
    %3683 = vmatprep.subr.mxu0 0.0
    %3684 = vmatpush1.msra.mxu0 0.0
    %3685 = vmatprep.subr.mxu0 0.0
    %3686 = vmatpush1.msra.mxu0 0.0
    %3687 = vmatprep.mubr.f32.mxu0 0.0
    %3688 = vmatmul.mubr.f32.gmra.mrb[0].mxu0 %v3621
    %v3689 = vpop.f32.mrb[0].mxu0
    %v3690 = vadd.f32 %v3603, %v3689
    %v3691 = vpop.f32.mrb[0].mxu0
    %3692 = vdwg.mxu0
    %v3693 = vsel %vm59, %v3690, 0.0
    %3694 = vadd.xlane.f32.xlu0 %v3693
    %v3695 = vpop.xlane.xlu0 %3694
    %v3696 = vmul.f32 %v3695, %v66
    %v3697 = vsub.f32 %v3690, %v3696
    %v3698 = vmul.f32 %v3697, %v3697
    %v3699 = vsel %vm59, %v3698, 0.0
    %3700 = vadd.xlane.f32.xlu0 %v3699
    %v3701 = vpop.xlane.xlu0 %3700
    %v3702 = vmul.f32 %v3701, %v66
    %v3703 = vadd.f32 %v3702, 1e-05
    %v3704 = vrsqrt.pop %v3703
    %v3705 = vmul.f32 %v3697, %v3704
    %v3706 = vlaneseq
    %v3707 = vshrl.u32 %v3706, 7
    %v3708 = vsub.s32 3, %v3707
    %v3709 = vrot.slane %v2669, %v3708
    %v3710 = vmul.f32 %v3705, %v3709
    %v3711 = vlaneseq
    %v3712 = vshrl.u32 %v3711, 7
    %v3713 = vsub.s32 4, %v3712
    %v3714 = vrot.slane %v2669, %v3713
    %v3715 = vadd.f32 %v3710, %v3714
    %v3716 = vlaneseq
    %v3717 = vshrl.u32 %v3716, 7
    %v3718 = vsub.s32 6, %v3717
    %v3719 = vrot.slane %v2669, %v3718
    %v3721 = vsel %vm59, %v3715, 0
    %3723 = vmatprep.subr.mxu0 0.0
    %3724 = vmatpush1.msra.mxu0 %v2672
    %3725 = vmatprep.subr.mxu0 0.0
    %3726 = vmatpush1.msra.mxu0 %v2674
    %3727 = vmatprep.subr.mxu0 0.0
    %3728 = vmatpush1.msra.mxu0 %v2676
    %3729 = vmatprep.subr.mxu0 0.0
    %3730 = vmatpush1.msra.mxu0 %v2678
    %3731 = vmatprep.subr.mxu0 0.0
    %3732 = vmatpush1.msra.mxu0 0.0
    %3733 = vmatprep.subr.mxu0 0.0
    %3734 = vmatpush1.msra.mxu0 0.0
    %3735 = vmatprep.subr.mxu0 0.0
    %3736 = vmatpush1.msra.mxu0 0.0
    %3737 = vmatprep.subr.mxu0 0.0
    %3738 = vmatpush1.msra.mxu0 0.0
    %3739 = vmatprep.subr.mxu0 0.0
    %3740 = vmatpush1.msra.mxu0 0.0
    %3741 = vmatprep.subr.mxu0 0.0
    %3742 = vmatpush1.msra.mxu0 0.0
    %3743 = vmatprep.subr.mxu0 0.0
    %3744 = vmatpush1.msra.mxu0 0.0
    %3745 = vmatprep.subr.mxu0 0.0
    %3746 = vmatpush1.msra.mxu0 0.0
    %3747 = vmatprep.subr.mxu0 0.0
    %3748 = vmatpush1.msra.mxu0 0.0
    %3749 = vmatprep.subr.mxu0 0.0
    %3750 = vmatpush1.msra.mxu0 0.0
    %3751 = vmatprep.subr.mxu0 0.0
    %3752 = vmatpush1.msra.mxu0 0.0
    %3753 = vmatprep.subr.mxu0 0.0
    %3754 = vmatpush1.msra.mxu0 0.0
    %3755 = vmatprep.subr.mxu0 0.0
    %3756 = vmatpush1.msra.mxu0 0.0
    %3757 = vmatprep.subr.mxu0 0.0
    %3758 = vmatpush1.msra.mxu0 0.0
    %3759 = vmatprep.subr.mxu0 0.0
    %3760 = vmatpush1.msra.mxu0 0.0
    %3761 = vmatprep.subr.mxu0 0.0
    %3762 = vmatpush1.msra.mxu0 0.0
    %3763 = vmatprep.subr.mxu0 0.0
    %3764 = vmatpush1.msra.mxu0 0.0
    %3765 = vmatprep.subr.mxu0 0.0
    %3766 = vmatpush1.msra.mxu0 0.0
    %3767 = vmatprep.subr.mxu0 0.0
    %3768 = vmatpush1.msra.mxu0 0.0
    %3769 = vmatprep.subr.mxu0 0.0
    %3770 = vmatpush1.msra.mxu0 0.0
    %3771 = vmatprep.subr.mxu0 0.0
    %3772 = vmatpush1.msra.mxu0 0.0
    %3773 = vmatprep.subr.mxu0 0.0
    %3774 = vmatpush1.msra.mxu0 0.0
    %3775 = vmatprep.subr.mxu0 0.0
    %3776 = vmatpush1.msra.mxu0 0.0
    %3777 = vmatprep.subr.mxu0 0.0
    %3778 = vmatpush1.msra.mxu0 0.0
    %3779 = vmatprep.subr.mxu0 0.0
    %3780 = vmatpush1.msra.mxu0 0.0
    %3781 = vmatprep.subr.mxu0 0.0
    %3782 = vmatpush1.msra.mxu0 0.0
    %3783 = vmatprep.subr.mxu0 0.0
    %3784 = vmatpush1.msra.mxu0 0.0
    %3785 = vmatprep.subr.mxu0 0.0
    %3786 = vmatpush1.msra.mxu0 0.0
    %3787 = vmatprep.mubr.f32.mxu0 0.0
    %3788 = vmatmul.mubr.f32.gmra.mrb[0].mxu0 %v3721
    %v3789 = vpop.f32.mrb[0].mxu0
    %v3790 = vadd.f32 %v3719, %v3789
    %v3791 = vpop.f32.mrb[0].mxu0
    %3792 = vdwg.mxu0
    %v3793 = vmul.f32 %v3790, 0.5
    %v3794 = vmul.f32 %v3790, 0.044715
    %v3795 = vmul.f32 %v3794, %v3790
    %v3796 = vmul.f32 %v3795, %v3790
    %v3797 = vadd.f32 %v3790, %v3796
    %v3798 = vmul.f32 %v3797, 0.7978846
    %v3799 = vtanh.pop %v3798
    %v3800 = vadd.f32 %v3799, 1.0
    %v3801 = vmul.f32 %v3793, %v3800
    %v3802 = vlaneseq
    %v3803 = vshrl.u32 %v3802, 7
    %v3804 = vsub.s32 5, %v3803
    %v3805 = vrot.slane %v2669, %v3804
    %3806 = vmatprep.subr.mxu0 0.0
    %3807 = vmatpush1.msra.mxu0 %v2680
    %3808 = vmatprep.subr.mxu0 0.0
    %3809 = vmatpush1.msra.mxu0 %v2681
    %3810 = vmatprep.subr.mxu0 0.0
    %3811 = vmatpush1.msra.mxu0 %v2682
    %3812 = vmatprep.subr.mxu0 0.0
    %3813 = vmatpush1.msra.mxu0 %v2683
    %3814 = vmatprep.subr.mxu0 0.0
    %3815 = vmatpush1.msra.mxu0 %v2684
    %3816 = vmatprep.subr.mxu0 0.0
    %3817 = vmatpush1.msra.mxu0 %v2685
    %3818 = vmatprep.subr.mxu0 0.0
    %3819 = vmatpush1.msra.mxu0 %v2686
    %3820 = vmatprep.subr.mxu0 0.0
    %3821 = vmatpush1.msra.mxu0 %v2687
    %3822 = vmatprep.subr.mxu0 0.0
    %3823 = vmatpush1.msra.mxu0 %v2688
    %3824 = vmatprep.subr.mxu0 0.0
    %3825 = vmatpush1.msra.mxu0 %v2689
    %3826 = vmatprep.subr.mxu0 0.0
    %3827 = vmatpush1.msra.mxu0 %v2690
    %3828 = vmatprep.subr.mxu0 0.0
    %3829 = vmatpush1.msra.mxu0 %v2691
    %3830 = vmatprep.subr.mxu0 0.0
    %3831 = vmatpush1.msra.mxu0 %v2692
    %3832 = vmatprep.subr.mxu0 0.0
    %3833 = vmatpush1.msra.mxu0 %v2693
    %3834 = vmatprep.subr.mxu0 0.0
    %3835 = vmatpush1.msra.mxu0 %v2694
    %3836 = vmatprep.subr.mxu0 0.0
    %3837 = vmatpush1.msra.mxu0 %v2695
    %3838 = vmatprep.subr.mxu0 0.0
    %3839 = vmatpush1.msra.mxu0 0.0
    %3840 = vmatprep.subr.mxu0 0.0
    %3841 = vmatpush1.msra.mxu0 0.0
    %3842 = vmatprep.subr.mxu0 0.0
    %3843 = vmatpush1.msra.mxu0 0.0
    %3844 = vmatprep.subr.mxu0 0.0
    %3845 = vmatpush1.msra.mxu0 0.0
    %3846 = vmatprep.subr.mxu0 0.0
    %3847 = vmatpush1.msra.mxu0 0.0
    %3848 = vmatprep.subr.mxu0 0.0
    %3849 = vmatpush1.msra.mxu0 0.0
    %3850 = vmatprep.subr.mxu0 0.0
    %3851 = vmatpush1.msra.mxu0 0.0
    %3852 = vmatprep.subr.mxu0 0.0
    %3853 = vmatpush1.msra.mxu0 0.0
    %3854 = vmatprep.subr.mxu0 0.0
    %3855 = vmatpush1.msra.mxu0 0.0
    %3856 = vmatprep.subr.mxu0 0.0
    %3857 = vmatpush1.msra.mxu0 0.0
    %3858 = vmatprep.subr.mxu0 0.0
    %3859 = vmatpush1.msra.mxu0 0.0
    %3860 = vmatprep.subr.mxu0 0.0
    %3861 = vmatpush1.msra.mxu0 0.0
    %3862 = vmatprep.subr.mxu0 0.0
    %3863 = vmatpush1.msra.mxu0 0.0
    %3864 = vmatprep.subr.mxu0 0.0
    %3865 = vmatpush1.msra.mxu0 0.0
    %3866 = vmatprep.subr.mxu0 0.0
    %3867 = vmatpush1.msra.mxu0 0.0
    %3868 = vmatprep.subr.mxu0 0.0
    %3869 = vmatpush1.msra.mxu0 0.0
    %3870 = vmatprep.mubr.f32.mxu0 0.0
    %3871 = vmatmul.mubr.f32.gmra.mrb[0].mxu0 %v3801
    %v3872 = vpop.f32.mrb[0].mxu0
    %v3873 = vadd.f32 %v3805, %v3872
    %v3874 = vpop.f32.mrb[0].mxu0
    %3875 = vdwg.mxu0
    %v3876 = vadd.f32 %v3873, %v3690
    %s3877 = scalar_lea.vmem %s1, 24
    %v3878 = vld [vmem:[%s3877] sm:$0x7f]
    %s3879 = scalar_lea.vmem %s2, 192
    %v3880 = vld [vmem:[%s3879] sm:$0xff]
    %v3881 = vld [vmem:[%s3879 + $0x8] sm:$0xff]
    %v3882 = vld [vmem:[%s3879 + $0x10] sm:$0xff]
    %v3883 = vld [vmem:[%s3879 + $0x18] sm:$0xff]
    %v3884 = vld [vmem:[%s3879 + $0x20] sm:$0xff]
    %v3885 = vld [vmem:[%s3879 + $0x28] sm:$0xff]
    %v3886 = vld [vmem:[%s3879 + $0x30] sm:$0xff]
    %v3887 = vld [vmem:[%s3879 + $0x38] sm:$0xff]
    %s3888 = scalar_lea.vmem %s3, 384
    %v3889 = vld [vmem:[%s3888] sm:$0xff]
    %v3890 = vld [vmem:[%s3888 + $0x8] sm:$0xff]
    %v3891 = vld [vmem:[%s3888 + $0x10] sm:$0xff]
    %v3892 = vld [vmem:[%s3888 + $0x18] sm:$0xff]
    %v3893 = vld [vmem:[%s3888 + $0x20] sm:$0xff]
    %v3894 = vld [vmem:[%s3888 + $0x28] sm:$0xff]
    %v3895 = vld [vmem:[%s3888 + $0x30] sm:$0xff]
    %v3896 = vld [vmem:[%s3888 + $0x38] sm:$0xff]
    %v3897 = vld [vmem:[%s3888 + $0x40] sm:$0xff]
    %v3898 = vld [vmem:[%s3888 + $0x48] sm:$0xff]
    %v3899 = vld [vmem:[%s3888 + $0x50] sm:$0xff]
    %v3900 = vld [vmem:[%s3888 + $0x58] sm:$0xff]
    %v3901 = vld [vmem:[%s3888 + $0x60] sm:$0xff]
    %v3902 = vld [vmem:[%s3888 + $0x68] sm:$0xff]
    %v3903 = vld [vmem:[%s3888 + $0x70] sm:$0xff]
    %v3904 = vld [vmem:[%s3888 + $0x78] sm:$0xff]
    %v3905 = vsel %vm59, %v3876, 0.0
    %3906 = vadd.xlane.f32.xlu0 %v3905
    %v3907 = vpop.xlane.xlu0 %3906
    %v3908 = vmul.f32 %v3907, %v66
    %v3909 = vsub.f32 %v3876, %v3908
    %v3910 = vmul.f32 %v3909, %v3909
    %v3911 = vsel %vm59, %v3910, 0.0
    %3912 = vadd.xlane.f32.xlu0 %v3911
    %v3913 = vpop.xlane.xlu0 %3912
    %v3914 = vmul.f32 %v3913, %v66
    %v3915 = vadd.f32 %v3914, 1e-05
    %v3916 = vrsqrt.pop %v3915
    %v3917 = vmul.f32 %v3909, %v3916
    %v3918 = vlaneseq
    %v3919 = vshrl.u32 %v3918, 7
    %v3920 = vsub.s32 0, %v3919
    %v3921 = vrot.slane %v3878, %v3920
    %v3922 = vmul.f32 %v3917, %v3921
    %v3923 = vlaneseq
    %v3924 = vshrl.u32 %v3923, 7
    %v3925 = vsub.s32 1, %v3924
    %v3926 = vrot.slane %v3878, %v3925
    %v3927 = vadd.f32 %v3922, %v3926
    %v3929 = vsel %vm59, %v3927, 0
    %3931 = vmatprep.subr.mxu0 0.0
    %3932 = vmatpush1.msra.mxu0 %v3880
    %3933 = vmatprep.subr.mxu0 0.0
    %3934 = vmatpush1.msra.mxu0 %v3882
    %3935 = vmatprep.subr.mxu0 0.0
    %3936 = vmatpush1.msra.mxu0 %v3884
    %3937 = vmatprep.subr.mxu0 0.0
    %3938 = vmatpush1.msra.mxu0 %v3886
    %3939 = vmatprep.subr.mxu0 0.0
    %3940 = vmatpush1.msra.mxu0 0.0
    %3941 = vmatprep.subr.mxu0 0.0
    %3942 = vmatpush1.msra.mxu0 0.0
    %3943 = vmatprep.subr.mxu0 0.0
    %3944 = vmatpush1.msra.mxu0 0.0
    %3945 = vmatprep.subr.mxu0 0.0
    %3946 = vmatpush1.msra.mxu0 0.0
    %3947 = vmatprep.subr.mxu0 0.0
    %3948 = vmatpush1.msra.mxu0 0.0
    %3949 = vmatprep.subr.mxu0 0.0
    %3950 = vmatpush1.msra.mxu0 0.0
    %3951 = vmatprep.subr.mxu0 0.0
    %3952 = vmatpush1.msra.mxu0 0.0
    %3953 = vmatprep.subr.mxu0 0.0
    %3954 = vmatpush1.msra.mxu0 0.0
    %3955 = vmatprep.subr.mxu0 0.0
    %3956 = vmatpush1.msra.mxu0 0.0
    %3957 = vmatprep.subr.mxu0 0.0
    %3958 = vmatpush1.msra.mxu0 0.0
    %3959 = vmatprep.subr.mxu0 0.0
    %3960 = vmatpush1.msra.mxu0 0.0
    %3961 = vmatprep.subr.mxu0 0.0
    %3962 = vmatpush1.msra.mxu0 0.0
    %3963 = vmatprep.subr.mxu0 0.0
    %3964 = vmatpush1.msra.mxu0 0.0
    %3965 = vmatprep.subr.mxu0 0.0
    %3966 = vmatpush1.msra.mxu0 0.0
    %3967 = vmatprep.subr.mxu0 0.0
    %3968 = vmatpush1.msra.mxu0 0.0
    %3969 = vmatprep.subr.mxu0 0.0
    %3970 = vmatpush1.msra.mxu0 0.0
    %3971 = vmatprep.subr.mxu0 0.0
    %3972 = vmatpush1.msra.mxu0 0.0
    %3973 = vmatprep.subr.mxu0 0.0
    %3974 = vmatpush1.msra.mxu0 0.0
    %3975 = vmatprep.subr.mxu0 0.0
    %3976 = vmatpush1.msra.mxu0 0.0
    %3977 = vmatprep.subr.mxu0 0.0
    %3978 = vmatpush1.msra.mxu0 0.0
    %3979 = vmatprep.subr.mxu0 0.0
    %3980 = vmatpush1.msra.mxu0 0.0
    %3981 = vmatprep.subr.mxu0 0.0
    %3982 = vmatpush1.msra.mxu0 0.0
    %3983 = vmatprep.subr.mxu0 0.0
    %3984 = vmatpush1.msra.mxu0 0.0
    %3985 = vmatprep.subr.mxu0 0.0
    %3986 = vmatpush1.msra.mxu0 0.0
    %3987 = vmatprep.subr.mxu0 0.0
    %3988 = vmatpush1.msra.mxu0 0.0
    %3989 = vmatprep.subr.mxu0 0.0
    %3990 = vmatpush1.msra.mxu0 0.0
    %3991 = vmatprep.subr.mxu0 0.0
    %3992 = vmatpush1.msra.mxu0 0.0
    %3993 = vmatprep.subr.mxu0 0.0
    %3994 = vmatpush1.msra.mxu0 0.0
    %3995 = vmatprep.mubr.f32.mxu0 0.0
    %3996 = vmatmul.mubr.f32.gmra.mrb[0].mxu0 %v3929
    %v3997 = vpop.f32.mrb[0].mxu0
    %v3998 = vadd.f32 0.0, %v3997
    %v3999 = vpop.f32.mrb[0].mxu0
    %4000 = vdwg.mxu0
    %4002 = vrot.lane.b32.xlu0 %v3998, 96
    %v4003 = vpop.permute.xlu0 %4002
    %v4004 = vsel %vm186, %v3998, 0
    %v4006 = vsel %vm186, %v4003, 0
    %4008 = vmatprep.subr.mxu0 0.0
    %4009 = vmatpush1.xpose.msra.mxu0 %v4006
    %4010 = vmatprep.subr.mxu0 0.0
    %4011 = vmatpush1.xpose.msra.mxu0 0.0
    %4012 = vmatprep.subr.mxu0 0.0
    %4013 = vmatpush1.xpose.msra.mxu0 0.0
    %4014 = vmatprep.subr.mxu0 0.0
    %4015 = vmatpush1.xpose.msra.mxu0 0.0
    %4016 = vmatprep.subr.mxu0 0.0
    %4017 = vmatpush1.xpose.msra.mxu0 0.0
    %4018 = vmatprep.subr.mxu0 0.0
    %4019 = vmatpush1.xpose.msra.mxu0 0.0
    %4020 = vmatprep.subr.mxu0 0.0
    %4021 = vmatpush1.xpose.msra.mxu0 0.0
    %4022 = vmatprep.subr.mxu0 0.0
    %4023 = vmatpush1.xpose.msra.mxu0 0.0
    %4024 = vmatprep.subr.mxu0 0.0
    %4025 = vmatpush1.xpose.msra.mxu0 0.0
    %4026 = vmatprep.subr.mxu0 0.0
    %4027 = vmatpush1.xpose.msra.mxu0 0.0
    %4028 = vmatprep.subr.mxu0 0.0
    %4029 = vmatpush1.xpose.msra.mxu0 0.0
    %4030 = vmatprep.subr.mxu0 0.0
    %4031 = vmatpush1.xpose.msra.mxu0 0.0
    %4032 = vmatprep.subr.mxu0 0.0
    %4033 = vmatpush1.xpose.msra.mxu0 0.0
    %4034 = vmatprep.subr.mxu0 0.0
    %4035 = vmatpush1.xpose.msra.mxu0 0.0
    %4036 = vmatprep.subr.mxu0 0.0
    %4037 = vmatpush1.xpose.msra.mxu0 0.0
    %4038 = vmatprep.subr.mxu0 0.0
    %4039 = vmatpush1.xpose.msra.mxu0 0.0
    %4040 = vmatprep.subr.mxu0 0.0
    %4041 = vmatpush1.xpose.msra.mxu0 0.0
    %4042 = vmatprep.subr.mxu0 0.0
    %4043 = vmatpush1.xpose.msra.mxu0 0.0
    %4044 = vmatprep.subr.mxu0 0.0
    %4045 = vmatpush1.xpose.msra.mxu0 0.0
    %4046 = vmatprep.subr.mxu0 0.0
    %4047 = vmatpush1.xpose.msra.mxu0 0.0
    %4048 = vmatprep.subr.mxu0 0.0
    %4049 = vmatpush1.xpose.msra.mxu0 0.0
    %4050 = vmatprep.subr.mxu0 0.0
    %4051 = vmatpush1.xpose.msra.mxu0 0.0
    %4052 = vmatprep.subr.mxu0 0.0
    %4053 = vmatpush1.xpose.msra.mxu0 0.0
    %4054 = vmatprep.subr.mxu0 0.0
    %4055 = vmatpush1.xpose.msra.mxu0 0.0
    %4056 = vmatprep.subr.mxu0 0.0
    %4057 = vmatpush1.xpose.msra.mxu0 0.0
    %4058 = vmatprep.subr.mxu0 0.0
    %4059 = vmatpush1.xpose.msra.mxu0 0.0
    %4060 = vmatprep.subr.mxu0 0.0
    %4061 = vmatpush1.xpose.msra.mxu0 0.0
    %4062 = vmatprep.subr.mxu0 0.0
    %4063 = vmatpush1.xpose.msra.mxu0 0.0
    %4064 = vmatprep.subr.mxu0 0.0
    %4065 = vmatpush1.xpose.msra.mxu0 0.0
    %4066 = vmatprep.subr.mxu0 0.0
    %4067 = vmatpush1.xpose.msra.mxu0 0.0
    %4068 = vmatprep.subr.mxu0 0.0
    %4069 = vmatpush1.xpose.msra.mxu0 0.0
    %4070 = vmatprep.subr.mxu0 0.0
    %4071 = vmatpush1.xpose.msra.mxu0 0.0
    %4072 = vmatprep.mubr.f32.mxu0 0.0
    %4073 = vmatmul.mubr.f32.gmra.mrb[0].mxu0 %v4004
    %v4074 = vpop.f32.mrb[0].mxu0
    %v4075 = vadd.f32 0.0, %v4074
    %v4076 = vpop.f32.mrb[0].mxu0
    %4077 = vdwg.mxu0
    %v4078 = vmul.f32 %v4075, 0.35355338
    %v4079 = vadd.f32 %v4078, %v28
    %v4080 = vsel %vm186, %v4079, -inf
    %4081 = vmax.xlane.f32.xlu0 %v4080
    %v4082 = vpop.xlane.xlu0 %4081
    %v4083 = vsub.f32 %v4079, %v4082
    %v4084 = vmul.f32 %v4083, 1.442695
    %v4085 = vpow.pop %v4084
    %v4086 = vsel %vm186, %v4085, 0.0
    %4087 = vadd.xlane.f32.xlu0 %v4086
    %v4088 = vpop.xlane.xlu0 %4087
    %v4089 = vrcp.pop %v4088
    %v4090 = vmul.f32 %v4085, %v4089
    %4091 = vrot.lane.b32.xlu0 %v3998, 64
    %v4092 = vpop.permute.xlu0 %4091
    %v4095 = vsel %vm186, %v4090, 0
    %4097 = vmatprep.subr.mxu0 0.0
    %4098 = vmatpush1.msra.mxu0 %v4092
    %4099 = vmatprep.subr.mxu0 0.0
    %4100 = vmatpush1.msra.mxu0 0.0
    %4101 = vmatprep.subr.mxu0 0.0
    %4102 = vmatpush1.msra.mxu0 0.0
    %4103 = vmatprep.subr.mxu0 0.0
    %4104 = vmatpush1.msra.mxu0 0.0
    %4105 = vmatprep.subr.mxu0 0.0
    %4106 = vmatpush1.msra.mxu0 0.0
    %4107 = vmatprep.subr.mxu0 0.0
    %4108 = vmatpush1.msra.mxu0 0.0
    %4109 = vmatprep.subr.mxu0 0.0
    %4110 = vmatpush1.msra.mxu0 0.0
    %4111 = vmatprep.subr.mxu0 0.0
    %4112 = vmatpush1.msra.mxu0 0.0
    %4113 = vmatprep.subr.mxu0 0.0
    %4114 = vmatpush1.msra.mxu0 0.0
    %4115 = vmatprep.subr.mxu0 0.0
    %4116 = vmatpush1.msra.mxu0 0.0
    %4117 = vmatprep.subr.mxu0 0.0
    %4118 = vmatpush1.msra.mxu0 0.0
    %4119 = vmatprep.subr.mxu0 0.0
    %4120 = vmatpush1.msra.mxu0 0.0
    %4121 = vmatprep.subr.mxu0 0.0
    %4122 = vmatpush1.msra.mxu0 0.0
    %4123 = vmatprep.subr.mxu0 0.0
    %4124 = vmatpush1.msra.mxu0 0.0
    %4125 = vmatprep.subr.mxu0 0.0
    %4126 = vmatpush1.msra.mxu0 0.0
    %4127 = vmatprep.subr.mxu0 0.0
    %4128 = vmatpush1.msra.mxu0 0.0
    %4129 = vmatprep.subr.mxu0 0.0
    %4130 = vmatpush1.msra.mxu0 0.0
    %4131 = vmatprep.subr.mxu0 0.0
    %4132 = vmatpush1.msra.mxu0 0.0
    %4133 = vmatprep.subr.mxu0 0.0
    %4134 = vmatpush1.msra.mxu0 0.0
    %4135 = vmatprep.subr.mxu0 0.0
    %4136 = vmatpush1.msra.mxu0 0.0
    %4137 = vmatprep.subr.mxu0 0.0
    %4138 = vmatpush1.msra.mxu0 0.0
    %4139 = vmatprep.subr.mxu0 0.0
    %4140 = vmatpush1.msra.mxu0 0.0
    %4141 = vmatprep.subr.mxu0 0.0
    %4142 = vmatpush1.msra.mxu0 0.0
    %4143 = vmatprep.subr.mxu0 0.0
    %4144 = vmatpush1.msra.mxu0 0.0
    %4145 = vmatprep.subr.mxu0 0.0
    %4146 = vmatpush1.msra.mxu0 0.0
    %4147 = vmatprep.subr.mxu0 0.0
    %4148 = vmatpush1.msra.mxu0 0.0
    %4149 = vmatprep.subr.mxu0 0.0
    %4150 = vmatpush1.msra.mxu0 0.0
    %4151 = vmatprep.subr.mxu0 0.0
    %4152 = vmatpush1.msra.mxu0 0.0
    %4153 = vmatprep.subr.mxu0 0.0
    %4154 = vmatpush1.msra.mxu0 0.0
    %4155 = vmatprep.subr.mxu0 0.0
    %4156 = vmatpush1.msra.mxu0 0.0
    %4157 = vmatprep.subr.mxu0 0.0
    %4158 = vmatpush1.msra.mxu0 0.0
    %4159 = vmatprep.subr.mxu0 0.0
    %4160 = vmatpush1.msra.mxu0 0.0
    %4161 = vmatprep.mubr.f32.mxu0 0.0
    %4162 = vmatmul.mubr.f32.gmra.mrb[0].mxu0 %v4095
    %v4163 = vpop.f32.mrb[0].mxu0
    %v4164 = vadd.f32 0.0, %v4163
    %v4165 = vpop.f32.mrb[0].mxu0
    %4166 = vdwg.mxu0
    %4167 = vrot.lane.b32.xlu0 %v3998, 120
    %v4168 = vpop.permute.xlu0 %4167
    %4169 = vrot.lane.b32.xlu0 %v3998, 88
    %v4170 = vpop.permute.xlu0 %4169
    %v4171 = vsel %vm186, %v4168, 0
    %v4173 = vsel %vm186, %v4170, 0
    %4175 = vmatprep.subr.mxu0 0.0
    %4176 = vmatpush1.xpose.msra.mxu0 %v4173
    %4177 = vmatprep.subr.mxu0 0.0
    %4178 = vmatpush1.xpose.msra.mxu0 0.0
    %4179 = vmatprep.subr.mxu0 0.0
    %4180 = vmatpush1.xpose.msra.mxu0 0.0
    %4181 = vmatprep.subr.mxu0 0.0
    %4182 = vmatpush1.xpose.msra.mxu0 0.0
    %4183 = vmatprep.subr.mxu0 0.0
    %4184 = vmatpush1.xpose.msra.mxu0 0.0
    %4185 = vmatprep.subr.mxu0 0.0
    %4186 = vmatpush1.xpose.msra.mxu0 0.0
    %4187 = vmatprep.subr.mxu0 0.0
    %4188 = vmatpush1.xpose.msra.mxu0 0.0
    %4189 = vmatprep.subr.mxu0 0.0
    %4190 = vmatpush1.xpose.msra.mxu0 0.0
    %4191 = vmatprep.subr.mxu0 0.0
    %4192 = vmatpush1.xpose.msra.mxu0 0.0
    %4193 = vmatprep.subr.mxu0 0.0
    %4194 = vmatpush1.xpose.msra.mxu0 0.0
    %4195 = vmatprep.subr.mxu0 0.0
    %4196 = vmatpush1.xpose.msra.mxu0 0.0
    %4197 = vmatprep.subr.mxu0 0.0
    %4198 = vmatpush1.xpose.msra.mxu0 0.0
    %4199 = vmatprep.subr.mxu0 0.0
    %4200 = vmatpush1.xpose.msra.mxu0 0.0
    %4201 = vmatprep.subr.mxu0 0.0
    %4202 = vmatpush1.xpose.msra.mxu0 0.0
    %4203 = vmatprep.subr.mxu0 0.0
    %4204 = vmatpush1.xpose.msra.mxu0 0.0
    %4205 = vmatprep.subr.mxu0 0.0
    %4206 = vmatpush1.xpose.msra.mxu0 0.0
    %4207 = vmatprep.subr.mxu0 0.0
    %4208 = vmatpush1.xpose.msra.mxu0 0.0
    %4209 = vmatprep.subr.mxu0 0.0
    %4210 = vmatpush1.xpose.msra.mxu0 0.0
    %4211 = vmatprep.subr.mxu0 0.0
    %4212 = vmatpush1.xpose.msra.mxu0 0.0
    %4213 = vmatprep.subr.mxu0 0.0
    %4214 = vmatpush1.xpose.msra.mxu0 0.0
    %4215 = vmatprep.subr.mxu0 0.0
    %4216 = vmatpush1.xpose.msra.mxu0 0.0
    %4217 = vmatprep.subr.mxu0 0.0
    %4218 = vmatpush1.xpose.msra.mxu0 0.0
    %4219 = vmatprep.subr.mxu0 0.0
    %4220 = vmatpush1.xpose.msra.mxu0 0.0
    %4221 = vmatprep.subr.mxu0 0.0
    %4222 = vmatpush1.xpose.msra.mxu0 0.0
    %4223 = vmatprep.subr.mxu0 0.0
    %4224 = vmatpush1.xpose.msra.mxu0 0.0
    %4225 = vmatprep.subr.mxu0 0.0
    %4226 = vmatpush1.xpose.msra.mxu0 0.0
    %4227 = vmatprep.subr.mxu0 0.0
    %4228 = vmatpush1.xpose.msra.mxu0 0.0
    %4229 = vmatprep.subr.mxu0 0.0
    %4230 = vmatpush1.xpose.msra.mxu0 0.0
    %4231 = vmatprep.subr.mxu0 0.0
    %4232 = vmatpush1.xpose.msra.mxu0 0.0
    %4233 = vmatprep.subr.mxu0 0.0
    %4234 = vmatpush1.xpose.msra.mxu0 0.0
    %4235 = vmatprep.subr.mxu0 0.0
    %4236 = vmatpush1.xpose.msra.mxu0 0.0
    %4237 = vmatprep.subr.mxu0 0.0
    %4238 = vmatpush1.xpose.msra.mxu0 0.0
    %4239 = vmatprep.mubr.f32.mxu0 0.0
    %4240 = vmatmul.mubr.f32.gmra.mrb[0].mxu0 %v4171
    %v4241 = vpop.f32.mrb[0].mxu0
    %v4242 = vadd.f32 0.0, %v4241
    %v4243 = vpop.f32.mrb[0].mxu0
    %4244 = vdwg.mxu0
    %v4245 = vmul.f32 %v4242, 0.35355338
    %v4246 = vadd.f32 %v4245, %v28
    %v4247 = vsel %vm186, %v4246, -inf
    %4248 = vmax.xlane.f32.xlu0 %v4247
    %v4249 = vpop.xlane.xlu0 %4248
    %v4250 = vsub.f32 %v4246, %v4249
    %v4251 = vmul.f32 %v4250, 1.442695
    %v4252 = vpow.pop %v4251
    %v4253 = vsel %vm186, %v4252, 0.0
    %4254 = vadd.xlane.f32.xlu0 %v4253
    %v4255 = vpop.xlane.xlu0 %4254
    %v4256 = vrcp.pop %v4255
    %v4257 = vmul.f32 %v4252, %v4256
    %4258 = vrot.lane.b32.xlu0 %v3998, 56
    %v4259 = vpop.permute.xlu0 %4258
    %v4262 = vsel %vm186, %v4257, 0
    %4264 = vmatprep.subr.mxu0 0.0
    %4265 = vmatpush1.msra.mxu0 %v4259
    %4266 = vmatprep.subr.mxu0 0.0
    %4267 = vmatpush1.msra.mxu0 0.0
    %4268 = vmatprep.subr.mxu0 0.0
    %4269 = vmatpush1.msra.mxu0 0.0
    %4270 = vmatprep.subr.mxu0 0.0
    %4271 = vmatpush1.msra.mxu0 0.0
    %4272 = vmatprep.subr.mxu0 0.0
    %4273 = vmatpush1.msra.mxu0 0.0
    %4274 = vmatprep.subr.mxu0 0.0
    %4275 = vmatpush1.msra.mxu0 0.0
    %4276 = vmatprep.subr.mxu0 0.0
    %4277 = vmatpush1.msra.mxu0 0.0
    %4278 = vmatprep.subr.mxu0 0.0
    %4279 = vmatpush1.msra.mxu0 0.0
    %4280 = vmatprep.subr.mxu0 0.0
    %4281 = vmatpush1.msra.mxu0 0.0
    %4282 = vmatprep.subr.mxu0 0.0
    %4283 = vmatpush1.msra.mxu0 0.0
    %4284 = vmatprep.subr.mxu0 0.0
    %4285 = vmatpush1.msra.mxu0 0.0
    %4286 = vmatprep.subr.mxu0 0.0
    %4287 = vmatpush1.msra.mxu0 0.0
    %4288 = vmatprep.subr.mxu0 0.0
    %4289 = vmatpush1.msra.mxu0 0.0
    %4290 = vmatprep.subr.mxu0 0.0
    %4291 = vmatpush1.msra.mxu0 0.0
    %4292 = vmatprep.subr.mxu0 0.0
    %4293 = vmatpush1.msra.mxu0 0.0
    %4294 = vmatprep.subr.mxu0 0.0
    %4295 = vmatpush1.msra.mxu0 0.0
    %4296 = vmatprep.subr.mxu0 0.0
    %4297 = vmatpush1.msra.mxu0 0.0
    %4298 = vmatprep.subr.mxu0 0.0
    %4299 = vmatpush1.msra.mxu0 0.0
    %4300 = vmatprep.subr.mxu0 0.0
    %4301 = vmatpush1.msra.mxu0 0.0
    %4302 = vmatprep.subr.mxu0 0.0
    %4303 = vmatpush1.msra.mxu0 0.0
    %4304 = vmatprep.subr.mxu0 0.0
    %4305 = vmatpush1.msra.mxu0 0.0
    %4306 = vmatprep.subr.mxu0 0.0
    %4307 = vmatpush1.msra.mxu0 0.0
    %4308 = vmatprep.subr.mxu0 0.0
    %4309 = vmatpush1.msra.mxu0 0.0
    %4310 = vmatprep.subr.mxu0 0.0
    %4311 = vmatpush1.msra.mxu0 0.0
    %4312 = vmatprep.subr.mxu0 0.0
    %4313 = vmatpush1.msra.mxu0 0.0
    %4314 = vmatprep.subr.mxu0 0.0
    %4315 = vmatpush1.msra.mxu0 0.0
    %4316 = vmatprep.subr.mxu0 0.0
    %4317 = vmatpush1.msra.mxu0 0.0
    %4318 = vmatprep.subr.mxu0 0.0
    %4319 = vmatpush1.msra.mxu0 0.0
    %4320 = vmatprep.subr.mxu0 0.0
    %4321 = vmatpush1.msra.mxu0 0.0
    %4322 = vmatprep.subr.mxu0 0.0
    %4323 = vmatpush1.msra.mxu0 0.0
    %4324 = vmatprep.subr.mxu0 0.0
    %4325 = vmatpush1.msra.mxu0 0.0
    %4326 = vmatprep.subr.mxu0 0.0
    %4327 = vmatpush1.msra.mxu0 0.0
    %4328 = vmatprep.mubr.f32.mxu0 0.0
    %4329 = vmatmul.mubr.f32.gmra.mrb[0].mxu0 %v4262
    %v4330 = vpop.f32.mrb[0].mxu0
    %v4331 = vadd.f32 0.0, %v4330
    %v4332 = vpop.f32.mrb[0].mxu0
    %4333 = vdwg.mxu0
    %4334 = vrot.lane.b32.xlu0 %v3998, 112
    %v4335 = vpop.permute.xlu0 %4334
    %4336 = vrot.lane.b32.xlu0 %v3998, 80
    %v4337 = vpop.permute.xlu0 %4336
    %v4338 = vsel %vm186, %v4335, 0
    %v4340 = vsel %vm186, %v4337, 0
    %4342 = vmatprep.subr.mxu0 0.0
    %4343 = vmatpush1.xpose.msra.mxu0 %v4340
    %4344 = vmatprep.subr.mxu0 0.0
    %4345 = vmatpush1.xpose.msra.mxu0 0.0
    %4346 = vmatprep.subr.mxu0 0.0
    %4347 = vmatpush1.xpose.msra.mxu0 0.0
    %4348 = vmatprep.subr.mxu0 0.0
    %4349 = vmatpush1.xpose.msra.mxu0 0.0
    %4350 = vmatprep.subr.mxu0 0.0
    %4351 = vmatpush1.xpose.msra.mxu0 0.0
    %4352 = vmatprep.subr.mxu0 0.0
    %4353 = vmatpush1.xpose.msra.mxu0 0.0
    %4354 = vmatprep.subr.mxu0 0.0
    %4355 = vmatpush1.xpose.msra.mxu0 0.0
    %4356 = vmatprep.subr.mxu0 0.0
    %4357 = vmatpush1.xpose.msra.mxu0 0.0
    %4358 = vmatprep.subr.mxu0 0.0
    %4359 = vmatpush1.xpose.msra.mxu0 0.0
    %4360 = vmatprep.subr.mxu0 0.0
    %4361 = vmatpush1.xpose.msra.mxu0 0.0
    %4362 = vmatprep.subr.mxu0 0.0
    %4363 = vmatpush1.xpose.msra.mxu0 0.0
    %4364 = vmatprep.subr.mxu0 0.0
    %4365 = vmatpush1.xpose.msra.mxu0 0.0
    %4366 = vmatprep.subr.mxu0 0.0
    %4367 = vmatpush1.xpose.msra.mxu0 0.0
    %4368 = vmatprep.subr.mxu0 0.0
    %4369 = vmatpush1.xpose.msra.mxu0 0.0
    %4370 = vmatprep.subr.mxu0 0.0
    %4371 = vmatpush1.xpose.msra.mxu0 0.0
    %4372 = vmatprep.subr.mxu0 0.0
    %4373 = vmatpush1.xpose.msra.mxu0 0.0
    %4374 = vmatprep.subr.mxu0 0.0
    %4375 = vmatpush1.xpose.msra.mxu0 0.0
    %4376 = vmatprep.subr.mxu0 0.0
    %4377 = vmatpush1.xpose.msra.mxu0 0.0
    %4378 = vmatprep.subr.mxu0 0.0
    %4379 = vmatpush1.xpose.msra.mxu0 0.0
    %4380 = vmatprep.subr.mxu0 0.0
    %4381 = vmatpush1.xpose.msra.mxu0 0.0
    %4382 = vmatprep.subr.mxu0 0.0
    %4383 = vmatpush1.xpose.msra.mxu0 0.0
    %4384 = vmatprep.subr.mxu0 0.0
    %4385 = vmatpush1.xpose.msra.mxu0 0.0
    %4386 = vmatprep.subr.mxu0 0.0
    %4387 = vmatpush1.xpose.msra.mxu0 0.0
    %4388 = vmatprep.subr.mxu0 0.0
    %4389 = vmatpush1.xpose.msra.mxu0 0.0
    %4390 = vmatprep.subr.mxu0 0.0
    %4391 = vmatpush1.xpose.msra.mxu0 0.0
    %4392 = vmatprep.subr.mxu0 0.0
    %4393 = vmatpush1.xpose.msra.mxu0 0.0
    %4394 = vmatprep.subr.mxu0 0.0
    %4395 = vmatpush1.xpose.msra.mxu0 0.0
    %4396 = vmatprep.subr.mxu0 0.0
    %4397 = vmatpush1.xpose.msra.mxu0 0.0
    %4398 = vmatprep.subr.mxu0 0.0
    %4399 = vmatpush1.xpose.msra.mxu0 0.0
    %4400 = vmatprep.subr.mxu0 0.0
    %4401 = vmatpush1.xpose.msra.mxu0 0.0
    %4402 = vmatprep.subr.mxu0 0.0
    %4403 = vmatpush1.xpose.msra.mxu0 0.0
    %4404 = vmatprep.subr.mxu0 0.0
    %4405 = vmatpush1.xpose.msra.mxu0 0.0
    %4406 = vmatprep.mubr.f32.mxu0 0.0
    %4407 = vmatmul.mubr.f32.gmra.mrb[0].mxu0 %v4338
    %v4408 = vpop.f32.mrb[0].mxu0
    %v4409 = vadd.f32 0.0, %v4408
    %v4410 = vpop.f32.mrb[0].mxu0
    %4411 = vdwg.mxu0
    %v4412 = vmul.f32 %v4409, 0.35355338
    %v4413 = vadd.f32 %v4412, %v28
    %v4414 = vsel %vm186, %v4413, -inf
    %4415 = vmax.xlane.f32.xlu0 %v4414
    %v4416 = vpop.xlane.xlu0 %4415
    %v4417 = vsub.f32 %v4413, %v4416
    %v4418 = vmul.f32 %v4417, 1.442695
    %v4419 = vpow.pop %v4418
    %v4420 = vsel %vm186, %v4419, 0.0
    %4421 = vadd.xlane.f32.xlu0 %v4420
    %v4422 = vpop.xlane.xlu0 %4421
    %v4423 = vrcp.pop %v4422
    %v4424 = vmul.f32 %v4419, %v4423
    %4425 = vrot.lane.b32.xlu0 %v3998, 48
    %v4426 = vpop.permute.xlu0 %4425
    %v4429 = vsel %vm186, %v4424, 0
    %4431 = vmatprep.subr.mxu0 0.0
    %4432 = vmatpush1.msra.mxu0 %v4426
    %4433 = vmatprep.subr.mxu0 0.0
    %4434 = vmatpush1.msra.mxu0 0.0
    %4435 = vmatprep.subr.mxu0 0.0
    %4436 = vmatpush1.msra.mxu0 0.0
    %4437 = vmatprep.subr.mxu0 0.0
    %4438 = vmatpush1.msra.mxu0 0.0
    %4439 = vmatprep.subr.mxu0 0.0
    %4440 = vmatpush1.msra.mxu0 0.0
    %4441 = vmatprep.subr.mxu0 0.0
    %4442 = vmatpush1.msra.mxu0 0.0
    %4443 = vmatprep.subr.mxu0 0.0
    %4444 = vmatpush1.msra.mxu0 0.0
    %4445 = vmatprep.subr.mxu0 0.0
    %4446 = vmatpush1.msra.mxu0 0.0
    %4447 = vmatprep.subr.mxu0 0.0
    %4448 = vmatpush1.msra.mxu0 0.0
    %4449 = vmatprep.subr.mxu0 0.0
    %4450 = vmatpush1.msra.mxu0 0.0
    %4451 = vmatprep.subr.mxu0 0.0
    %4452 = vmatpush1.msra.mxu0 0.0
    %4453 = vmatprep.subr.mxu0 0.0
    %4454 = vmatpush1.msra.mxu0 0.0
    %4455 = vmatprep.subr.mxu0 0.0
    %4456 = vmatpush1.msra.mxu0 0.0
    %4457 = vmatprep.subr.mxu0 0.0
    %4458 = vmatpush1.msra.mxu0 0.0
    %4459 = vmatprep.subr.mxu0 0.0
    %4460 = vmatpush1.msra.mxu0 0.0
    %4461 = vmatprep.subr.mxu0 0.0
    %4462 = vmatpush1.msra.mxu0 0.0
    %4463 = vmatprep.subr.mxu0 0.0
    %4464 = vmatpush1.msra.mxu0 0.0
    %4465 = vmatprep.subr.mxu0 0.0
    %4466 = vmatpush1.msra.mxu0 0.0
    %4467 = vmatprep.subr.mxu0 0.0
    %4468 = vmatpush1.msra.mxu0 0.0
    %4469 = vmatprep.subr.mxu0 0.0
    %4470 = vmatpush1.msra.mxu0 0.0
    %4471 = vmatprep.subr.mxu0 0.0
    %4472 = vmatpush1.msra.mxu0 0.0
    %4473 = vmatprep.subr.mxu0 0.0
    %4474 = vmatpush1.msra.mxu0 0.0
    %4475 = vmatprep.subr.mxu0 0.0
    %4476 = vmatpush1.msra.mxu0 0.0
    %4477 = vmatprep.subr.mxu0 0.0
    %4478 = vmatpush1.msra.mxu0 0.0
    %4479 = vmatprep.subr.mxu0 0.0
    %4480 = vmatpush1.msra.mxu0 0.0
    %4481 = vmatprep.subr.mxu0 0.0
    %4482 = vmatpush1.msra.mxu0 0.0
    %4483 = vmatprep.subr.mxu0 0.0
    %4484 = vmatpush1.msra.mxu0 0.0
    %4485 = vmatprep.subr.mxu0 0.0
    %4486 = vmatpush1.msra.mxu0 0.0
    %4487 = vmatprep.subr.mxu0 0.0
    %4488 = vmatpush1.msra.mxu0 0.0
    %4489 = vmatprep.subr.mxu0 0.0
    %4490 = vmatpush1.msra.mxu0 0.0
    %4491 = vmatprep.subr.mxu0 0.0
    %4492 = vmatpush1.msra.mxu0 0.0
    %4493 = vmatprep.subr.mxu0 0.0
    %4494 = vmatpush1.msra.mxu0 0.0
    %4495 = vmatprep.mubr.f32.mxu0 0.0
    %4496 = vmatmul.mubr.f32.gmra.mrb[0].mxu0 %v4429
    %v4497 = vpop.f32.mrb[0].mxu0
    %v4498 = vadd.f32 0.0, %v4497
    %v4499 = vpop.f32.mrb[0].mxu0
    %4500 = vdwg.mxu0
    %4501 = vrot.lane.b32.xlu0 %v3998, 104
    %v4502 = vpop.permute.xlu0 %4501
    %4503 = vrot.lane.b32.xlu0 %v3998, 72
    %v4504 = vpop.permute.xlu0 %4503
    %v4505 = vsel %vm186, %v4502, 0
    %v4507 = vsel %vm186, %v4504, 0
    %4509 = vmatprep.subr.mxu0 0.0
    %4510 = vmatpush1.xpose.msra.mxu0 %v4507
    %4511 = vmatprep.subr.mxu0 0.0
    %4512 = vmatpush1.xpose.msra.mxu0 0.0
    %4513 = vmatprep.subr.mxu0 0.0
    %4514 = vmatpush1.xpose.msra.mxu0 0.0
    %4515 = vmatprep.subr.mxu0 0.0
    %4516 = vmatpush1.xpose.msra.mxu0 0.0
    %4517 = vmatprep.subr.mxu0 0.0
    %4518 = vmatpush1.xpose.msra.mxu0 0.0
    %4519 = vmatprep.subr.mxu0 0.0
    %4520 = vmatpush1.xpose.msra.mxu0 0.0
    %4521 = vmatprep.subr.mxu0 0.0
    %4522 = vmatpush1.xpose.msra.mxu0 0.0
    %4523 = vmatprep.subr.mxu0 0.0
    %4524 = vmatpush1.xpose.msra.mxu0 0.0
    %4525 = vmatprep.subr.mxu0 0.0
    %4526 = vmatpush1.xpose.msra.mxu0 0.0
    %4527 = vmatprep.subr.mxu0 0.0
    %4528 = vmatpush1.xpose.msra.mxu0 0.0
    %4529 = vmatprep.subr.mxu0 0.0
    %4530 = vmatpush1.xpose.msra.mxu0 0.0
    %4531 = vmatprep.subr.mxu0 0.0
    %4532 = vmatpush1.xpose.msra.mxu0 0.0
    %4533 = vmatprep.subr.mxu0 0.0
    %4534 = vmatpush1.xpose.msra.mxu0 0.0
    %4535 = vmatprep.subr.mxu0 0.0
    %4536 = vmatpush1.xpose.msra.mxu0 0.0
    %4537 = vmatprep.subr.mxu0 0.0
    %4538 = vmatpush1.xpose.msra.mxu0 0.0
    %4539 = vmatprep.subr.mxu0 0.0
    %4540 = vmatpush1.xpose.msra.mxu0 0.0
    %4541 = vmatprep.subr.mxu0 0.0
    %4542 = vmatpush1.xpose.msra.mxu0 0.0
    %4543 = vmatprep.subr.mxu0 0.0
    %4544 = vmatpush1.xpose.msra.mxu0 0.0
    %4545 = vmatprep.subr.mxu0 0.0
    %4546 = vmatpush1.xpose.msra.mxu0 0.0
    %4547 = vmatprep.subr.mxu0 0.0
    %4548 = vmatpush1.xpose.msra.mxu0 0.0
    %4549 = vmatprep.subr.mxu0 0.0
    %4550 = vmatpush1.xpose.msra.mxu0 0.0
    %4551 = vmatprep.subr.mxu0 0.0
    %4552 = vmatpush1.xpose.msra.mxu0 0.0
    %4553 = vmatprep.subr.mxu0 0.0
    %4554 = vmatpush1.xpose.msra.mxu0 0.0
    %4555 = vmatprep.subr.mxu0 0.0
    %4556 = vmatpush1.xpose.msra.mxu0 0.0
    %4557 = vmatprep.subr.mxu0 0.0
    %4558 = vmatpush1.xpose.msra.mxu0 0.0
    %4559 = vmatprep.subr.mxu0 0.0
    %4560 = vmatpush1.xpose.msra.mxu0 0.0
    %4561 = vmatprep.subr.mxu0 0.0
    %4562 = vmatpush1.xpose.msra.mxu0 0.0
    %4563 = vmatprep.subr.mxu0 0.0
    %4564 = vmatpush1.xpose.msra.mxu0 0.0
    %4565 = vmatprep.subr.mxu0 0.0
    %4566 = vmatpush1.xpose.msra.mxu0 0.0
    %4567 = vmatprep.subr.mxu0 0.0
    %4568 = vmatpush1.xpose.msra.mxu0 0.0
    %4569 = vmatprep.subr.mxu0 0.0
    %4570 = vmatpush1.xpose.msra.mxu0 0.0
    %4571 = vmatprep.subr.mxu0 0.0
    %4572 = vmatpush1.xpose.msra.mxu0 0.0
    %4573 = vmatprep.mubr.f32.mxu0 0.0
    %4574 = vmatmul.mubr.f32.gmra.mrb[0].mxu0 %v4505
    %v4575 = vpop.f32.mrb[0].mxu0
    %v4576 = vadd.f32 0.0, %v4575
    %v4577 = vpop.f32.mrb[0].mxu0
    %4578 = vdwg.mxu0
    %v4579 = vmul.f32 %v4576, 0.35355338
    %v4580 = vadd.f32 %v4579, %v28
    %v4581 = vsel %vm186, %v4580, -inf
    %4582 = vmax.xlane.f32.xlu0 %v4581
    %v4583 = vpop.xlane.xlu0 %4582
    %v4584 = vsub.f32 %v4580, %v4583
    %v4585 = vmul.f32 %v4584, 1.442695
    %v4586 = vpow.pop %v4585
    %v4587 = vsel %vm186, %v4586, 0.0
    %4588 = vadd.xlane.f32.xlu0 %v4587
    %v4589 = vpop.xlane.xlu0 %4588
    %v4590 = vrcp.pop %v4589
    %v4591 = vmul.f32 %v4586, %v4590
    %4592 = vrot.lane.b32.xlu0 %v3998, 40
    %v4593 = vpop.permute.xlu0 %4592
    %v4596 = vsel %vm186, %v4591, 0
    %4598 = vmatprep.subr.mxu0 0.0
    %4599 = vmatpush1.msra.mxu0 %v4593
    %4600 = vmatprep.subr.mxu0 0.0
    %4601 = vmatpush1.msra.mxu0 0.0
    %4602 = vmatprep.subr.mxu0 0.0
    %4603 = vmatpush1.msra.mxu0 0.0
    %4604 = vmatprep.subr.mxu0 0.0
    %4605 = vmatpush1.msra.mxu0 0.0
    %4606 = vmatprep.subr.mxu0 0.0
    %4607 = vmatpush1.msra.mxu0 0.0
    %4608 = vmatprep.subr.mxu0 0.0
    %4609 = vmatpush1.msra.mxu0 0.0
    %4610 = vmatprep.subr.mxu0 0.0
    %4611 = vmatpush1.msra.mxu0 0.0
    %4612 = vmatprep.subr.mxu0 0.0
    %4613 = vmatpush1.msra.mxu0 0.0
    %4614 = vmatprep.subr.mxu0 0.0
    %4615 = vmatpush1.msra.mxu0 0.0
    %4616 = vmatprep.subr.mxu0 0.0
    %4617 = vmatpush1.msra.mxu0 0.0
    %4618 = vmatprep.subr.mxu0 0.0
    %4619 = vmatpush1.msra.mxu0 0.0
    %4620 = vmatprep.subr.mxu0 0.0
    %4621 = vmatpush1.msra.mxu0 0.0
    %4622 = vmatprep.subr.mxu0 0.0
    %4623 = vmatpush1.msra.mxu0 0.0
    %4624 = vmatprep.subr.mxu0 0.0
    %4625 = vmatpush1.msra.mxu0 0.0
    %4626 = vmatprep.subr.mxu0 0.0
    %4627 = vmatpush1.msra.mxu0 0.0
    %4628 = vmatprep.subr.mxu0 0.0
    %4629 = vmatpush1.msra.mxu0 0.0
    %4630 = vmatprep.subr.mxu0 0.0
    %4631 = vmatpush1.msra.mxu0 0.0
    %4632 = vmatprep.subr.mxu0 0.0
    %4633 = vmatpush1.msra.mxu0 0.0
    %4634 = vmatprep.subr.mxu0 0.0
    %4635 = vmatpush1.msra.mxu0 0.0
    %4636 = vmatprep.subr.mxu0 0.0
    %4637 = vmatpush1.msra.mxu0 0.0
    %4638 = vmatprep.subr.mxu0 0.0
    %4639 = vmatpush1.msra.mxu0 0.0
    %4640 = vmatprep.subr.mxu0 0.0
    %4641 = vmatpush1.msra.mxu0 0.0
    %4642 = vmatprep.subr.mxu0 0.0
    %4643 = vmatpush1.msra.mxu0 0.0
    %4644 = vmatprep.subr.mxu0 0.0
    %4645 = vmatpush1.msra.mxu0 0.0
    %4646 = vmatprep.subr.mxu0 0.0
    %4647 = vmatpush1.msra.mxu0 0.0
    %4648 = vmatprep.subr.mxu0 0.0
    %4649 = vmatpush1.msra.mxu0 0.0
    %4650 = vmatprep.subr.mxu0 0.0
    %4651 = vmatpush1.msra.mxu0 0.0
    %4652 = vmatprep.subr.mxu0 0.0
    %4653 = vmatpush1.msra.mxu0 0.0
    %4654 = vmatprep.subr.mxu0 0.0
    %4655 = vmatpush1.msra.mxu0 0.0
    %4656 = vmatprep.subr.mxu0 0.0
    %4657 = vmatpush1.msra.mxu0 0.0
    %4658 = vmatprep.subr.mxu0 0.0
    %4659 = vmatpush1.msra.mxu0 0.0
    %4660 = vmatprep.subr.mxu0 0.0
    %4661 = vmatpush1.msra.mxu0 0.0
    %4662 = vmatprep.mubr.f32.mxu0 0.0
    %4663 = vmatmul.mubr.f32.gmra.mrb[0].mxu0 %v4596
    %v4664 = vpop.f32.mrb[0].mxu0
    %v4665 = vadd.f32 0.0, %v4664
    %v4666 = vpop.f32.mrb[0].mxu0
    %4667 = vdwg.mxu0
    %4669 = vrot.lane.b32.xlu0 %v4331, 8
    %v4670 = vpop.permute.xlu0 %4669
    %4673 = vrot.lane.b32.xlu0 %v4498, 16
    %v4674 = vpop.permute.xlu0 %4673
    %4677 = vrot.lane.b32.xlu0 %v4665, 24
    %v4678 = vpop.permute.xlu0 %4677
    %v4680 = vsel %vm186, %v4164, %v4670
    %v4681 = vsel %vm274, %v4680, %v4674
    %v4682 = vsel %vm1024, %v4681, %v4678
    %v4683 = vlaneseq
    %v4684 = vshrl.u32 %v4683, 7
    %v4685 = vsub.s32 2, %v4684
    %v4686 = vrot.slane %v3878, %v4685
    %4691 = vrot.lane.b32.xlu0 %v3880, 32
    %v4692 = vpop.permute.xlu0 %4691
    %4693 = vrot.lane.b32.xlu0 %v3882, 32
    %v4694 = vpop.permute.xlu0 %4693
    %4695 = vrot.lane.b32.xlu0 %v3884, 32
    %v4696 = vpop.permute.xlu0 %4695
    %4697 = vrot.lane.b32.xlu0 %v3886, 32
    %v4698 = vpop.permute.xlu0 %4697
    %v4704 = vsel %vm59, %v4682, 0
    %4706 = vmatprep.subr.mxu0 0.0
    %4707 = vmatpush1.msra.mxu0 %v4692
    %4708 = vmatprep.subr.mxu0 0.0
    %4709 = vmatpush1.msra.mxu0 %v4694
    %4710 = vmatprep.subr.mxu0 0.0
    %4711 = vmatpush1.msra.mxu0 %v4696
    %4712 = vmatprep.subr.mxu0 0.0
    %4713 = vmatpush1.msra.mxu0 %v4698
    %4714 = vmatprep.subr.mxu0 0.0
    %4715 = vmatpush1.msra.mxu0 0.0
    %4716 = vmatprep.subr.mxu0 0.0
    %4717 = vmatpush1.msra.mxu0 0.0
    %4718 = vmatprep.subr.mxu0 0.0
    %4719 = vmatpush1.msra.mxu0 0.0
    %4720 = vmatprep.subr.mxu0 0.0
    %4721 = vmatpush1.msra.mxu0 0.0
    %4722 = vmatprep.subr.mxu0 0.0
    %4723 = vmatpush1.msra.mxu0 0.0
    %4724 = vmatprep.subr.mxu0 0.0
    %4725 = vmatpush1.msra.mxu0 0.0
    %4726 = vmatprep.subr.mxu0 0.0
    %4727 = vmatpush1.msra.mxu0 0.0
    %4728 = vmatprep.subr.mxu0 0.0
    %4729 = vmatpush1.msra.mxu0 0.0
    %4730 = vmatprep.subr.mxu0 0.0
    %4731 = vmatpush1.msra.mxu0 0.0
    %4732 = vmatprep.subr.mxu0 0.0
    %4733 = vmatpush1.msra.mxu0 0.0
    %4734 = vmatprep.subr.mxu0 0.0
    %4735 = vmatpush1.msra.mxu0 0.0
    %4736 = vmatprep.subr.mxu0 0.0
    %4737 = vmatpush1.msra.mxu0 0.0
    %4738 = vmatprep.subr.mxu0 0.0
    %4739 = vmatpush1.msra.mxu0 0.0
    %4740 = vmatprep.subr.mxu0 0.0
    %4741 = vmatpush1.msra.mxu0 0.0
    %4742 = vmatprep.subr.mxu0 0.0
    %4743 = vmatpush1.msra.mxu0 0.0
    %4744 = vmatprep.subr.mxu0 0.0
    %4745 = vmatpush1.msra.mxu0 0.0
    %4746 = vmatprep.subr.mxu0 0.0
    %4747 = vmatpush1.msra.mxu0 0.0
    %4748 = vmatprep.subr.mxu0 0.0
    %4749 = vmatpush1.msra.mxu0 0.0
    %4750 = vmatprep.subr.mxu0 0.0
    %4751 = vmatpush1.msra.mxu0 0.0
    %4752 = vmatprep.subr.mxu0 0.0
    %4753 = vmatpush1.msra.mxu0 0.0
    %4754 = vmatprep.subr.mxu0 0.0
    %4755 = vmatpush1.msra.mxu0 0.0
    %4756 = vmatprep.subr.mxu0 0.0
    %4757 = vmatpush1.msra.mxu0 0.0
    %4758 = vmatprep.subr.mxu0 0.0
    %4759 = vmatpush1.msra.mxu0 0.0
    %4760 = vmatprep.subr.mxu0 0.0
    %4761 = vmatpush1.msra.mxu0 0.0
    %4762 = vmatprep.subr.mxu0 0.0
    %4763 = vmatpush1.msra.mxu0 0.0
    %4764 = vmatprep.subr.mxu0 0.0
    %4765 = vmatpush1.msra.mxu0 0.0
    %4766 = vmatprep.subr.mxu0 0.0
    %4767 = vmatpush1.msra.mxu0 0.0
    %4768 = vmatprep.subr.mxu0 0.0
    %4769 = vmatpush1.msra.mxu0 0.0
    %4770 = vmatprep.mubr.f32.mxu0 0.0
    %4771 = vmatmul.mubr.f32.gmra.mrb[0].mxu0 %v4704
    %v4772 = vpop.f32.mrb[0].mxu0
    %v4773 = vadd.f32 %v4686, %v4772
    %v4774 = vpop.f32.mrb[0].mxu0
    %4775 = vdwg.mxu0
    %v4776 = vadd.f32 %v4773, %v3876
    %v4777 = vsel %vm59, %v4776, 0.0
    %4778 = vadd.xlane.f32.xlu0 %v4777
    %v4779 = vpop.xlane.xlu0 %4778
    %v4780 = vmul.f32 %v4779, %v66
    %v4781 = vsub.f32 %v4776, %v4780
    %v4782 = vmul.f32 %v4781, %v4781
    %v4783 = vsel %vm59, %v4782, 0.0
    %4784 = vadd.xlane.f32.xlu0 %v4783
    %v4785 = vpop.xlane.xlu0 %4784
    %v4786 = vmul.f32 %v4785, %v66
    %v4787 = vadd.f32 %v4786, 1e-05
    %v4788 = vrsqrt.pop %v4787
    %v4789 = vmul.f32 %v4781, %v4788
    %v4790 = vlaneseq
    %v4791 = vshrl.u32 %v4790, 7
    %v4792 = vsub.s32 3, %v4791
    %v4793 = vrot.slane %v3878, %v4792
    %v4794 = vmul.f32 %v4789, %v4793
    %v4795 = vlaneseq
    %v4796 = vshrl.u32 %v4795, 7
    %v4797 = vsub.s32 4, %v4796
    %v4798 = vrot.slane %v3878, %v4797
    %v4799 = vadd.f32 %v4794, %v4798
    %v4800 = vlaneseq
    %v4801 = vshrl.u32 %v4800, 7
    %v4802 = vsub.s32 6, %v4801
    %v4803 = vrot.slane %v3878, %v4802
    %v4805 = vsel %vm59, %v4799, 0
    %4807 = vmatprep.subr.mxu0 0.0
    %4808 = vmatpush1.msra.mxu0 %v3881
    %4809 = vmatprep.subr.mxu0 0.0
    %4810 = vmatpush1.msra.mxu0 %v3883
    %4811 = vmatprep.subr.mxu0 0.0
    %4812 = vmatpush1.msra.mxu0 %v3885
    %4813 = vmatprep.subr.mxu0 0.0
    %4814 = vmatpush1.msra.mxu0 %v3887
    %4815 = vmatprep.subr.mxu0 0.0
    %4816 = vmatpush1.msra.mxu0 0.0
    %4817 = vmatprep.subr.mxu0 0.0
    %4818 = vmatpush1.msra.mxu0 0.0
    %4819 = vmatprep.subr.mxu0 0.0
    %4820 = vmatpush1.msra.mxu0 0.0
    %4821 = vmatprep.subr.mxu0 0.0
    %4822 = vmatpush1.msra.mxu0 0.0
    %4823 = vmatprep.subr.mxu0 0.0
    %4824 = vmatpush1.msra.mxu0 0.0
    %4825 = vmatprep.subr.mxu0 0.0
    %4826 = vmatpush1.msra.mxu0 0.0
    %4827 = vmatprep.subr.mxu0 0.0
    %4828 = vmatpush1.msra.mxu0 0.0
    %4829 = vmatprep.subr.mxu0 0.0
    %4830 = vmatpush1.msra.mxu0 0.0
    %4831 = vmatprep.subr.mxu0 0.0
    %4832 = vmatpush1.msra.mxu0 0.0
    %4833 = vmatprep.subr.mxu0 0.0
    %4834 = vmatpush1.msra.mxu0 0.0
    %4835 = vmatprep.subr.mxu0 0.0
    %4836 = vmatpush1.msra.mxu0 0.0
    %4837 = vmatprep.subr.mxu0 0.0
    %4838 = vmatpush1.msra.mxu0 0.0
    %4839 = vmatprep.subr.mxu0 0.0
    %4840 = vmatpush1.msra.mxu0 0.0
    %4841 = vmatprep.subr.mxu0 0.0
    %4842 = vmatpush1.msra.mxu0 0.0
    %4843 = vmatprep.subr.mxu0 0.0
    %4844 = vmatpush1.msra.mxu0 0.0
    %4845 = vmatprep.subr.mxu0 0.0
    %4846 = vmatpush1.msra.mxu0 0.0
    %4847 = vmatprep.subr.mxu0 0.0
    %4848 = vmatpush1.msra.mxu0 0.0
    %4849 = vmatprep.subr.mxu0 0.0
    %4850 = vmatpush1.msra.mxu0 0.0
    %4851 = vmatprep.subr.mxu0 0.0
    %4852 = vmatpush1.msra.mxu0 0.0
    %4853 = vmatprep.subr.mxu0 0.0
    %4854 = vmatpush1.msra.mxu0 0.0
    %4855 = vmatprep.subr.mxu0 0.0
    %4856 = vmatpush1.msra.mxu0 0.0
    %4857 = vmatprep.subr.mxu0 0.0
    %4858 = vmatpush1.msra.mxu0 0.0
    %4859 = vmatprep.subr.mxu0 0.0
    %4860 = vmatpush1.msra.mxu0 0.0
    %4861 = vmatprep.subr.mxu0 0.0
    %4862 = vmatpush1.msra.mxu0 0.0
    %4863 = vmatprep.subr.mxu0 0.0
    %4864 = vmatpush1.msra.mxu0 0.0
    %4865 = vmatprep.subr.mxu0 0.0
    %4866 = vmatpush1.msra.mxu0 0.0
    %4867 = vmatprep.subr.mxu0 0.0
    %4868 = vmatpush1.msra.mxu0 0.0
    %4869 = vmatprep.subr.mxu0 0.0
    %4870 = vmatpush1.msra.mxu0 0.0
    %4871 = vmatprep.mubr.f32.mxu0 0.0
    %4872 = vmatmul.mubr.f32.gmra.mrb[0].mxu0 %v4805
    %v4873 = vpop.f32.mrb[0].mxu0
    %v4874 = vadd.f32 %v4803, %v4873
    %v4875 = vpop.f32.mrb[0].mxu0
    %4876 = vdwg.mxu0
    %v4877 = vmul.f32 %v4874, 0.5
    %v4878 = vmul.f32 %v4874, 0.044715
    %v4879 = vmul.f32 %v4878, %v4874
    %v4880 = vmul.f32 %v4879, %v4874
    %v4881 = vadd.f32 %v4874, %v4880
    %v4882 = vmul.f32 %v4881, 0.7978846
    %v4883 = vtanh.pop %v4882
    %v4884 = vadd.f32 %v4883, 1.0
    %v4885 = vmul.f32 %v4877, %v4884
    %v4886 = vlaneseq
    %v4887 = vshrl.u32 %v4886, 7
    %v4888 = vsub.s32 5, %v4887
    %v4889 = vrot.slane %v3878, %v4888
    %4890 = vmatprep.subr.mxu0 0.0
    %4891 = vmatpush1.msra.mxu0 %v3889
    %4892 = vmatprep.subr.mxu0 0.0
    %4893 = vmatpush1.msra.mxu0 %v3890
    %4894 = vmatprep.subr.mxu0 0.0
    %4895 = vmatpush1.msra.mxu0 %v3891
    %4896 = vmatprep.subr.mxu0 0.0
    %4897 = vmatpush1.msra.mxu0 %v3892
    %4898 = vmatprep.subr.mxu0 0.0
    %4899 = vmatpush1.msra.mxu0 %v3893
    %4900 = vmatprep.subr.mxu0 0.0
    %4901 = vmatpush1.msra.mxu0 %v3894
    %4902 = vmatprep.subr.mxu0 0.0
    %4903 = vmatpush1.msra.mxu0 %v3895
    %4904 = vmatprep.subr.mxu0 0.0
    %4905 = vmatpush1.msra.mxu0 %v3896
    %4906 = vmatprep.subr.mxu0 0.0
    %4907 = vmatpush1.msra.mxu0 %v3897
    %4908 = vmatprep.subr.mxu0 0.0
    %4909 = vmatpush1.msra.mxu0 %v3898
    %4910 = vmatprep.subr.mxu0 0.0
    %4911 = vmatpush1.msra.mxu0 %v3899
    %4912 = vmatprep.subr.mxu0 0.0
    %4913 = vmatpush1.msra.mxu0 %v3900
    %4914 = vmatprep.subr.mxu0 0.0
    %4915 = vmatpush1.msra.mxu0 %v3901
    %4916 = vmatprep.subr.mxu0 0.0
    %4917 = vmatpush1.msra.mxu0 %v3902
    %4918 = vmatprep.subr.mxu0 0.0
    %4919 = vmatpush1.msra.mxu0 %v3903
    %4920 = vmatprep.subr.mxu0 0.0
    %4921 = vmatpush1.msra.mxu0 %v3904
    %4922 = vmatprep.subr.mxu0 0.0
    %4923 = vmatpush1.msra.mxu0 0.0
    %4924 = vmatprep.subr.mxu0 0.0
    %4925 = vmatpush1.msra.mxu0 0.0
    %4926 = vmatprep.subr.mxu0 0.0
    %4927 = vmatpush1.msra.mxu0 0.0
    %4928 = vmatprep.subr.mxu0 0.0
    %4929 = vmatpush1.msra.mxu0 0.0
    %4930 = vmatprep.subr.mxu0 0.0
    %4931 = vmatpush1.msra.mxu0 0.0
    %4932 = vmatprep.subr.mxu0 0.0
    %4933 = vmatpush1.msra.mxu0 0.0
    %4934 = vmatprep.subr.mxu0 0.0
    %4935 = vmatpush1.msra.mxu0 0.0
    %4936 = vmatprep.subr.mxu0 0.0
    %4937 = vmatpush1.msra.mxu0 0.0
    %4938 = vmatprep.subr.mxu0 0.0
    %4939 = vmatpush1.msra.mxu0 0.0
    %4940 = vmatprep.subr.mxu0 0.0
    %4941 = vmatpush1.msra.mxu0 0.0
    %4942 = vmatprep.subr.mxu0 0.0
    %4943 = vmatpush1.msra.mxu0 0.0
    %4944 = vmatprep.subr.mxu0 0.0
    %4945 = vmatpush1.msra.mxu0 0.0
    %4946 = vmatprep.subr.mxu0 0.0
    %4947 = vmatpush1.msra.mxu0 0.0
    %4948 = vmatprep.subr.mxu0 0.0
    %4949 = vmatpush1.msra.mxu0 0.0
    %4950 = vmatprep.subr.mxu0 0.0
    %4951 = vmatpush1.msra.mxu0 0.0
    %4952 = vmatprep.subr.mxu0 0.0
    %4953 = vmatpush1.msra.mxu0 0.0
    %4954 = vmatprep.mubr.f32.mxu0 0.0
    %4955 = vmatmul.mubr.f32.gmra.mrb[0].mxu0 %v4885
    %v4956 = vpop.f32.mrb[0].mxu0
    %v4957 = vadd.f32 %v4889, %v4956
    %v4958 = vpop.f32.mrb[0].mxu0
    %4959 = vdwg.mxu0
    %v4960 = vadd.f32 %v4957, %v4776
    %v4962 = vsel %vm186, %v32, 0
    %v4965 = vsel %vm186, %v33, 0
    %4967 = vmatprep.subr.mxu0 0.0
    %4968 = vmatpush1.msra.mxu0 %v4960
    %4969 = vmatprep.subr.mxu0 0.0
    %4970 = vmatpush1.msra.mxu0 0.0
    %4971 = vmatprep.subr.mxu0 0.0
    %4972 = vmatpush1.msra.mxu0 0.0
    %4973 = vmatprep.subr.mxu0 0.0
    %4974 = vmatpush1.msra.mxu0 0.0
    %4975 = vmatprep.subr.mxu0 0.0
    %4976 = vmatpush1.msra.mxu0 0.0
    %4977 = vmatprep.subr.mxu0 0.0
    %4978 = vmatpush1.msra.mxu0 0.0
    %4979 = vmatprep.subr.mxu0 0.0
    %4980 = vmatpush1.msra.mxu0 0.0
    %4981 = vmatprep.subr.mxu0 0.0
    %4982 = vmatpush1.msra.mxu0 0.0
    %4983 = vmatprep.subr.mxu0 0.0
    %4984 = vmatpush1.msra.mxu0 0.0
    %4985 = vmatprep.subr.mxu0 0.0
    %4986 = vmatpush1.msra.mxu0 0.0
    %4987 = vmatprep.subr.mxu0 0.0
    %4988 = vmatpush1.msra.mxu0 0.0
    %4989 = vmatprep.subr.mxu0 0.0
    %4990 = vmatpush1.msra.mxu0 0.0
    %4991 = vmatprep.subr.mxu0 0.0
    %4992 = vmatpush1.msra.mxu0 0.0
    %4993 = vmatprep.subr.mxu0 0.0
    %4994 = vmatpush1.msra.mxu0 0.0
    %4995 = vmatprep.subr.mxu0 0.0
    %4996 = vmatpush1.msra.mxu0 0.0
    %4997 = vmatprep.subr.mxu0 0.0
    %4998 = vmatpush1.msra.mxu0 0.0
    %4999 = vmatprep.subr.mxu0 0.0
    %5000 = vmatpush1.msra.mxu0 0.0
    %5001 = vmatprep.subr.mxu0 0.0
    %5002 = vmatpush1.msra.mxu0 0.0
    %5003 = vmatprep.subr.mxu0 0.0
    %5004 = vmatpush1.msra.mxu0 0.0
    %5005 = vmatprep.subr.mxu0 0.0
    %5006 = vmatpush1.msra.mxu0 0.0
    %5007 = vmatprep.subr.mxu0 0.0
    %5008 = vmatpush1.msra.mxu0 0.0
    %5009 = vmatprep.subr.mxu0 0.0
    %5010 = vmatpush1.msra.mxu0 0.0
    %5011 = vmatprep.subr.mxu0 0.0
    %5012 = vmatpush1.msra.mxu0 0.0
    %5013 = vmatprep.subr.mxu0 0.0
    %5014 = vmatpush1.msra.mxu0 0.0
    %5015 = vmatprep.subr.mxu0 0.0
    %5016 = vmatpush1.msra.mxu0 0.0
    %5017 = vmatprep.subr.mxu0 0.0
    %5018 = vmatpush1.msra.mxu0 0.0
    %5019 = vmatprep.subr.mxu0 0.0
    %5020 = vmatpush1.msra.mxu0 0.0
    %5021 = vmatprep.subr.mxu0 0.0
    %5022 = vmatpush1.msra.mxu0 0.0
    %5023 = vmatprep.subr.mxu0 0.0
    %5024 = vmatpush1.msra.mxu0 0.0
    %5025 = vmatprep.subr.mxu0 0.0
    %5026 = vmatpush1.msra.mxu0 0.0
    %5027 = vmatprep.subr.mxu0 0.0
    %5028 = vmatpush1.msra.mxu0 0.0
    %5029 = vmatprep.subr.mxu0 0.0
    %5030 = vmatpush1.msra.mxu0 0.0
    %5031 = vmatprep.mubr.f32.mxu0 0.0
    %5032 = vmatmul.mubr.f32.gmra.mrb[0].mxu0 %v4962
    %v5033 = vpop.f32.mrb[0].mxu0
    %v5034 = vadd.f32 %v2666, %v5033
    %v5035 = vpop.f32.mrb[0].mxu0
    %5036 = vmatprep.mubr.f32.mxu0 0.0
    %5037 = vmatmul.mubr.f32.gmra.mrb[0].mxu0 %v4965
    %v5038 = vpop.f32.mrb[0].mxu0
    %v5039 = vadd.f32 %v2667, %v5038
    %v5040 = vpop.f32.mrb[0].mxu0
    %5041 = vdwg.mxu0
    %5042 = vst.msk [vmem:[#allocation2] sm:$0xff] %vm59, %v5034
    %5043 = vst.msk [vmem:[#allocation2 + $0x8] sm:$0xff] %vm59, %v5039
    // Predicated region
    $region22: #{funnel_encoder_forward.1} parent=1 // pred_check
      _
    $region23: #{funnel_encoder_forward.1} parent=1 // pred_check_branch
      %5045 = sbr.rel (0) target = $region25
    $region24: #{funnel_encoder_forward.1} parent=1 // pred_region
      %s5047 = ssub.s32 256, 256
      %5048 = vsyncadd [#allocation3], %s5047
      %s5049 = sshll.u32 [#allocation2], 4
      %s5050 = int_to_ptr.vmem [resolvable:$true] %s5049
      %5055 = dma.vmem_to_hbm [thread:$0]  %s5050, 256, %s5, [#allocation3], 128, 128, 8
    $region25: #{funnel_encoder_forward.1} parent=1 // pred_fallthru
      _
    // Predicated region
    $region26: #{funnel_encoder_forward.1} parent=1 // pred_check
      _
    $region27: #{funnel_encoder_forward.1} parent=1 // pred_check_branch
      %5057 = sbr.rel (0) target = $region29
    $region28: #{funnel_encoder_forward.1} parent=1 // pred_region
      %5058 = dma.done [#allocation3], 256
    $region29: #{funnel_encoder_forward.1} parent=1 // pred_fallthru
      _
    %5059 = vsyncpa [#allocation3], 1

</llo_original>
